<compile_context>
chip_gen: v6e
topology: v6e:2x2x1
jax: 0.10.0
libtpu: 0.0.40
codegen_flags: <defaults>
</compile_context>

<pallas_src>
import jax
import jax.numpy as jnp
from jax.experimental import pallas as pl
from jax.experimental.pallas import tpu as pltpu

HIDDEN = 128
NUM_LAYERS = 3

# Set to jnp.bfloat16 on v6e/v7x for 2x MXU throughput and half the weight
# vld/vreg traffic (relax the allclose tolerance in __main__ if you do).
# Keep f32 by default so the f32 reference check stays tight; elementwise /
# state math is always f32 (v5e has no bf16 VPU/EUP path).
MATMUL_DTYPE = jnp.float32


def _sigmoid(x):
    # tanh form: a single EUP transcendental per gate (vs exp + reciprocal).
    return 0.5 * jnp.tanh(0.5 * x) + 0.5


def lstm_kernel(x_ref,                 # (T*B, D)   time-major, flattened
                wih0_ref, b0_ref,      # (D, 4H), (1, 4H)   layer-0 input proj
                whh0_ref,              # (H, 4H)            layer-0 recurrent
                w1_ref, b1_ref,        # (2H, 4H), (1, 4H)  layer-1 fused [ih;hh]
                w2_ref, b2_ref,        # (2H, 4H), (1, 4H)  layer-2 fused [ih;hh]
                w_head_ref, b_head_ref,  # (H, 1), (1, 1)   folded linear heads
                out_ref,               # (B, 1)
                xp_ref):               # scratch (T*B, 4H) f32
    B = out_ref.shape[0]
    H = whh0_ref.shape[0]
    T = x_ref.shape[0] // B

    # ---- Precompute layer-0 input projection for every timestep -----------
    # One M = T*B matmul (fills MXU rows) instead of T tiny M = B matmuls on
    # the serial recurrence path; layer-0 bias is folded in here too.
    xp_ref[...] = (
        jnp.dot(x_ref[...], wih0_ref[...], preferred_element_type=jnp.float32)
        + b0_ref[...])

    # Pre-broadcast layer-1/2 biases once (broadcast_in_dim is not CSE'd, so
    # doing it inside the loop would re-emit it T times on the critical path).
    b1 = jnp.broadcast_to(b1_ref[...], (B, 4 * H))
    b2 = jnp.broadcast_to(b2_ref[...], (B, 4 * H))

    def gates_to_hc(gates, c):
        i = _sigmoid(gates[:, 0 * H:1 * H])
        f = _sigmoid(gates[:, 1 * H:2 * H])
        g = jnp.tanh(gates[:, 2 * H:3 * H])
        o = _sigmoid(gates[:, 3 * H:4 * H])
        c_new = f * c + i * g
        h_new = o * jnp.tanh(c_new)
        return h_new, c_new

    zeros = jnp.zeros((B, H), jnp.float32)
    h0 = c0 = h1 = c1 = h2 = c2 = zeros

    # ---- Statically unrolled recurrence (T small & static) ----------------
    # Weights are read from their VMEM refs inside the body so Mosaic streams
    # them per dot instead of pinning 64-vreg weight values across the loop.
    for t in range(T):
        # Layer 0: input projection precomputed; only the recurrent dot left.
        g0 = (xp_ref[pl.ds(t * B, B), :]
              + jnp.dot(h0.astype(whh0_ref.dtype), whh0_ref[...],
                        preferred_element_type=jnp.float32))
        h0, c0 = gates_to_hc(g0, c0)

        # Layers 1/2: fused [x_t, h] @ [[W_ih], [W_hh]] -> one K = 2H dot each.
        g1 = (jnp.dot(jnp.concatenate([h0, h1], axis=1).astype(w1_ref.dtype),
                      w1_ref[...], preferred_element_type=jnp.float32) + b1)
        h1, c1 = gates_to_hc(g1, c1)

        g2 = (jnp.dot(jnp.concatenate([h1, h2], axis=1).astype(w2_ref.dtype),
                      w2_ref[...], preferred_element_type=jnp.float32) + b2)
        h2, c2 = gates_to_hc(g2, c2)

    # ---- Epilogue: both Linear heads folded into one affine map -----------
    out_ref[...] = (jnp.dot(h2, w_head_ref[...],
                            preferred_element_type=jnp.float32)
                    + b_head_ref[...])


def lstm_forward(x, params, matmul_dtype=MATMUL_DTYPE):
    """x: (B, T, D) float32. Returns (B, 1) float32."""
    (wih0, whh0, b0, wih1, whh1, b1, wih2, whh2, b2,
     w_l1, b_l1, w_l2, b_l2) = params
    B, T, D = x.shape
    H = whh0.shape[0]

    # Time-major and flattened to (T*B, D) so the layer-0 input projection is
    # a single big matmul inside the kernel.
    x_flat = jnp.transpose(x, (1, 0, 2)).reshape(T * B, D).astype(matmul_dtype)

    # Fuse W_ih / W_hh for layers 1 and 2 (stack along the contraction axis).
    w1 = jnp.concatenate([wih1, whh1], axis=0).astype(matmul_dtype)   # (2H, 4H)
    w2 = jnp.concatenate([wih2, whh2], axis=0).astype(matmul_dtype)   # (2H, 4H)
    wih0_c = wih0.astype(matmul_dtype)
    whh0_c = whh0.astype(matmul_dtype)

    # No nonlinearity between the two Linears -> compose into one affine map.
    w_head = (w_l1 @ w_l2).astype(jnp.float32)          # (H, 1)
    b_head = (b_l1 @ w_l2 + b_l2).astype(jnp.float32)   # (1, 1)

    inputs = (x_flat, wih0_c, b0, whh0_c, w1, b1, w2, b2, w_head, b_head)

    # TODO(synk): for batch >> 2, add a grid axis over batch with
    # dimension_semantics=("parallel",) so v7x's second TensorCore gets used;
    # at B=2 a single core is the right choice.
    return pl.pallas_call(
        lstm_kernel,
        out_shape=jax.ShapeDtypeStruct((B, 1), jnp.float32),
        in_specs=[pl.BlockSpec(memory_space=pltpu.MemorySpace.VMEM)] * len(inputs),
        out_specs=pl.BlockSpec(memory_space=pltpu.MemorySpace.VMEM),
        scratch_shapes=[pltpu.VMEM((T * B, 4 * H), jnp.float32)],
    )(*inputs)


def init_params(key, dimension, hidden=HIDDEN):
    """Deterministic synthetic weights with PyTorch-equivalent shapes.

    PyTorch stores weight_ih_lL as (4H, in) and weight_hh_lL as (4H, H); here
    they are kept pre-transposed to (in, 4H) / (H, 4H), and bias_ih + bias_hh
    are folded into a single (1, 4H) bias per layer. Gate order: i, f, g, o.
    """
    params = []
    k = 1.0 / jnp.sqrt(hidden)
    in_sizes = [dimension, hidden, hidden]
    for layer in range(NUM_LAYERS):
        key, k1, k2, k3 = jax.random.split(key, 4)
        in_sz = in_sizes[layer]
        w_ih = jax.random.uniform(k1, (in_sz, 4 * hidden), jnp.float32, -k, k)
        w_hh = jax.random.uniform(k2, (hidden, 4 * hidden), jnp.float32, -k, k)
        b = jax.random.uniform(k3, (1, 4 * hidden), jnp.float32, -2 * k, 2 * k)
        params += [w_ih, w_hh, b]
    key, k1, k2, k3, k4 = jax.random.split(key, 5)
    w_l1 = jax.random.uniform(k1, (hidden, 16), jnp.float32, -k, k)
    b_l1 = jax.random.uniform(k2, (1, 16), jnp.float32, -k, k)
    w_l2 = jax.random.uniform(k3, (16, 1), jnp.float32, -0.25, 0.25)
    b_l2 = jax.random.uniform(k4, (1, 1), jnp.float32, -0.25, 0.25)
    params += [w_l1, b_l1, w_l2, b_l2]
    return params


def lstm_reference(x, params):
    """Pure-JAX reference of the same forward pass (unfused, for checking)."""
    (wih0, whh0, b0, wih1, whh1, b1, wih2, whh2, b2,
     w_l1, b_l1, w_l2, b_l2) = params
    B, T, D = x.shape
    H = HIDDEN

    def cell(x_t, h, c, w_ih, w_hh, b):
        g = x_t @ w_ih + h @ w_hh + b
        i = jax.nn.sigmoid(g[:, 0 * H:1 * H])
        f = jax.nn.sigmoid(g[:, 1 * H:2 * H])
        gg = jnp.tanh(g[:, 2 * H:3 * H])
        o = jax.nn.sigmoid(g[:, 3 * H:4 * H])
        c = f * c + i * gg
        h = o * jnp.tanh(c)
        return h, c

    zeros = jnp.zeros((B, H), jnp.float32)
    h0 = c0 = h1 = c1 = h2 = c2 = zeros
    for t in range(T):
        x_t = x[:, t, :]
        h0, c0 = cell(x_t, h0, c0, wih0, whh0, b0)
        h1, c1 = cell(h0, h1, c1, wih1, whh1, b1)
        h2, c2 = cell(h1, h2, c2, wih2, whh2, b2)
    y = h2 @ w_l1 + b_l1
    y = y @ w_l2 + b_l2
    return y


if __name__ == "__main__":
    key = jax.random.PRNGKey(0)
    batch, seq, dimension = 2, 8, 32

    key, kx, kp = jax.random.split(key, 3)
    x = jax.random.normal(kx, (batch, seq, dimension), jnp.float32)
    params = init_params(kp, dimension)

    out = lstm_forward(x, params)
    out = jax.block_until_ready(out)

    ref = lstm_reference(x, params)
    assert out.shape == (batch, 1), out.shape
    # NOTE: if MATMUL_DTYPE is set to bf16 (v6e/v7x option), relax to ~2e-2.
    assert jnp.allclose(out, ref, atol=1e-3, rtol=1e-3), (out, ref)

    print("KERNEL_OK")
</pallas_src>

<mosaic_0001>
module attributes {stable_mosaic.version = 11 : i64} {
  func.func @lstm_kernel(%arg0: memref<16x32xf32, #tpu.memory_space<vmem>>, %arg1: memref<32x512xf32, #tpu.memory_space<vmem>>, %arg2: memref<1x512xf32, #tpu.memory_space<vmem>>, %arg3: memref<128x512xf32, #tpu.memory_space<vmem>>, %arg4: memref<256x512xf32, #tpu.memory_space<vmem>>, %arg5: memref<1x512xf32, #tpu.memory_space<vmem>>, %arg6: memref<256x512xf32, #tpu.memory_space<vmem>>, %arg7: memref<1x512xf32, #tpu.memory_space<vmem>>, %arg8: memref<128x1xf32, #tpu.memory_space<vmem>>, %arg9: memref<1x1xf32, #tpu.memory_space<vmem>>, %arg10: memref<2x1xf32, #tpu.memory_space<vmem>>, %arg11: memref<16x512xf32, #tpu.memory_space<vmem>>) attributes {dimension_semantics = [], scalar_prefetch = 0 : i64, scratch_operands = 1 : i64, tpu.core_type = #tpu.core_type<tc>} {
    %c0 = arith.constant 0 : index
    %c0_0 = arith.constant 0 : index
    %0 = vector.load %arg0[%c0, %c0_0] : memref<16x32xf32, #tpu.memory_space<vmem>>, vector<16x32xf32>
    %c0_1 = arith.constant 0 : index
    %c0_2 = arith.constant 0 : index
    %1 = vector.load %arg1[%c0_1, %c0_2] : memref<32x512xf32, #tpu.memory_space<vmem>>, vector<32x512xf32>
    %cst = arith.constant dense<0.000000e+00> : vector<16x512xf32>
    %2 = tpu.matmul %0, %1, %cst {dimension_numbers = #tpu.dot_dimension_numbers<[1], [0], [0], [1], [0, 0, 1, 1], [], []>} : vector<16x32xf32>, vector<32x512xf32>, vector<16x512xf32> -> vector<16x512xf32>
    %c0_3 = arith.constant 0 : index
    %c0_4 = arith.constant 0 : index
    %3 = vector.load %arg2[%c0_3, %c0_4] : memref<1x512xf32, #tpu.memory_space<vmem>>, vector<1x512xf32>
    %4 = vector.broadcast %3 : vector<1x512xf32> to vector<16x512xf32>
    %5 = arith.addf %2, %4 : vector<16x512xf32>
    %c0_5 = arith.constant 0 : index
    %c0_6 = arith.constant 0 : index
    %6 = vector.load %arg11[%c0_5, %c0_6] : memref<16x512xf32, #tpu.memory_space<vmem>>, vector<16x512xf32>
    tpu.vector_store %arg11[%c0_5, %c0_6], %5 {strides = array<i32>} : memref<16x512xf32, #tpu.memory_space<vmem>>, vector<16x512xf32>,
    %c0_7 = arith.constant 0 : index
    %c0_8 = arith.constant 0 : index
    %7 = vector.load %arg5[%c0_7, %c0_8] : memref<1x512xf32, #tpu.memory_space<vmem>>, vector<1x512xf32>
    %8 = vector.shape_cast %7 : vector<1x512xf32> to vector<1x512xf32>
    %9 = vector.broadcast %8 : vector<1x512xf32> to vector<2x512xf32>
    %c0_9 = arith.constant 0 : index
    %c0_10 = arith.constant 0 : index
    %10 = vector.load %arg7[%c0_9, %c0_10] : memref<1x512xf32, #tpu.memory_space<vmem>>, vector<1x512xf32>
    %11 = vector.shape_cast %10 : vector<1x512xf32> to vector<1x512xf32>
    %12 = vector.broadcast %11 : vector<1x512xf32> to vector<2x512xf32>
    %cst_11 = arith.constant 0.000000e+00 : f32
    %13 = vector.broadcast %cst_11 : f32 to vector<2x128xf32>
    %c0_12 = arith.constant 0 : index
    %c0_13 = arith.constant 0 : index
    %14 = vector.load %arg11[%c0_12, %c0_13] : memref<16x512xf32, #tpu.memory_space<vmem>>, vector<2x512xf32>
    %c0_14 = arith.constant 0 : index
    %c0_15 = arith.constant 0 : index
    %15 = vector.load %arg3[%c0_14, %c0_15] : memref<128x512xf32, #tpu.memory_space<vmem>>, vector<128x512xf32>
    %cst_16 = arith.constant dense<0.000000e+00> : vector<2x512xf32>
    %16 = tpu.matmul %13, %15, %cst_16 {dimension_numbers = #tpu.dot_dimension_numbers<[1], [0], [0], [1], [0, 0, 1, 1], [], []>} : vector<2x128xf32>, vector<128x512xf32>, vector<2x512xf32> -> vector<2x512xf32>
    %17 = arith.addf %14, %16 : vector<2x512xf32>
    %18 = vector.extract_strided_slice %17 {offsets = [0, 0], sizes = [2, 128], strides = [1, 1]} : vector<2x512xf32> to vector<2x128xf32>
    %cst_17 = arith.constant 5.000000e-01 : f32
    %19 = vector.broadcast %cst_17 : f32 to vector<2x128xf32>
    %20 = arith.mulf %19, %18 : vector<2x128xf32>
    %21 = math.tanh %20 : vector<2x128xf32>
    %cst_18 = arith.constant 5.000000e-01 : f32
    %22 = vector.broadcast %cst_18 : f32 to vector<2x128xf32>
    %23 = arith.mulf %22, %21 : vector<2x128xf32>
    %cst_19 = arith.constant 5.000000e-01 : f32
    %24 = vector.broadcast %cst_19 : f32 to vector<2x128xf32>
    %25 = arith.addf %23, %24 : vector<2x128xf32>
    %26 = vector.extract_strided_slice %17 {offsets = [0, 128], sizes = [2, 128], strides = [1, 1]} : vector<2x512xf32> to vector<2x128xf32>
    %cst_20 = arith.constant 5.000000e-01 : f32
    %27 = vector.broadcast %cst_20 : f32 to vector<2x128xf32>
    %28 = arith.mulf %27, %26 : vector<2x128xf32>
    %29 = math.tanh %28 : vector<2x128xf32>
    %cst_21 = arith.constant 5.000000e-01 : f32
    %30 = vector.broadcast %cst_21 : f32 to vector<2x128xf32>
    %31 = arith.mulf %30, %29 : vector<2x128xf32>
    %cst_22 = arith.constant 5.000000e-01 : f32
    %32 = vector.broadcast %cst_22 : f32 to vector<2x128xf32>
    %33 = arith.addf %31, %32 : vector<2x128xf32>
    %34 = vector.extract_strided_slice %17 {offsets = [0, 256], sizes = [2, 128], strides = [1, 1]} : vector<2x512xf32> to vector<2x128xf32>
    %35 = math.tanh %34 : vector<2x128xf32>
    %36 = vector.extract_strided_slice %17 {offsets = [0, 384], sizes = [2, 128], strides = [1, 1]} : vector<2x512xf32> to vector<2x128xf32>
    %cst_23 = arith.constant 5.000000e-01 : f32
    %37 = vector.broadcast %cst_23 : f32 to vector<2x128xf32>
    %38 = arith.mulf %37, %36 : vector<2x128xf32>
    %39 = math.tanh %38 : vector<2x128xf32>
    %cst_24 = arith.constant 5.000000e-01 : f32
    %40 = vector.broadcast %cst_24 : f32 to vector<2x128xf32>
    %41 = arith.mulf %40, %39 : vector<2x128xf32>
    %cst_25 = arith.constant 5.000000e-01 : f32
    %42 = vector.broadcast %cst_25 : f32 to vector<2x128xf32>
    %43 = arith.addf %41, %42 : vector<2x128xf32>
    %44 = arith.mulf %33, %13 : vector<2x128xf32>
    %45 = arith.mulf %25, %35 : vector<2x128xf32>
    %46 = arith.addf %44, %45 : vector<2x128xf32>
    %47 = math.tanh %46 : vector<2x128xf32>
    %48 = arith.mulf %43, %47 : vector<2x128xf32>
    %49 = tpu.concatenate %48, %13 in 1 : vector<2x128xf32>, vector<2x128xf32> -> vector<2x256xf32>
    %c0_26 = arith.constant 0 : index
    %c0_27 = arith.constant 0 : index
    %50 = vector.load %arg4[%c0_26, %c0_27] : memref<256x512xf32, #tpu.memory_space<vmem>>, vector<256x512xf32>
    %cst_28 = arith.constant dense<0.000000e+00> : vector<2x512xf32>
    %51 = tpu.matmul %49, %50, %cst_28 {dimension_numbers = #tpu.dot_dimension_numbers<[1], [0], [0], [1], [0, 0, 1, 1], [], []>} : vector<2x256xf32>, vector<256x512xf32>, vector<2x512xf32> -> vector<2x512xf32>
    %52 = arith.addf %51, %9 : vector<2x512xf32>
    %53 = vector.extract_strided_slice %52 {offsets = [0, 0], sizes = [2, 128], strides = [1, 1]} : vector<2x512xf32> to vector<2x128xf32>
    %cst_29 = arith.constant 5.000000e-01 : f32
    %54 = vector.broadcast %cst_29 : f32 to vector<2x128xf32>
    %55 = arith.mulf %54, %53 : vector<2x128xf32>
    %56 = math.tanh %55 : vector<2x128xf32>
    %cst_30 = arith.constant 5.000000e-01 : f32
    %57 = vector.broadcast %cst_30 : f32 to vector<2x128xf32>
    %58 = arith.mulf %57, %56 : vector<2x128xf32>
    %cst_31 = arith.constant 5.000000e-01 : f32
    %59 = vector.broadcast %cst_31 : f32 to vector<2x128xf32>
    %60 = arith.addf %58, %59 : vector<2x128xf32>
    %61 = vector.extract_strided_slice %52 {offsets = [0, 128], sizes = [2, 128], strides = [1, 1]} : vector<2x512xf32> to vector<2x128xf32>
    %cst_32 = arith.constant 5.000000e-01 : f32
    %62 = vector.broadcast %cst_32 : f32 to vector<2x128xf32>
    %63 = arith.mulf %62, %61 : vector<2x128xf32>
    %64 = math.tanh %63 : vector<2x128xf32>
    %cst_33 = arith.constant 5.000000e-01 : f32
    %65 = vector.broadcast %cst_33 : f32 to vector<2x128xf32>
    %66 = arith.mulf %65, %64 : vector<2x128xf32>
    %cst_34 = arith.constant 5.000000e-01 : f32
    %67 = vector.broadcast %cst_34 : f32 to vector<2x128xf32>
    %68 = arith.addf %66, %67 : vector<2x128xf32>
    %69 = vector.extract_strided_slice %52 {offsets = [0, 256], sizes = [2, 128], strides = [1, 1]} : vector<2x512xf32> to vector<2x128xf32>
    %70 = math.tanh %69 : vector<2x128xf32>
    %71 = vector.extract_strided_slice %52 {offsets = [0, 384], sizes = [2, 128], strides = [1, 1]} : vector<2x512xf32> to vector<2x128xf32>
    %cst_35 = arith.constant 5.000000e-01 : f32
    %72 = vector.broadcast %cst_35 : f32 to vector<2x128xf32>
    %73 = arith.mulf %72, %71 : vector<2x128xf32>
    %74 = math.tanh %73 : vector<2x128xf32>
    %cst_36 = arith.constant 5.000000e-01 : f32
    %75 = vector.broadcast %cst_36 : f32 to vector<2x128xf32>
    %76 = arith.mulf %75, %74 : vector<2x128xf32>
    %cst_37 = arith.constant 5.000000e-01 : f32
    %77 = vector.broadcast %cst_37 : f32 to vector<2x128xf32>
    %78 = arith.addf %76, %77 : vector<2x128xf32>
    %79 = arith.mulf %68, %13 : vector<2x128xf32>
    %80 = arith.mulf %60, %70 : vector<2x128xf32>
    %81 = arith.addf %79, %80 : vector<2x128xf32>
    %82 = math.tanh %81 : vector<2x128xf32>
    %83 = arith.mulf %78, %82 : vector<2x128xf32>
    %84 = tpu.concatenate %83, %13 in 1 : vector<2x128xf32>, vector<2x128xf32> -> vector<2x256xf32>
    %c0_38 = arith.constant 0 : index
    %c0_39 = arith.constant 0 : index
    %85 = vector.load %arg6[%c0_38, %c0_39] : memref<256x512xf32, #tpu.memory_space<vmem>>, vector<256x512xf32>
    %cst_40 = arith.constant dense<0.000000e+00> : vector<2x512xf32>
    %86 = tpu.matmul %84, %85, %cst_40 {dimension_numbers = #tpu.dot_dimension_numbers<[1], [0], [0], [1], [0, 0, 1, 1], [], []>} : vector<2x256xf32>, vector<256x512xf32>, vector<2x512xf32> -> vector<2x512xf32>
    %87 = arith.addf %86, %12 : vector<2x512xf32>
    %88 = vector.extract_strided_slice %87 {offsets = [0, 0], sizes = [2, 128], strides = [1, 1]} : vector<2x512xf32> to vector<2x128xf32>
    %cst_41 = arith.constant 5.000000e-01 : f32
    %89 = vector.broadcast %cst_41 : f32 to vector<2x128xf32>
    %90 = arith.mulf %89, %88 : vector<2x128xf32>
    %91 = math.tanh %90 : vector<2x128xf32>
    %cst_42 = arith.constant 5.000000e-01 : f32
    %92 = vector.broadcast %cst_42 : f32 to vector<2x128xf32>
    %93 = arith.mulf %92, %91 : vector<2x128xf32>
    %cst_43 = arith.constant 5.000000e-01 : f32
    %94 = vector.broadcast %cst_43 : f32 to vector<2x128xf32>
    %95 = arith.addf %93, %94 : vector<2x128xf32>
    %96 = vector.extract_strided_slice %87 {offsets = [0, 128], sizes = [2, 128], strides = [1, 1]} : vector<2x512xf32> to vector<2x128xf32>
    %cst_44 = arith.constant 5.000000e-01 : f32
    %97 = vector.broadcast %cst_44 : f32 to vector<2x128xf32>
    %98 = arith.mulf %97, %96 : vector<2x128xf32>
    %99 = math.tanh %98 : vector<2x128xf32>
    %cst_45 = arith.constant 5.000000e-01 : f32
    %100 = vector.broadcast %cst_45 : f32 to vector<2x128xf32>
    %101 = arith.mulf %100, %99 : vector<2x128xf32>
    %cst_46 = arith.constant 5.000000e-01 : f32
    %102 = vector.broadcast %cst_46 : f32 to vector<2x128xf32>
    %103 = arith.addf %101, %102 : vector<2x128xf32>
    %104 = vector.extract_strided_slice %87 {offsets = [0, 256], sizes = [2, 128], strides = [1, 1]} : vector<2x512xf32> to vector<2x128xf32>
    %105 = math.tanh %104 : vector<2x128xf32>
    %106 = vector.extract_strided_slice %87 {offsets = [0, 384], sizes = [2, 128], strides = [1, 1]} : vector<2x512xf32> to vector<2x128xf32>
    %cst_47 = arith.constant 5.000000e-01 : f32
    %107 = vector.broadcast %cst_47 : f32 to vector<2x128xf32>
    %108 = arith.mulf %107, %106 : vector<2x128xf32>
    %109 = math.tanh %108 : vector<2x128xf32>
    %cst_48 = arith.constant 5.000000e-01 : f32
    %110 = vector.broadcast %cst_48 : f32 to vector<2x128xf32>
    %111 = arith.mulf %110, %109 : vector<2x128xf32>
    %cst_49 = arith.constant 5.000000e-01 : f32
    %112 = vector.broadcast %cst_49 : f32 to vector<2x128xf32>
    %113 = arith.addf %111, %112 : vector<2x128xf32>
    %114 = arith.mulf %103, %13 : vector<2x128xf32>
    %115 = arith.mulf %95, %105 : vector<2x128xf32>
    %116 = arith.addf %114, %115 : vector<2x128xf32>
    %117 = math.tanh %116 : vector<2x128xf32>
    %118 = arith.mulf %113, %117 : vector<2x128xf32>
    %c2 = arith.constant 2 : index
    %c0_50 = arith.constant 0 : index
    %119 = vector.load %arg11[%c2, %c0_50] : memref<16x512xf32, #tpu.memory_space<vmem>>, vector<2x512xf32>
    %c0_51 = arith.constant 0 : index
    %c0_52 = arith.constant 0 : index
    %120 = vector.load %arg3[%c0_51, %c0_52] : memref<128x512xf32, #tpu.memory_space<vmem>>, vector<128x512xf32>
    %cst_53 = arith.constant dense<0.000000e+00> : vector<2x512xf32>
    %121 = tpu.matmul %48, %120, %cst_53 {dimension_numbers = #tpu.dot_dimension_numbers<[1], [0], [0], [1], [0, 0, 1, 1], [], []>} : vector<2x128xf32>, vector<128x512xf32>, vector<2x512xf32> -> vector<2x512xf32>
    %122 = arith.addf %119, %121 : vector<2x512xf32>
    %123 = vector.extract_strided_slice %122 {offsets = [0, 0], sizes = [2, 128], strides = [1, 1]} : vector<2x512xf32> to vector<2x128xf32>
    %cst_54 = arith.constant 5.000000e-01 : f32
    %124 = vector.broadcast %cst_54 : f32 to vector<2x128xf32>
    %125 = arith.mulf %124, %123 : vector<2x128xf32>
    %126 = math.tanh %125 : vector<2x128xf32>
    %cst_55 = arith.constant 5.000000e-01 : f32
    %127 = vector.broadcast %cst_55 : f32 to vector<2x128xf32>
    %128 = arith.mulf %127, %126 : vector<2x128xf32>
    %cst_56 = arith.constant 5.000000e-01 : f32
    %129 = vector.broadcast %cst_56 : f32 to vector<2x128xf32>
    %130 = arith.addf %128, %129 : vector<2x128xf32>
    %131 = vector.extract_strided_slice %122 {offsets = [0, 128], sizes = [2, 128], strides = [1, 1]} : vector<2x512xf32> to vector<2x128xf32>
    %cst_57 = arith.constant 5.000000e-01 : f32
    %132 = vector.broadcast %cst_57 : f32 to vector<2x128xf32>
    %133 = arith.mulf %132, %131 : vector<2x128xf32>
    %134 = math.tanh %133 : vector<2x128xf32>
    %cst_58 = arith.constant 5.000000e-01 : f32
    %135 = vector.broadcast %cst_58 : f32 to vector<2x128xf32>
    %136 = arith.mulf %135, %134 : vector<2x128xf32>
    %cst_59 = arith.constant 5.000000e-01 : f32
    %137 = vector.broadcast %cst_59 : f32 to vector<2x128xf32>
    %138 = arith.addf %136, %137 : vector<2x128xf32>
    %139 = vector.extract_strided_slice %122 {offsets = [0, 256], sizes = [2, 128], strides = [1, 1]} : vector<2x512xf32> to vector<2x128xf32>
    %140 = math.tanh %139 : vector<2x128xf32>
    %141 = vector.extract_strided_slice %122 {offsets = [0, 384], sizes = [2, 128], strides = [1, 1]} : vector<2x512xf32> to vector<2x128xf32>
    %cst_60 = arith.constant 5.000000e-01 : f32
    %142 = vector.broadcast %cst_60 : f32 to vector<2x128xf32>
    %143 = arith.mulf %142, %141 : vector<2x128xf32>
    %144 = math.tanh %143 : vector<2x128xf32>
    %cst_61 = arith.constant 5.000000e-01 : f32
    %145 = vector.broadcast %cst_61 : f32 to vector<2x128xf32>
    %146 = arith.mulf %145, %144 : vector<2x128xf32>
    %cst_62 = arith.constant 5.000000e-01 : f32
    %147 = vector.broadcast %cst_62 : f32 to vector<2x128xf32>
    %148 = arith.addf %146, %147 : vector<2x128xf32>
    %149 = arith.mulf %138, %46 : vector<2x128xf32>
    %150 = arith.mulf %130, %140 : vector<2x128xf32>
    %151 = arith.addf %149, %150 : vector<2x128xf32>
    %152 = math.tanh %151 : vector<2x128xf32>
    %153 = arith.mulf %148, %152 : vector<2x128xf32>
    %154 = tpu.concatenate %153, %83 in 1 : vector<2x128xf32>, vector<2x128xf32> -> vector<2x256xf32>
    %c0_63 = arith.constant 0 : index
    %c0_64 = arith.constant 0 : index
    %155 = vector.load %arg4[%c0_63, %c0_64] : memref<256x512xf32, #tpu.memory_space<vmem>>, vector<256x512xf32>
    %cst_65 = arith.constant dense<0.000000e+00> : vector<2x512xf32>
    %156 = tpu.matmul %154, %155, %cst_65 {dimension_numbers = #tpu.dot_dimension_numbers<[1], [0], [0], [1], [0, 0, 1, 1], [], []>} : vector<2x256xf32>, vector<256x512xf32>, vector<2x512xf32> -> vector<2x512xf32>
    %157 = arith.addf %156, %9 : vector<2x512xf32>
    %158 = vector.extract_strided_slice %157 {offsets = [0, 0], sizes = [2, 128], strides = [1, 1]} : vector<2x512xf32> to vector<2x128xf32>
    %cst_66 = arith.constant 5.000000e-01 : f32
    %159 = vector.broadcast %cst_66 : f32 to vector<2x128xf32>
    %160 = arith.mulf %159, %158 : vector<2x128xf32>
    %161 = math.tanh %160 : vector<2x128xf32>
    %cst_67 = arith.constant 5.000000e-01 : f32
    %162 = vector.broadcast %cst_67 : f32 to vector<2x128xf32>
    %163 = arith.mulf %162, %161 : vector<2x128xf32>
    %cst_68 = arith.constant 5.000000e-01 : f32
    %164 = vector.broadcast %cst_68 : f32 to vector<2x128xf32>
    %165 = arith.addf %163, %164 : vector<2x128xf32>
    %166 = vector.extract_strided_slice %157 {offsets = [0, 128], sizes = [2, 128], strides = [1, 1]} : vector<2x512xf32> to vector<2x128xf32>
    %cst_69 = arith.constant 5.000000e-01 : f32
    %167 = vector.broadcast %cst_69 : f32 to vector<2x128xf32>
    %168 = arith.mulf %167, %166 : vector<2x128xf32>
    %169 = math.tanh %168 : vector<2x128xf32>
    %cst_70 = arith.constant 5.000000e-01 : f32
    %170 = vector.broadcast %cst_70 : f32 to vector<2x128xf32>
    %171 = arith.mulf %170, %169 : vector<2x128xf32>
    %cst_71 = arith.constant 5.000000e-01 : f32
    %172 = vector.broadcast %cst_71 : f32 to vector<2x128xf32>
    %173 = arith.addf %171, %172 : vector<2x128xf32>
    %174 = vector.extract_strided_slice %157 {offsets = [0, 256], sizes = [2, 128], strides = [1, 1]} : vector<2x512xf32> to vector<2x128xf32>
    %175 = math.tanh %174 : vector<2x128xf32>
    %176 = vector.extract_strided_slice %157 {offsets = [0, 384], sizes = [2, 128], strides = [1, 1]} : vector<2x512xf32> to vector<2x128xf32>
    %cst_72 = arith.constant 5.000000e-01 : f32
    %177 = vector.broadcast %cst_72 : f32 to vector<2x128xf32>
    %178 = arith.mulf %177, %176 : vector<2x128xf32>
    %179 = math.tanh %178 : vector<2x128xf32>
    %cst_73 = arith.constant 5.000000e-01 : f32
    %180 = vector.broadcast %cst_73 : f32 to vector<2x128xf32>
    %181 = arith.mulf %180, %179 : vector<2x128xf32>
    %cst_74 = arith.constant 5.000000e-01 : f32
    %182 = vector.broadcast %cst_74 : f32 to vector<2x128xf32>
    %183 = arith.addf %181, %182 : vector<2x128xf32>
    %184 = arith.mulf %173, %81 : vector<2x128xf32>
    %185 = arith.mulf %165, %175 : vector<2x128xf32>
    %186 = arith.addf %184, %185 : vector<2x128xf32>
    %187 = math.tanh %186 : vector<2x128xf32>
    %188 = arith.mulf %183, %187 : vector<2x128xf32>
    %189 = tpu.concatenate %188, %118 in 1 : vector<2x128xf32>, vector<2x128xf32> -> vector<2x256xf32>
    %c0_75 = arith.constant 0 : index
    %c0_76 = arith.constant 0 : index
    %190 = vector.load %arg6[%c0_75, %c0_76] : memref<256x512xf32, #tpu.memory_space<vmem>>, vector<256x512xf32>
    %cst_77 = arith.constant dense<0.000000e+00> : vector<2x512xf32>
    %191 = tpu.matmul %189, %190, %cst_77 {dimension_numbers = #tpu.dot_dimension_numbers<[1], [0], [0], [1], [0, 0, 1, 1], [], []>} : vector<2x256xf32>, vector<256x512xf32>, vector<2x512xf32> -> vector<2x512xf32>
    %192 = arith.addf %191, %12 : vector<2x512xf32>
    %193 = vector.extract_strided_slice %192 {offsets = [0, 0], sizes = [2, 128], strides = [1, 1]} : vector<2x512xf32> to vector<2x128xf32>
    %cst_78 = arith.constant 5.000000e-01 : f32
    %194 = vector.broadcast %cst_78 : f32 to vector<2x128xf32>
    %195 = arith.mulf %194, %193 : vector<2x128xf32>
    %196 = math.tanh %195 : vector<2x128xf32>
    %cst_79 = arith.constant 5.000000e-01 : f32
    %197 = vector.broadcast %cst_79 : f32 to vector<2x128xf32>
    %198 = arith.mulf %197, %196 : vector<2x128xf32>
    %cst_80 = arith.constant 5.000000e-01 : f32
    %199 = vector.broadcast %cst_80 : f32 to vector<2x128xf32>
    %200 = arith.addf %198, %199 : vector<2x128xf32>
    %201 = vector.extract_strided_slice %192 {offsets = [0, 128], sizes = [2, 128], strides = [1, 1]} : vector<2x512xf32> to vector<2x128xf32>
    %cst_81 = arith.constant 5.000000e-01 : f32
    %202 = vector.broadcast %cst_81 : f32 to vector<2x128xf32>
    %203 = arith.mulf %202, %201 : vector<2x128xf32>
    %204 = math.tanh %203 : vector<2x128xf32>
    %cst_82 = arith.constant 5.000000e-01 : f32
    %205 = vector.broadcast %cst_82 : f32 to vector<2x128xf32>
    %206 = arith.mulf %205, %204 : vector<2x128xf32>
    %cst_83 = arith.constant 5.000000e-01 : f32
    %207 = vector.broadcast %cst_83 : f32 to vector<2x128xf32>
    %208 = arith.addf %206, %207 : vector<2x128xf32>
    %209 = vector.extract_strided_slice %192 {offsets = [0, 256], sizes = [2, 128], strides = [1, 1]} : vector<2x512xf32> to vector<2x128xf32>
    %210 = math.tanh %209 : vector<2x128xf32>
    %211 = vector.extract_strided_slice %192 {offsets = [0, 384], sizes = [2, 128], strides = [1, 1]} : vector<2x512xf32> to vector<2x128xf32>
    %cst_84 = arith.constant 5.000000e-01 : f32
    %212 = vector.broadcast %cst_84 : f32 to vector<2x128xf32>
    %213 = arith.mulf %212, %211 : vector<2x128xf32>
    %214 = math.tanh %213 : vector<2x128xf32>
    %cst_85 = arith.constant 5.000000e-01 : f32
    %215 = vector.broadcast %cst_85 : f32 to vector<2x128xf32>
    %216 = arith.mulf %215, %214 : vector<2x128xf32>
    %cst_86 = arith.constant 5.000000e-01 : f32
    %217 = vector.broadcast %cst_86 : f32 to vector<2x128xf32>
    %218 = arith.addf %216, %217 : vector<2x128xf32>
    %219 = arith.mulf %208, %116 : vector<2x128xf32>
    %220 = arith.mulf %200, %210 : vector<2x128xf32>
    %221 = arith.addf %219, %220 : vector<2x128xf32>
    %222 = math.tanh %221 : vector<2x128xf32>
    %223 = arith.mulf %218, %222 : vector<2x128xf32>
    %c4 = arith.constant 4 : index
    %c0_87 = arith.constant 0 : index
    %224 = vector.load %arg11[%c4, %c0_87] : memref<16x512xf32, #tpu.memory_space<vmem>>, vector<2x512xf32>
    %c0_88 = arith.constant 0 : index
    %c0_89 = arith.constant 0 : index
    %225 = vector.load %arg3[%c0_88, %c0_89] : memref<128x512xf32, #tpu.memory_space<vmem>>, vector<128x512xf32>
    %cst_90 = arith.constant dense<0.000000e+00> : vector<2x512xf32>
    %226 = tpu.matmul %153, %225, %cst_90 {dimension_numbers = #tpu.dot_dimension_numbers<[1], [0], [0], [1], [0, 0, 1, 1], [], []>} : vector<2x128xf32>, vector<128x512xf32>, vector<2x512xf32> -> vector<2x512xf32>
    %227 = arith.addf %224, %226 : vector<2x512xf32>
    %228 = vector.extract_strided_slice %227 {offsets = [0, 0], sizes = [2, 128], strides = [1, 1]} : vector<2x512xf32> to vector<2x128xf32>
    %cst_91 = arith.constant 5.000000e-01 : f32
    %229 = vector.broadcast %cst_91 : f32 to vector<2x128xf32>
    %230 = arith.mulf %229, %228 : vector<2x128xf32>
    %231 = math.tanh %230 : vector<2x128xf32>
    %cst_92 = arith.constant 5.000000e-01 : f32
    %232 = vector.broadcast %cst_92 : f32 to vector<2x128xf32>
    %233 = arith.mulf %232, %231 : vector<2x128xf32>
    %cst_93 = arith.constant 5.000000e-01 : f32
    %234 = vector.broadcast %cst_93 : f32 to vector<2x128xf32>
    %235 = arith.addf %233, %234 : vector<2x128xf32>
    %236 = vector.extract_strided_slice %227 {offsets = [0, 128], sizes = [2, 128], strides = [1, 1]} : vector<2x512xf32> to vector<2x128xf32>
    %cst_94 = arith.constant 5.000000e-01 : f32
    %237 = vector.broadcast %cst_94 : f32 to vector<2x128xf32>
    %238 = arith.mulf %237, %236 : vector<2x128xf32>
    %239 = math.tanh %238 : vector<2x128xf32>
    %cst_95 = arith.constant 5.000000e-01 : f32
    %240 = vector.broadcast %cst_95 : f32 to vector<2x128xf32>
    %241 = arith.mulf %240, %239 : vector<2x128xf32>
    %cst_96 = arith.constant 5.000000e-01 : f32
    %242 = vector.broadcast %cst_96 : f32 to vector<2x128xf32>
    %243 = arith.addf %241, %242 : vector<2x128xf32>
    %244 = vector.extract_strided_slice %227 {offsets = [0, 256], sizes = [2, 128], strides = [1, 1]} : vector<2x512xf32> to vector<2x128xf32>
    %245 = math.tanh %244 : vector<2x128xf32>
    %246 = vector.extract_strided_slice %227 {offsets = [0, 384], sizes = [2, 128], strides = [1, 1]} : vector<2x512xf32> to vector<2x128xf32>
    %cst_97 = arith.constant 5.000000e-01 : f32
    %247 = vector.broadcast %cst_97 : f32 to vector<2x128xf32>
    %248 = arith.mulf %247, %246 : vector<2x128xf32>
    %249 = math.tanh %248 : vector<2x128xf32>
    %cst_98 = arith.constant 5.000000e-01 : f32
    %250 = vector.broadcast %cst_98 : f32 to vector<2x128xf32>
    %251 = arith.mulf %250, %249 : vector<2x128xf32>
    %cst_99 = arith.constant 5.000000e-01 : f32
    %252 = vector.broadcast %cst_99 : f32 to vector<2x128xf32>
    %253 = arith.addf %251, %252 : vector<2x128xf32>
    %254 = arith.mulf %243, %151 : vector<2x128xf32>
    %255 = arith.mulf %235, %245 : vector<2x128xf32>
    %256 = arith.addf %254, %255 : vector<2x128xf32>
    %257 = math.tanh %256 : vector<2x128xf32>
    %258 = arith.mulf %253, %257 : vector<2x128xf32>
    %259 = tpu.concatenate %258, %188 in 1 : vector<2x128xf32>, vector<2x128xf32> -> vector<2x256xf32>
    %c0_100 = arith.constant 0 : index
    %c0_101 = arith.constant 0 : index
    %260 = vector.load %arg4[%c0_100, %c0_101] : memref<256x512xf32, #tpu.memory_space<vmem>>, vector<256x512xf32>
    %cst_102 = arith.constant dense<0.000000e+00> : vector<2x512xf32>
    %261 = tpu.matmul %259, %260, %cst_102 {dimension_numbers = #tpu.dot_dimension_numbers<[1], [0], [0], [1], [0, 0, 1, 1], [], []>} : vector<2x256xf32>, vector<256x512xf32>, vector<2x512xf32> -> vector<2x512xf32>
    %262 = arith.addf %261, %9 : vector<2x512xf32>
    %263 = vector.extract_strided_slice %262 {offsets = [0, 0], sizes = [2, 128], strides = [1, 1]} : vector<2x512xf32> to vector<2x128xf32>
    %cst_103 = arith.constant 5.000000e-01 : f32
    %264 = vector.broadcast %cst_103 : f32 to vector<2x128xf32>
    %265 = arith.mulf %264, %263 : vector<2x128xf32>
    %266 = math.tanh %265 : vector<2x128xf32>
    %cst_104 = arith.constant 5.000000e-01 : f32
    %267 = vector.broadcast %cst_104 : f32 to vector<2x128xf32>
    %268 = arith.mulf %267, %266 : vector<2x128xf32>
    %cst_105 = arith.constant 5.000000e-01 : f32
    %269 = vector.broadcast %cst_105 : f32 to vector<2x128xf32>
    %270 = arith.addf %268, %269 : vector<2x128xf32>
    %271 = vector.extract_strided_slice %262 {offsets = [0, 128], sizes = [2, 128], strides = [1, 1]} : vector<2x512xf32> to vector<2x128xf32>
    %cst_106 = arith.constant 5.000000e-01 : f32
    %272 = vector.broadcast %cst_106 : f32 to vector<2x128xf32>
    %273 = arith.mulf %272, %271 : vector<2x128xf32>
    %274 = math.tanh %273 : vector<2x128xf32>
    %cst_107 = arith.constant 5.000000e-01 : f32
    %275 = vector.broadcast %cst_107 : f32 to vector<2x128xf32>
    %276 = arith.mulf %275, %274 : vector<2x128xf32>
    %cst_108 = arith.constant 5.000000e-01 : f32
    %277 = vector.broadcast %cst_108 : f32 to vector<2x128xf32>
    %278 = arith.addf %276, %277 : vector<2x128xf32>
    %279 = vector.extract_strided_slice %262 {offsets = [0, 256], sizes = [2, 128], strides = [1, 1]} : vector<2x512xf32> to vector<2x128xf32>
    %280 = math.tanh %279 : vector<2x128xf32>
    %281 = vector.extract_strided_slice %262 {offsets = [0, 384], sizes = [2, 128], strides = [1, 1]} : vector<2x512xf32> to vector<2x128xf32>
    %cst_109 = arith.constant 5.000000e-01 : f32
    %282 = vector.broadcast %cst_109 : f32 to vector<2x128xf32>
    %283 = arith.mulf %282, %281 : vector<2x128xf32>
    %284 = math.tanh %283 : vector<2x128xf32>
    %cst_110 = arith.constant 5.000000e-01 : f32
    %285 = vector.broadcast %cst_110 : f32 to vector<2x128xf32>
    %286 = arith.mulf %285, %284 : vector<2x128xf32>
    %cst_111 = arith.constant 5.000000e-01 : f32
    %287 = vector.broadcast %cst_111 : f32 to vector<2x128xf32>
    %288 = arith.addf %286, %287 : vector<2x128xf32>
    %289 = arith.mulf %278, %186 : vector<2x128xf32>
    %290 = arith.mulf %270, %280 : vector<2x128xf32>
    %291 = arith.addf %289, %290 : vector<2x128xf32>
    %292 = math.tanh %291 : vector<2x128xf32>
    %293 = arith.mulf %288, %292 : vector<2x128xf32>
    %294 = tpu.concatenate %293, %223 in 1 : vector<2x128xf32>, vector<2x128xf32> -> vector<2x256xf32>
    %c0_112 = arith.constant 0 : index
    %c0_113 = arith.constant 0 : index
    %295 = vector.load %arg6[%c0_112, %c0_113] : memref<256x512xf32, #tpu.memory_space<vmem>>, vector<256x512xf32>
    %cst_114 = arith.constant dense<0.000000e+00> : vector<2x512xf32>
    %296 = tpu.matmul %294, %295, %cst_114 {dimension_numbers = #tpu.dot_dimension_numbers<[1], [0], [0], [1], [0, 0, 1, 1], [], []>} : vector<2x256xf32>, vector<256x512xf32>, vector<2x512xf32> -> vector<2x512xf32>
    %297 = arith.addf %296, %12 : vector<2x512xf32>
    %298 = vector.extract_strided_slice %297 {offsets = [0, 0], sizes = [2, 128], strides = [1, 1]} : vector<2x512xf32> to vector<2x128xf32>
    %cst_115 = arith.constant 5.000000e-01 : f32
    %299 = vector.broadcast %cst_115 : f32 to vector<2x128xf32>
    %300 = arith.mulf %299, %298 : vector<2x128xf32>
    %301 = math.tanh %300 : vector<2x128xf32>
    %cst_116 = arith.constant 5.000000e-01 : f32
    %302 = vector.broadcast %cst_116 : f32 to vector<2x128xf32>
    %303 = arith.mulf %302, %301 : vector<2x128xf32>
    %cst_117 = arith.constant 5.000000e-01 : f32
    %304 = vector.broadcast %cst_117 : f32 to vector<2x128xf32>
    %305 = arith.addf %303, %304 : vector<2x128xf32>
    %306 = vector.extract_strided_slice %297 {offsets = [0, 128], sizes = [2, 128], strides = [1, 1]} : vector<2x512xf32> to vector<2x128xf32>
    %cst_118 = arith.constant 5.000000e-01 : f32
    %307 = vector.broadcast %cst_118 : f32 to vector<2x128xf32>
    %308 = arith.mulf %307, %306 : vector<2x128xf32>
    %309 = math.tanh %308 : vector<2x128xf32>
    %cst_119 = arith.constant 5.000000e-01 : f32
    %310 = vector.broadcast %cst_119 : f32 to vector<2x128xf32>
    %311 = arith.mulf %310, %309 : vector<2x128xf32>
    %cst_120 = arith.constant 5.000000e-01 : f32
    %312 = vector.broadcast %cst_120 : f32 to vector<2x128xf32>
    %313 = arith.addf %311, %312 : vector<2x128xf32>
    %314 = vector.extract_strided_slice %297 {offsets = [0, 256], sizes = [2, 128], strides = [1, 1]} : vector<2x512xf32> to vector<2x128xf32>
    %315 = math.tanh %314 : vector<2x128xf32>
    %316 = vector.extract_strided_slice %297 {offsets = [0, 384], sizes = [2, 128], strides = [1, 1]} : vector<2x512xf32> to vector<2x128xf32>
    %cst_121 = arith.constant 5.000000e-01 : f32
    %317 = vector.broadcast %cst_121 : f32 to vector<2x128xf32>
    %318 = arith.mulf %317, %316 : vector<2x128xf32>
    %319 = math.tanh %318 : vector<2x128xf32>
    %cst_122 = arith.constant 5.000000e-01 : f32
    %320 = vector.broadcast %cst_122 : f32 to vector<2x128xf32>
    %321 = arith.mulf %320, %319 : vector<2x128xf32>
    %cst_123 = arith.constant 5.000000e-01 : f32
    %322 = vector.broadcast %cst_123 : f32 to vector<2x128xf32>
    %323 = arith.addf %321, %322 : vector<2x128xf32>
    %324 = arith.mulf %313, %221 : vector<2x128xf32>
    %325 = arith.mulf %305, %315 : vector<2x128xf32>
    %326 = arith.addf %324, %325 : vector<2x128xf32>
    %327 = math.tanh %326 : vector<2x128xf32>
    %328 = arith.mulf %323, %327 : vector<2x128xf32>
    %c6 = arith.constant 6 : index
    %c0_124 = arith.constant 0 : index
    %329 = vector.load %arg11[%c6, %c0_124] : memref<16x512xf32, #tpu.memory_space<vmem>>, vector<2x512xf32>
    %c0_125 = arith.constant 0 : index
    %c0_126 = arith.constant 0 : index
    %330 = vector.load %arg3[%c0_125, %c0_126] : memref<128x512xf32, #tpu.memory_space<vmem>>, vector<128x512xf32>
    %cst_127 = arith.constant dense<0.000000e+00> : vector<2x512xf32>
    %331 = tpu.matmul %258, %330, %cst_127 {dimension_numbers = #tpu.dot_dimension_numbers<[1], [0], [0], [1], [0, 0, 1, 1], [], []>} : vector<2x128xf32>, vector<128x512xf32>, vector<2x512xf32> -> vector<2x512xf32>
    %332 = arith.addf %329, %331 : vector<2x512xf32>
    %333 = vector.extract_strided_slice %332 {offsets = [0, 0], sizes = [2, 128], strides = [1, 1]} : vector<2x512xf32> to vector<2x128xf32>
    %cst_128 = arith.constant 5.000000e-01 : f32
    %334 = vector.broadcast %cst_128 : f32 to vector<2x128xf32>
    %335 = arith.mulf %334, %333 : vector<2x128xf32>
    %336 = math.tanh %335 : vector<2x128xf32>
    %cst_129 = arith.constant 5.000000e-01 : f32
    %337 = vector.broadcast %cst_129 : f32 to vector<2x128xf32>
    %338 = arith.mulf %337, %336 : vector<2x128xf32>
    %cst_130 = arith.constant 5.000000e-01 : f32
    %339 = vector.broadcast %cst_130 : f32 to vector<2x128xf32>
    %340 = arith.addf %338, %339 : vector<2x128xf32>
    %341 = vector.extract_strided_slice %332 {offsets = [0, 128], sizes = [2, 128], strides = [1, 1]} : vector<2x512xf32> to vector<2x128xf32>
    %cst_131 = arith.constant 5.000000e-01 : f32
    %342 = vector.broadcast %cst_131 : f32 to vector<2x128xf32>
    %343 = arith.mulf %342, %341 : vector<2x128xf32>
    %344 = math.tanh %343 : vector<2x128xf32>
    %cst_132 = arith.constant 5.000000e-01 : f32
    %345 = vector.broadcast %cst_132 : f32 to vector<2x128xf32>
    %346 = arith.mulf %345, %344 : vector<2x128xf32>
    %cst_133 = arith.constant 5.000000e-01 : f32
    %347 = vector.broadcast %cst_133 : f32 to vector<2x128xf32>
    %348 = arith.addf %346, %347 : vector<2x128xf32>
    %349 = vector.extract_strided_slice %332 {offsets = [0, 256], sizes = [2, 128], strides = [1, 1]} : vector<2x512xf32> to vector<2x128xf32>
    %350 = math.tanh %349 : vector<2x128xf32>
    %351 = vector.extract_strided_slice %332 {offsets = [0, 384], sizes = [2, 128], strides = [1, 1]} : vector<2x512xf32> to vector<2x128xf32>
    %cst_134 = arith.constant 5.000000e-01 : f32
    %352 = vector.broadcast %cst_134 : f32 to vector<2x128xf32>
    %353 = arith.mulf %352, %351 : vector<2x128xf32>
    %354 = math.tanh %353 : vector<2x128xf32>
    %cst_135 = arith.constant 5.000000e-01 : f32
    %355 = vector.broadcast %cst_135 : f32 to vector<2x128xf32>
    %356 = arith.mulf %355, %354 : vector<2x128xf32>
    %cst_136 = arith.constant 5.000000e-01 : f32
    %357 = vector.broadcast %cst_136 : f32 to vector<2x128xf32>
    %358 = arith.addf %356, %357 : vector<2x128xf32>
    %359 = arith.mulf %348, %256 : vector<2x128xf32>
    %360 = arith.mulf %340, %350 : vector<2x128xf32>
    %361 = arith.addf %359, %360 : vector<2x128xf32>
    %362 = math.tanh %361 : vector<2x128xf32>
    %363 = arith.mulf %358, %362 : vector<2x128xf32>
    %364 = tpu.concatenate %363, %293 in 1 : vector<2x128xf32>, vector<2x128xf32> -> vector<2x256xf32>
    %c0_137 = arith.constant 0 : index
    %c0_138 = arith.constant 0 : index
    %365 = vector.load %arg4[%c0_137, %c0_138] : memref<256x512xf32, #tpu.memory_space<vmem>>, vector<256x512xf32>
    %cst_139 = arith.constant dense<0.000000e+00> : vector<2x512xf32>
    %366 = tpu.matmul %364, %365, %cst_139 {dimension_numbers = #tpu.dot_dimension_numbers<[1], [0], [0], [1], [0, 0, 1, 1], [], []>} : vector<2x256xf32>, vector<256x512xf32>, vector<2x512xf32> -> vector<2x512xf32>
    %367 = arith.addf %366, %9 : vector<2x512xf32>
    %368 = vector.extract_strided_slice %367 {offsets = [0, 0], sizes = [2, 128], strides = [1, 1]} : vector<2x512xf32> to vector<2x128xf32>
    %cst_140 = arith.constant 5.000000e-01 : f32
    %369 = vector.broadcast %cst_140 : f32 to vector<2x128xf32>
    %370 = arith.mulf %369, %368 : vector<2x128xf32>
    %371 = math.tanh %370 : vector<2x128xf32>
    %cst_141 = arith.constant 5.000000e-01 : f32
    %372 = vector.broadcast %cst_141 : f32 to vector<2x128xf32>
    %373 = arith.mulf %372, %371 : vector<2x128xf32>
    %cst_142 = arith.constant 5.000000e-01 : f32
    %374 = vector.broadcast %cst_142 : f32 to vector<2x128xf32>
    %375 = arith.addf %373, %374 : vector<2x128xf32>
    %376 = vector.extract_strided_slice %367 {offsets = [0, 128], sizes = [2, 128], strides = [1, 1]} : vector<2x512xf32> to vector<2x128xf32>
    %cst_143 = arith.constant 5.000000e-01 : f32
    %377 = vector.broadcast %cst_143 : f32 to vector<2x128xf32>
    %378 = arith.mulf %377, %376 : vector<2x128xf32>
    %379 = math.tanh %378 : vector<2x128xf32>
    %cst_144 = arith.constant 5.000000e-01 : f32
    %380 = vector.broadcast %cst_144 : f32 to vector<2x128xf32>
    %381 = arith.mulf %380, %379 : vector<2x128xf32>
    %cst_145 = arith.constant 5.000000e-01 : f32
    %382 = vector.broadcast %cst_145 : f32 to vector<2x128xf32>
    %383 = arith.addf %381, %382 : vector<2x128xf32>
    %384 = vector.extract_strided_slice %367 {offsets = [0, 256], sizes = [2, 128], strides = [1, 1]} : vector<2x512xf32> to vector<2x128xf32>
    %385 = math.tanh %384 : vector<2x128xf32>
    %386 = vector.extract_strided_slice %367 {offsets = [0, 384], sizes = [2, 128], strides = [1, 1]} : vector<2x512xf32> to vector<2x128xf32>
    %cst_146 = arith.constant 5.000000e-01 : f32
    %387 = vector.broadcast %cst_146 : f32 to vector<2x128xf32>
    %388 = arith.mulf %387, %386 : vector<2x128xf32>
    %389 = math.tanh %388 : vector<2x128xf32>
    %cst_147 = arith.constant 5.000000e-01 : f32
    %390 = vector.broadcast %cst_147 : f32 to vector<2x128xf32>
    %391 = arith.mulf %390, %389 : vector<2x128xf32>
    %cst_148 = arith.constant 5.000000e-01 : f32
    %392 = vector.broadcast %cst_148 : f32 to vector<2x128xf32>
    %393 = arith.addf %391, %392 : vector<2x128xf32>
    %394 = arith.mulf %383, %291 : vector<2x128xf32>
    %395 = arith.mulf %375, %385 : vector<2x128xf32>
    %396 = arith.addf %394, %395 : vector<2x128xf32>
    %397 = math.tanh %396 : vector<2x128xf32>
    %398 = arith.mulf %393, %397 : vector<2x128xf32>
    %399 = tpu.concatenate %398, %328 in 1 : vector<2x128xf32>, vector<2x128xf32> -> vector<2x256xf32>
    %c0_149 = arith.constant 0 : index
    %c0_150 = arith.constant 0 : index
    %400 = vector.load %arg6[%c0_149, %c0_150] : memref<256x512xf32, #tpu.memory_space<vmem>>, vector<256x512xf32>
    %cst_151 = arith.constant dense<0.000000e+00> : vector<2x512xf32>
    %401 = tpu.matmul %399, %400, %cst_151 {dimension_numbers = #tpu.dot_dimension_numbers<[1], [0], [0], [1], [0, 0, 1, 1], [], []>} : vector<2x256xf32>, vector<256x512xf32>, vector<2x512xf32> -> vector<2x512xf32>
    %402 = arith.addf %401, %12 : vector<2x512xf32>
    %403 = vector.extract_strided_slice %402 {offsets = [0, 0], sizes = [2, 128], strides = [1, 1]} : vector<2x512xf32> to vector<2x128xf32>
    %cst_152 = arith.constant 5.000000e-01 : f32
    %404 = vector.broadcast %cst_152 : f32 to vector<2x128xf32>
    %405 = arith.mulf %404, %403 : vector<2x128xf32>
    %406 = math.tanh %405 : vector<2x128xf32>
    %cst_153 = arith.constant 5.000000e-01 : f32
    %407 = vector.broadcast %cst_153 : f32 to vector<2x128xf32>
    %408 = arith.mulf %407, %406 : vector<2x128xf32>
    %cst_154 = arith.constant 5.000000e-01 : f32
    %409 = vector.broadcast %cst_154 : f32 to vector<2x128xf32>
    %410 = arith.addf %408, %409 : vector<2x128xf32>
    %411 = vector.extract_strided_slice %402 {offsets = [0, 128], sizes = [2, 128], strides = [1, 1]} : vector<2x512xf32> to vector<2x128xf32>
    %cst_155 = arith.constant 5.000000e-01 : f32
    %412 = vector.broadcast %cst_155 : f32 to vector<2x128xf32>
    %413 = arith.mulf %412, %411 : vector<2x128xf32>
    %414 = math.tanh %413 : vector<2x128xf32>
    %cst_156 = arith.constant 5.000000e-01 : f32
    %415 = vector.broadcast %cst_156 : f32 to vector<2x128xf32>
    %416 = arith.mulf %415, %414 : vector<2x128xf32>
    %cst_157 = arith.constant 5.000000e-01 : f32
    %417 = vector.broadcast %cst_157 : f32 to vector<2x128xf32>
    %418 = arith.addf %416, %417 : vector<2x128xf32>
    %419 = vector.extract_strided_slice %402 {offsets = [0, 256], sizes = [2, 128], strides = [1, 1]} : vector<2x512xf32> to vector<2x128xf32>
    %420 = math.tanh %419 : vector<2x128xf32>
    %421 = vector.extract_strided_slice %402 {offsets = [0, 384], sizes = [2, 128], strides = [1, 1]} : vector<2x512xf32> to vector<2x128xf32>
    %cst_158 = arith.constant 5.000000e-01 : f32
    %422 = vector.broadcast %cst_158 : f32 to vector<2x128xf32>
    %423 = arith.mulf %422, %421 : vector<2x128xf32>
    %424 = math.tanh %423 : vector<2x128xf32>
    %cst_159 = arith.constant 5.000000e-01 : f32
    %425 = vector.broadcast %cst_159 : f32 to vector<2x128xf32>
    %426 = arith.mulf %425, %424 : vector<2x128xf32>
    %cst_160 = arith.constant 5.000000e-01 : f32
    %427 = vector.broadcast %cst_160 : f32 to vector<2x128xf32>
    %428 = arith.addf %426, %427 : vector<2x128xf32>
    %429 = arith.mulf %418, %326 : vector<2x128xf32>
    %430 = arith.mulf %410, %420 : vector<2x128xf32>
    %431 = arith.addf %429, %430 : vector<2x128xf32>
    %432 = math.tanh %431 : vector<2x128xf32>
    %433 = arith.mulf %428, %432 : vector<2x128xf32>
    %c8 = arith.constant 8 : index
    %c0_161 = arith.constant 0 : index
    %434 = vector.load %arg11[%c8, %c0_161] : memref<16x512xf32, #tpu.memory_space<vmem>>, vector<2x512xf32>
    %c0_162 = arith.constant 0 : index
    %c0_163 = arith.constant 0 : index
    %435 = vector.load %arg3[%c0_162, %c0_163] : memref<128x512xf32, #tpu.memory_space<vmem>>, vector<128x512xf32>
    %cst_164 = arith.constant dense<0.000000e+00> : vector<2x512xf32>
    %436 = tpu.matmul %363, %435, %cst_164 {dimension_numbers = #tpu.dot_dimension_numbers<[1], [0], [0], [1], [0, 0, 1, 1], [], []>} : vector<2x128xf32>, vector<128x512xf32>, vector<2x512xf32> -> vector<2x512xf32>
    %437 = arith.addf %434, %436 : vector<2x512xf32>
    %438 = vector.extract_strided_slice %437 {offsets = [0, 0], sizes = [2, 128], strides = [1, 1]} : vector<2x512xf32> to vector<2x128xf32>
    %cst_165 = arith.constant 5.000000e-01 : f32
    %439 = vector.broadcast %cst_165 : f32 to vector<2x128xf32>
    %440 = arith.mulf %439, %438 : vector<2x128xf32>
    %441 = math.tanh %440 : vector<2x128xf32>
    %cst_166 = arith.constant 5.000000e-01 : f32
    %442 = vector.broadcast %cst_166 : f32 to vector<2x128xf32>
    %443 = arith.mulf %442, %441 : vector<2x128xf32>
    %cst_167 = arith.constant 5.000000e-01 : f32
    %444 = vector.broadcast %cst_167 : f32 to vector<2x128xf32>
    %445 = arith.addf %443, %444 : vector<2x128xf32>
    %446 = vector.extract_strided_slice %437 {offsets = [0, 128], sizes = [2, 128], strides = [1, 1]} : vector<2x512xf32> to vector<2x128xf32>
    %cst_168 = arith.constant 5.000000e-01 : f32
    %447 = vector.broadcast %cst_168 : f32 to vector<2x128xf32>
    %448 = arith.mulf %447, %446 : vector<2x128xf32>
    %449 = math.tanh %448 : vector<2x128xf32>
    %cst_169 = arith.constant 5.000000e-01 : f32
    %450 = vector.broadcast %cst_169 : f32 to vector<2x128xf32>
    %451 = arith.mulf %450, %449 : vector<2x128xf32>
    %cst_170 = arith.constant 5.000000e-01 : f32
    %452 = vector.broadcast %cst_170 : f32 to vector<2x128xf32>
    %453 = arith.addf %451, %452 : vector<2x128xf32>
    %454 = vector.extract_strided_slice %437 {offsets = [0, 256], sizes = [2, 128], strides = [1, 1]} : vector<2x512xf32> to vector<2x128xf32>
    %455 = math.tanh %454 : vector<2x128xf32>
    %456 = vector.extract_strided_slice %437 {offsets = [0, 384], sizes = [2, 128], strides = [1, 1]} : vector<2x512xf32> to vector<2x128xf32>
    %cst_171 = arith.constant 5.000000e-01 : f32
    %457 = vector.broadcast %cst_171 : f32 to vector<2x128xf32>
    %458 = arith.mulf %457, %456 : vector<2x128xf32>
    %459 = math.tanh %458 : vector<2x128xf32>
    %cst_172 = arith.constant 5.000000e-01 : f32
    %460 = vector.broadcast %cst_172 : f32 to vector<2x128xf32>
    %461 = arith.mulf %460, %459 : vector<2x128xf32>
    %cst_173 = arith.constant 5.000000e-01 : f32
    %462 = vector.broadcast %cst_173 : f32 to vector<2x128xf32>
    %463 = arith.addf %461, %462 : vector<2x128xf32>
    %464 = arith.mulf %453, %361 : vector<2x128xf32>
    %465 = arith.mulf %445, %455 : vector<2x128xf32>
    %466 = arith.addf %464, %465 : vector<2x128xf32>
    %467 = math.tanh %466 : vector<2x128xf32>
    %468 = arith.mulf %463, %467 : vector<2x128xf32>
    %469 = tpu.concatenate %468, %398 in 1 : vector<2x128xf32>, vector<2x128xf32> -> vector<2x256xf32>
    %c0_174 = arith.constant 0 : index
    %c0_175 = arith.constant 0 : index
    %470 = vector.load %arg4[%c0_174, %c0_175] : memref<256x512xf32, #tpu.memory_space<vmem>>, vector<256x512xf32>
    %cst_176 = arith.constant dense<0.000000e+00> : vector<2x512xf32>
    %471 = tpu.matmul %469, %470, %cst_176 {dimension_numbers = #tpu.dot_dimension_numbers<[1], [0], [0], [1], [0, 0, 1, 1], [], []>} : vector<2x256xf32>, vector<256x512xf32>, vector<2x512xf32> -> vector<2x512xf32>
    %472 = arith.addf %471, %9 : vector<2x512xf32>
    %473 = vector.extract_strided_slice %472 {offsets = [0, 0], sizes = [2, 128], strides = [1, 1]} : vector<2x512xf32> to vector<2x128xf32>
    %cst_177 = arith.constant 5.000000e-01 : f32
    %474 = vector.broadcast %cst_177 : f32 to vector<2x128xf32>
    %475 = arith.mulf %474, %473 : vector<2x128xf32>
    %476 = math.tanh %475 : vector<2x128xf32>
    %cst_178 = arith.constant 5.000000e-01 : f32
    %477 = vector.broadcast %cst_178 : f32 to vector<2x128xf32>
    %478 = arith.mulf %477, %476 : vector<2x128xf32>
    %cst_179 = arith.constant 5.000000e-01 : f32
    %479 = vector.broadcast %cst_179 : f32 to vector<2x128xf32>
    %480 = arith.addf %478, %479 : vector<2x128xf32>
    %481 = vector.extract_strided_slice %472 {offsets = [0, 128], sizes = [2, 128], strides = [1, 1]} : vector<2x512xf32> to vector<2x128xf32>
    %cst_180 = arith.constant 5.000000e-01 : f32
    %482 = vector.broadcast %cst_180 : f32 to vector<2x128xf32>
    %483 = arith.mulf %482, %481 : vector<2x128xf32>
    %484 = math.tanh %483 : vector<2x128xf32>
    %cst_181 = arith.constant 5.000000e-01 : f32
    %485 = vector.broadcast %cst_181 : f32 to vector<2x128xf32>
    %486 = arith.mulf %485, %484 : vector<2x128xf32>
    %cst_182 = arith.constant 5.000000e-01 : f32
    %487 = vector.broadcast %cst_182 : f32 to vector<2x128xf32>
    %488 = arith.addf %486, %487 : vector<2x128xf32>
    %489 = vector.extract_strided_slice %472 {offsets = [0, 256], sizes = [2, 128], strides = [1, 1]} : vector<2x512xf32> to vector<2x128xf32>
    %490 = math.tanh %489 : vector<2x128xf32>
    %491 = vector.extract_strided_slice %472 {offsets = [0, 384], sizes = [2, 128], strides = [1, 1]} : vector<2x512xf32> to vector<2x128xf32>
    %cst_183 = arith.constant 5.000000e-01 : f32
    %492 = vector.broadcast %cst_183 : f32 to vector<2x128xf32>
    %493 = arith.mulf %492, %491 : vector<2x128xf32>
    %494 = math.tanh %493 : vector<2x128xf32>
    %cst_184 = arith.constant 5.000000e-01 : f32
    %495 = vector.broadcast %cst_184 : f32 to vector<2x128xf32>
    %496 = arith.mulf %495, %494 : vector<2x128xf32>
    %cst_185 = arith.constant 5.000000e-01 : f32
    %497 = vector.broadcast %cst_185 : f32 to vector<2x128xf32>
    %498 = arith.addf %496, %497 : vector<2x128xf32>
    %499 = arith.mulf %488, %396 : vector<2x128xf32>
    %500 = arith.mulf %480, %490 : vector<2x128xf32>
    %501 = arith.addf %499, %500 : vector<2x128xf32>
    %502 = math.tanh %501 : vector<2x128xf32>
    %503 = arith.mulf %498, %502 : vector<2x128xf32>
    %504 = tpu.concatenate %503, %433 in 1 : vector<2x128xf32>, vector<2x128xf32> -> vector<2x256xf32>
    %c0_186 = arith.constant 0 : index
    %c0_187 = arith.constant 0 : index
    %505 = vector.load %arg6[%c0_186, %c0_187] : memref<256x512xf32, #tpu.memory_space<vmem>>, vector<256x512xf32>
    %cst_188 = arith.constant dense<0.000000e+00> : vector<2x512xf32>
    %506 = tpu.matmul %504, %505, %cst_188 {dimension_numbers = #tpu.dot_dimension_numbers<[1], [0], [0], [1], [0, 0, 1, 1], [], []>} : vector<2x256xf32>, vector<256x512xf32>, vector<2x512xf32> -> vector<2x512xf32>
    %507 = arith.addf %506, %12 : vector<2x512xf32>
    %508 = vector.extract_strided_slice %507 {offsets = [0, 0], sizes = [2, 128], strides = [1, 1]} : vector<2x512xf32> to vector<2x128xf32>
    %cst_189 = arith.constant 5.000000e-01 : f32
    %509 = vector.broadcast %cst_189 : f32 to vector<2x128xf32>
    %510 = arith.mulf %509, %508 : vector<2x128xf32>
    %511 = math.tanh %510 : vector<2x128xf32>
    %cst_190 = arith.constant 5.000000e-01 : f32
    %512 = vector.broadcast %cst_190 : f32 to vector<2x128xf32>
    %513 = arith.mulf %512, %511 : vector<2x128xf32>
    %cst_191 = arith.constant 5.000000e-01 : f32
    %514 = vector.broadcast %cst_191 : f32 to vector<2x128xf32>
    %515 = arith.addf %513, %514 : vector<2x128xf32>
    %516 = vector.extract_strided_slice %507 {offsets = [0, 128], sizes = [2, 128], strides = [1, 1]} : vector<2x512xf32> to vector<2x128xf32>
    %cst_192 = arith.constant 5.000000e-01 : f32
    %517 = vector.broadcast %cst_192 : f32 to vector<2x128xf32>
    %518 = arith.mulf %517, %516 : vector<2x128xf32>
    %519 = math.tanh %518 : vector<2x128xf32>
    %cst_193 = arith.constant 5.000000e-01 : f32
    %520 = vector.broadcast %cst_193 : f32 to vector<2x128xf32>
    %521 = arith.mulf %520, %519 : vector<2x128xf32>
    %cst_194 = arith.constant 5.000000e-01 : f32
    %522 = vector.broadcast %cst_194 : f32 to vector<2x128xf32>
    %523 = arith.addf %521, %522 : vector<2x128xf32>
    %524 = vector.extract_strided_slice %507 {offsets = [0, 256], sizes = [2, 128], strides = [1, 1]} : vector<2x512xf32> to vector<2x128xf32>
    %525 = math.tanh %524 : vector<2x128xf32>
    %526 = vector.extract_strided_slice %507 {offsets = [0, 384], sizes = [2, 128], strides = [1, 1]} : vector<2x512xf32> to vector<2x128xf32>
    %cst_195 = arith.constant 5.000000e-01 : f32
    %527 = vector.broadcast %cst_195 : f32 to vector<2x128xf32>
    %528 = arith.mulf %527, %526 : vector<2x128xf32>
    %529 = math.tanh %528 : vector<2x128xf32>
    %cst_196 = arith.constant 5.000000e-01 : f32
    %530 = vector.broadcast %cst_196 : f32 to vector<2x128xf32>
    %531 = arith.mulf %530, %529 : vector<2x128xf32>
    %cst_197 = arith.constant 5.000000e-01 : f32
    %532 = vector.broadcast %cst_197 : f32 to vector<2x128xf32>
    %533 = arith.addf %531, %532 : vector<2x128xf32>
    %534 = arith.mulf %523, %431 : vector<2x128xf32>
    %535 = arith.mulf %515, %525 : vector<2x128xf32>
    %536 = arith.addf %534, %535 : vector<2x128xf32>
    %537 = math.tanh %536 : vector<2x128xf32>
    %538 = arith.mulf %533, %537 : vector<2x128xf32>
    %c10 = arith.constant 10 : index
    %c0_198 = arith.constant 0 : index
    %539 = vector.load %arg11[%c10, %c0_198] : memref<16x512xf32, #tpu.memory_space<vmem>>, vector<2x512xf32>
    %c0_199 = arith.constant 0 : index
    %c0_200 = arith.constant 0 : index
    %540 = vector.load %arg3[%c0_199, %c0_200] : memref<128x512xf32, #tpu.memory_space<vmem>>, vector<128x512xf32>
    %cst_201 = arith.constant dense<0.000000e+00> : vector<2x512xf32>
    %541 = tpu.matmul %468, %540, %cst_201 {dimension_numbers = #tpu.dot_dimension_numbers<[1], [0], [0], [1], [0, 0, 1, 1], [], []>} : vector<2x128xf32>, vector<128x512xf32>, vector<2x512xf32> -> vector<2x512xf32>
    %542 = arith.addf %539, %541 : vector<2x512xf32>
    %543 = vector.extract_strided_slice %542 {offsets = [0, 0], sizes = [2, 128], strides = [1, 1]} : vector<2x512xf32> to vector<2x128xf32>
    %cst_202 = arith.constant 5.000000e-01 : f32
    %544 = vector.broadcast %cst_202 : f32 to vector<2x128xf32>
    %545 = arith.mulf %544, %543 : vector<2x128xf32>
    %546 = math.tanh %545 : vector<2x128xf32>
    %cst_203 = arith.constant 5.000000e-01 : f32
    %547 = vector.broadcast %cst_203 : f32 to vector<2x128xf32>
    %548 = arith.mulf %547, %546 : vector<2x128xf32>
    %cst_204 = arith.constant 5.000000e-01 : f32
    %549 = vector.broadcast %cst_204 : f32 to vector<2x128xf32>
    %550 = arith.addf %548, %549 : vector<2x128xf32>
    %551 = vector.extract_strided_slice %542 {offsets = [0, 128], sizes = [2, 128], strides = [1, 1]} : vector<2x512xf32> to vector<2x128xf32>
    %cst_205 = arith.constant 5.000000e-01 : f32
    %552 = vector.broadcast %cst_205 : f32 to vector<2x128xf32>
    %553 = arith.mulf %552, %551 : vector<2x128xf32>
    %554 = math.tanh %553 : vector<2x128xf32>
    %cst_206 = arith.constant 5.000000e-01 : f32
    %555 = vector.broadcast %cst_206 : f32 to vector<2x128xf32>
    %556 = arith.mulf %555, %554 : vector<2x128xf32>
    %cst_207 = arith.constant 5.000000e-01 : f32
    %557 = vector.broadcast %cst_207 : f32 to vector<2x128xf32>
    %558 = arith.addf %556, %557 : vector<2x128xf32>
    %559 = vector.extract_strided_slice %542 {offsets = [0, 256], sizes = [2, 128], strides = [1, 1]} : vector<2x512xf32> to vector<2x128xf32>
    %560 = math.tanh %559 : vector<2x128xf32>
    %561 = vector.extract_strided_slice %542 {offsets = [0, 384], sizes = [2, 128], strides = [1, 1]} : vector<2x512xf32> to vector<2x128xf32>
    %cst_208 = arith.constant 5.000000e-01 : f32
    %562 = vector.broadcast %cst_208 : f32 to vector<2x128xf32>
    %563 = arith.mulf %562, %561 : vector<2x128xf32>
    %564 = math.tanh %563 : vector<2x128xf32>
    %cst_209 = arith.constant 5.000000e-01 : f32
    %565 = vector.broadcast %cst_209 : f32 to vector<2x128xf32>
    %566 = arith.mulf %565, %564 : vector<2x128xf32>
    %cst_210 = arith.constant 5.000000e-01 : f32
    %567 = vector.broadcast %cst_210 : f32 to vector<2x128xf32>
    %568 = arith.addf %566, %567 : vector<2x128xf32>
    %569 = arith.mulf %558, %466 : vector<2x128xf32>
    %570 = arith.mulf %550, %560 : vector<2x128xf32>
    %571 = arith.addf %569, %570 : vector<2x128xf32>
    %572 = math.tanh %571 : vector<2x128xf32>
    %573 = arith.mulf %568, %572 : vector<2x128xf32>
    %574 = tpu.concatenate %573, %503 in 1 : vector<2x128xf32>, vector<2x128xf32> -> vector<2x256xf32>
    %c0_211 = arith.constant 0 : index
    %c0_212 = arith.constant 0 : index
    %575 = vector.load %arg4[%c0_211, %c0_212] : memref<256x512xf32, #tpu.memory_space<vmem>>, vector<256x512xf32>
    %cst_213 = arith.constant dense<0.000000e+00> : vector<2x512xf32>
    %576 = tpu.matmul %574, %575, %cst_213 {dimension_numbers = #tpu.dot_dimension_numbers<[1], [0], [0], [1], [0, 0, 1, 1], [], []>} : vector<2x256xf32>, vector<256x512xf32>, vector<2x512xf32> -> vector<2x512xf32>
    %577 = arith.addf %576, %9 : vector<2x512xf32>
    %578 = vector.extract_strided_slice %577 {offsets = [0, 0], sizes = [2, 128], strides = [1, 1]} : vector<2x512xf32> to vector<2x128xf32>
    %cst_214 = arith.constant 5.000000e-01 : f32
    %579 = vector.broadcast %cst_214 : f32 to vector<2x128xf32>
    %580 = arith.mulf %579, %578 : vector<2x128xf32>
    %581 = math.tanh %580 : vector<2x128xf32>
    %cst_215 = arith.constant 5.000000e-01 : f32
    %582 = vector.broadcast %cst_215 : f32 to vector<2x128xf32>
    %583 = arith.mulf %582, %581 : vector<2x128xf32>
    %cst_216 = arith.constant 5.000000e-01 : f32
    %584 = vector.broadcast %cst_216 : f32 to vector<2x128xf32>
    %585 = arith.addf %583, %584 : vector<2x128xf32>
    %586 = vector.extract_strided_slice %577 {offsets = [0, 128], sizes = [2, 128], strides = [1, 1]} : vector<2x512xf32> to vector<2x128xf32>
    %cst_217 = arith.constant 5.000000e-01 : f32
    %587 = vector.broadcast %cst_217 : f32 to vector<2x128xf32>
    %588 = arith.mulf %587, %586 : vector<2x128xf32>
    %589 = math.tanh %588 : vector<2x128xf32>
    %cst_218 = arith.constant 5.000000e-01 : f32
    %590 = vector.broadcast %cst_218 : f32 to vector<2x128xf32>
    %591 = arith.mulf %590, %589 : vector<2x128xf32>
    %cst_219 = arith.constant 5.000000e-01 : f32
    %592 = vector.broadcast %cst_219 : f32 to vector<2x128xf32>
    %593 = arith.addf %591, %592 : vector<2x128xf32>
    %594 = vector.extract_strided_slice %577 {offsets = [0, 256], sizes = [2, 128], strides = [1, 1]} : vector<2x512xf32> to vector<2x128xf32>
    %595 = math.tanh %594 : vector<2x128xf32>
    %596 = vector.extract_strided_slice %577 {offsets = [0, 384], sizes = [2, 128], strides = [1, 1]} : vector<2x512xf32> to vector<2x128xf32>
    %cst_220 = arith.constant 5.000000e-01 : f32
    %597 = vector.broadcast %cst_220 : f32 to vector<2x128xf32>
    %598 = arith.mulf %597, %596 : vector<2x128xf32>
    %599 = math.tanh %598 : vector<2x128xf32>
    %cst_221 = arith.constant 5.000000e-01 : f32
    %600 = vector.broadcast %cst_221 : f32 to vector<2x128xf32>
    %601 = arith.mulf %600, %599 : vector<2x128xf32>
    %cst_222 = arith.constant 5.000000e-01 : f32
    %602 = vector.broadcast %cst_222 : f32 to vector<2x128xf32>
    %603 = arith.addf %601, %602 : vector<2x128xf32>
    %604 = arith.mulf %593, %501 : vector<2x128xf32>
    %605 = arith.mulf %585, %595 : vector<2x128xf32>
    %606 = arith.addf %604, %605 : vector<2x128xf32>
    %607 = math.tanh %606 : vector<2x128xf32>
    %608 = arith.mulf %603, %607 : vector<2x128xf32>
    %609 = tpu.concatenate %608, %538 in 1 : vector<2x128xf32>, vector<2x128xf32> -> vector<2x256xf32>
    %c0_223 = arith.constant 0 : index
    %c0_224 = arith.constant 0 : index
    %610 = vector.load %arg6[%c0_223, %c0_224] : memref<256x512xf32, #tpu.memory_space<vmem>>, vector<256x512xf32>
    %cst_225 = arith.constant dense<0.000000e+00> : vector<2x512xf32>
    %611 = tpu.matmul %609, %610, %cst_225 {dimension_numbers = #tpu.dot_dimension_numbers<[1], [0], [0], [1], [0, 0, 1, 1], [], []>} : vector<2x256xf32>, vector<256x512xf32>, vector<2x512xf32> -> vector<2x512xf32>
    %612 = arith.addf %611, %12 : vector<2x512xf32>
    %613 = vector.extract_strided_slice %612 {offsets = [0, 0], sizes = [2, 128], strides = [1, 1]} : vector<2x512xf32> to vector<2x128xf32>
    %cst_226 = arith.constant 5.000000e-01 : f32
    %614 = vector.broadcast %cst_226 : f32 to vector<2x128xf32>
    %615 = arith.mulf %614, %613 : vector<2x128xf32>
    %616 = math.tanh %615 : vector<2x128xf32>
    %cst_227 = arith.constant 5.000000e-01 : f32
    %617 = vector.broadcast %cst_227 : f32 to vector<2x128xf32>
    %618 = arith.mulf %617, %616 : vector<2x128xf32>
    %cst_228 = arith.constant 5.000000e-01 : f32
    %619 = vector.broadcast %cst_228 : f32 to vector<2x128xf32>
    %620 = arith.addf %618, %619 : vector<2x128xf32>
    %621 = vector.extract_strided_slice %612 {offsets = [0, 128], sizes = [2, 128], strides = [1, 1]} : vector<2x512xf32> to vector<2x128xf32>
    %cst_229 = arith.constant 5.000000e-01 : f32
    %622 = vector.broadcast %cst_229 : f32 to vector<2x128xf32>
    %623 = arith.mulf %622, %621 : vector<2x128xf32>
    %624 = math.tanh %623 : vector<2x128xf32>
    %cst_230 = arith.constant 5.000000e-01 : f32
    %625 = vector.broadcast %cst_230 : f32 to vector<2x128xf32>
    %626 = arith.mulf %625, %624 : vector<2x128xf32>
    %cst_231 = arith.constant 5.000000e-01 : f32
    %627 = vector.broadcast %cst_231 : f32 to vector<2x128xf32>
    %628 = arith.addf %626, %627 : vector<2x128xf32>
    %629 = vector.extract_strided_slice %612 {offsets = [0, 256], sizes = [2, 128], strides = [1, 1]} : vector<2x512xf32> to vector<2x128xf32>
    %630 = math.tanh %629 : vector<2x128xf32>
    %631 = vector.extract_strided_slice %612 {offsets = [0, 384], sizes = [2, 128], strides = [1, 1]} : vector<2x512xf32> to vector<2x128xf32>
    %cst_232 = arith.constant 5.000000e-01 : f32
    %632 = vector.broadcast %cst_232 : f32 to vector<2x128xf32>
    %633 = arith.mulf %632, %631 : vector<2x128xf32>
    %634 = math.tanh %633 : vector<2x128xf32>
    %cst_233 = arith.constant 5.000000e-01 : f32
    %635 = vector.broadcast %cst_233 : f32 to vector<2x128xf32>
    %636 = arith.mulf %635, %634 : vector<2x128xf32>
    %cst_234 = arith.constant 5.000000e-01 : f32
    %637 = vector.broadcast %cst_234 : f32 to vector<2x128xf32>
    %638 = arith.addf %636, %637 : vector<2x128xf32>
    %639 = arith.mulf %628, %536 : vector<2x128xf32>
    %640 = arith.mulf %620, %630 : vector<2x128xf32>
    %641 = arith.addf %639, %640 : vector<2x128xf32>
    %642 = math.tanh %641 : vector<2x128xf32>
    %643 = arith.mulf %638, %642 : vector<2x128xf32>
    %c12 = arith.constant 12 : index
    %c0_235 = arith.constant 0 : index
    %644 = vector.load %arg11[%c12, %c0_235] : memref<16x512xf32, #tpu.memory_space<vmem>>, vector<2x512xf32>
    %c0_236 = arith.constant 0 : index
    %c0_237 = arith.constant 0 : index
    %645 = vector.load %arg3[%c0_236, %c0_237] : memref<128x512xf32, #tpu.memory_space<vmem>>, vector<128x512xf32>
    %cst_238 = arith.constant dense<0.000000e+00> : vector<2x512xf32>
    %646 = tpu.matmul %573, %645, %cst_238 {dimension_numbers = #tpu.dot_dimension_numbers<[1], [0], [0], [1], [0, 0, 1, 1], [], []>} : vector<2x128xf32>, vector<128x512xf32>, vector<2x512xf32> -> vector<2x512xf32>
    %647 = arith.addf %644, %646 : vector<2x512xf32>
    %648 = vector.extract_strided_slice %647 {offsets = [0, 0], sizes = [2, 128], strides = [1, 1]} : vector<2x512xf32> to vector<2x128xf32>
    %cst_239 = arith.constant 5.000000e-01 : f32
    %649 = vector.broadcast %cst_239 : f32 to vector<2x128xf32>
    %650 = arith.mulf %649, %648 : vector<2x128xf32>
    %651 = math.tanh %650 : vector<2x128xf32>
    %cst_240 = arith.constant 5.000000e-01 : f32
    %652 = vector.broadcast %cst_240 : f32 to vector<2x128xf32>
    %653 = arith.mulf %652, %651 : vector<2x128xf32>
    %cst_241 = arith.constant 5.000000e-01 : f32
    %654 = vector.broadcast %cst_241 : f32 to vector<2x128xf32>
    %655 = arith.addf %653, %654 : vector<2x128xf32>
    %656 = vector.extract_strided_slice %647 {offsets = [0, 128], sizes = [2, 128], strides = [1, 1]} : vector<2x512xf32> to vector<2x128xf32>
    %cst_242 = arith.constant 5.000000e-01 : f32
    %657 = vector.broadcast %cst_242 : f32 to vector<2x128xf32>
    %658 = arith.mulf %657, %656 : vector<2x128xf32>
    %659 = math.tanh %658 : vector<2x128xf32>
    %cst_243 = arith.constant 5.000000e-01 : f32
    %660 = vector.broadcast %cst_243 : f32 to vector<2x128xf32>
    %661 = arith.mulf %660, %659 : vector<2x128xf32>
    %cst_244 = arith.constant 5.000000e-01 : f32
    %662 = vector.broadcast %cst_244 : f32 to vector<2x128xf32>
    %663 = arith.addf %661, %662 : vector<2x128xf32>
    %664 = vector.extract_strided_slice %647 {offsets = [0, 256], sizes = [2, 128], strides = [1, 1]} : vector<2x512xf32> to vector<2x128xf32>
    %665 = math.tanh %664 : vector<2x128xf32>
    %666 = vector.extract_strided_slice %647 {offsets = [0, 384], sizes = [2, 128], strides = [1, 1]} : vector<2x512xf32> to vector<2x128xf32>
    %cst_245 = arith.constant 5.000000e-01 : f32
    %667 = vector.broadcast %cst_245 : f32 to vector<2x128xf32>
    %668 = arith.mulf %667, %666 : vector<2x128xf32>
    %669 = math.tanh %668 : vector<2x128xf32>
    %cst_246 = arith.constant 5.000000e-01 : f32
    %670 = vector.broadcast %cst_246 : f32 to vector<2x128xf32>
    %671 = arith.mulf %670, %669 : vector<2x128xf32>
    %cst_247 = arith.constant 5.000000e-01 : f32
    %672 = vector.broadcast %cst_247 : f32 to vector<2x128xf32>
    %673 = arith.addf %671, %672 : vector<2x128xf32>
    %674 = arith.mulf %663, %571 : vector<2x128xf32>
    %675 = arith.mulf %655, %665 : vector<2x128xf32>
    %676 = arith.addf %674, %675 : vector<2x128xf32>
    %677 = math.tanh %676 : vector<2x128xf32>
    %678 = arith.mulf %673, %677 : vector<2x128xf32>
    %679 = tpu.concatenate %678, %608 in 1 : vector<2x128xf32>, vector<2x128xf32> -> vector<2x256xf32>
    %c0_248 = arith.constant 0 : index
    %c0_249 = arith.constant 0 : index
    %680 = vector.load %arg4[%c0_248, %c0_249] : memref<256x512xf32, #tpu.memory_space<vmem>>, vector<256x512xf32>
    %cst_250 = arith.constant dense<0.000000e+00> : vector<2x512xf32>
    %681 = tpu.matmul %679, %680, %cst_250 {dimension_numbers = #tpu.dot_dimension_numbers<[1], [0], [0], [1], [0, 0, 1, 1], [], []>} : vector<2x256xf32>, vector<256x512xf32>, vector<2x512xf32> -> vector<2x512xf32>
    %682 = arith.addf %681, %9 : vector<2x512xf32>
    %683 = vector.extract_strided_slice %682 {offsets = [0, 0], sizes = [2, 128], strides = [1, 1]} : vector<2x512xf32> to vector<2x128xf32>
    %cst_251 = arith.constant 5.000000e-01 : f32
    %684 = vector.broadcast %cst_251 : f32 to vector<2x128xf32>
    %685 = arith.mulf %684, %683 : vector<2x128xf32>
    %686 = math.tanh %685 : vector<2x128xf32>
    %cst_252 = arith.constant 5.000000e-01 : f32
    %687 = vector.broadcast %cst_252 : f32 to vector<2x128xf32>
    %688 = arith.mulf %687, %686 : vector<2x128xf32>
    %cst_253 = arith.constant 5.000000e-01 : f32
    %689 = vector.broadcast %cst_253 : f32 to vector<2x128xf32>
    %690 = arith.addf %688, %689 : vector<2x128xf32>
    %691 = vector.extract_strided_slice %682 {offsets = [0, 128], sizes = [2, 128], strides = [1, 1]} : vector<2x512xf32> to vector<2x128xf32>
    %cst_254 = arith.constant 5.000000e-01 : f32
    %692 = vector.broadcast %cst_254 : f32 to vector<2x128xf32>
    %693 = arith.mulf %692, %691 : vector<2x128xf32>
    %694 = math.tanh %693 : vector<2x128xf32>
    %cst_255 = arith.constant 5.000000e-01 : f32
    %695 = vector.broadcast %cst_255 : f32 to vector<2x128xf32>
    %696 = arith.mulf %695, %694 : vector<2x128xf32>
    %cst_256 = arith.constant 5.000000e-01 : f32
    %697 = vector.broadcast %cst_256 : f32 to vector<2x128xf32>
    %698 = arith.addf %696, %697 : vector<2x128xf32>
    %699 = vector.extract_strided_slice %682 {offsets = [0, 256], sizes = [2, 128], strides = [1, 1]} : vector<2x512xf32> to vector<2x128xf32>
    %700 = math.tanh %699 : vector<2x128xf32>
    %701 = vector.extract_strided_slice %682 {offsets = [0, 384], sizes = [2, 128], strides = [1, 1]} : vector<2x512xf32> to vector<2x128xf32>
    %cst_257 = arith.constant 5.000000e-01 : f32
    %702 = vector.broadcast %cst_257 : f32 to vector<2x128xf32>
    %703 = arith.mulf %702, %701 : vector<2x128xf32>
    %704 = math.tanh %703 : vector<2x128xf32>
    %cst_258 = arith.constant 5.000000e-01 : f32
    %705 = vector.broadcast %cst_258 : f32 to vector<2x128xf32>
    %706 = arith.mulf %705, %704 : vector<2x128xf32>
    %cst_259 = arith.constant 5.000000e-01 : f32
    %707 = vector.broadcast %cst_259 : f32 to vector<2x128xf32>
    %708 = arith.addf %706, %707 : vector<2x128xf32>
    %709 = arith.mulf %698, %606 : vector<2x128xf32>
    %710 = arith.mulf %690, %700 : vector<2x128xf32>
    %711 = arith.addf %709, %710 : vector<2x128xf32>
    %712 = math.tanh %711 : vector<2x128xf32>
    %713 = arith.mulf %708, %712 : vector<2x128xf32>
    %714 = tpu.concatenate %713, %643 in 1 : vector<2x128xf32>, vector<2x128xf32> -> vector<2x256xf32>
    %c0_260 = arith.constant 0 : index
    %c0_261 = arith.constant 0 : index
    %715 = vector.load %arg6[%c0_260, %c0_261] : memref<256x512xf32, #tpu.memory_space<vmem>>, vector<256x512xf32>
    %cst_262 = arith.constant dense<0.000000e+00> : vector<2x512xf32>
    %716 = tpu.matmul %714, %715, %cst_262 {dimension_numbers = #tpu.dot_dimension_numbers<[1], [0], [0], [1], [0, 0, 1, 1], [], []>} : vector<2x256xf32>, vector<256x512xf32>, vector<2x512xf32> -> vector<2x512xf32>
    %717 = arith.addf %716, %12 : vector<2x512xf32>
    %718 = vector.extract_strided_slice %717 {offsets = [0, 0], sizes = [2, 128], strides = [1, 1]} : vector<2x512xf32> to vector<2x128xf32>
    %cst_263 = arith.constant 5.000000e-01 : f32
    %719 = vector.broadcast %cst_263 : f32 to vector<2x128xf32>
    %720 = arith.mulf %719, %718 : vector<2x128xf32>
    %721 = math.tanh %720 : vector<2x128xf32>
    %cst_264 = arith.constant 5.000000e-01 : f32
    %722 = vector.broadcast %cst_264 : f32 to vector<2x128xf32>
    %723 = arith.mulf %722, %721 : vector<2x128xf32>
    %cst_265 = arith.constant 5.000000e-01 : f32
    %724 = vector.broadcast %cst_265 : f32 to vector<2x128xf32>
    %725 = arith.addf %723, %724 : vector<2x128xf32>
    %726 = vector.extract_strided_slice %717 {offsets = [0, 128], sizes = [2, 128], strides = [1, 1]} : vector<2x512xf32> to vector<2x128xf32>
    %cst_266 = arith.constant 5.000000e-01 : f32
    %727 = vector.broadcast %cst_266 : f32 to vector<2x128xf32>
    %728 = arith.mulf %727, %726 : vector<2x128xf32>
    %729 = math.tanh %728 : vector<2x128xf32>
    %cst_267 = arith.constant 5.000000e-01 : f32
    %730 = vector.broadcast %cst_267 : f32 to vector<2x128xf32>
    %731 = arith.mulf %730, %729 : vector<2x128xf32>
    %cst_268 = arith.constant 5.000000e-01 : f32
    %732 = vector.broadcast %cst_268 : f32 to vector<2x128xf32>
    %733 = arith.addf %731, %732 : vector<2x128xf32>
    %734 = vector.extract_strided_slice %717 {offsets = [0, 256], sizes = [2, 128], strides = [1, 1]} : vector<2x512xf32> to vector<2x128xf32>
    %735 = math.tanh %734 : vector<2x128xf32>
    %736 = vector.extract_strided_slice %717 {offsets = [0, 384], sizes = [2, 128], strides = [1, 1]} : vector<2x512xf32> to vector<2x128xf32>
    %cst_269 = arith.constant 5.000000e-01 : f32
    %737 = vector.broadcast %cst_269 : f32 to vector<2x128xf32>
    %738 = arith.mulf %737, %736 : vector<2x128xf32>
    %739 = math.tanh %738 : vector<2x128xf32>
    %cst_270 = arith.constant 5.000000e-01 : f32
    %740 = vector.broadcast %cst_270 : f32 to vector<2x128xf32>
    %741 = arith.mulf %740, %739 : vector<2x128xf32>
    %cst_271 = arith.constant 5.000000e-01 : f32
    %742 = vector.broadcast %cst_271 : f32 to vector<2x128xf32>
    %743 = arith.addf %741, %742 : vector<2x128xf32>
    %744 = arith.mulf %733, %641 : vector<2x128xf32>
    %745 = arith.mulf %725, %735 : vector<2x128xf32>
    %746 = arith.addf %744, %745 : vector<2x128xf32>
    %747 = math.tanh %746 : vector<2x128xf32>
    %748 = arith.mulf %743, %747 : vector<2x128xf32>
    %c14 = arith.constant 14 : index
    %c0_272 = arith.constant 0 : index
    %749 = vector.load %arg11[%c14, %c0_272] : memref<16x512xf32, #tpu.memory_space<vmem>>, vector<2x512xf32>
    %c0_273 = arith.constant 0 : index
    %c0_274 = arith.constant 0 : index
    %750 = vector.load %arg3[%c0_273, %c0_274] : memref<128x512xf32, #tpu.memory_space<vmem>>, vector<128x512xf32>
    %cst_275 = arith.constant dense<0.000000e+00> : vector<2x512xf32>
    %751 = tpu.matmul %678, %750, %cst_275 {dimension_numbers = #tpu.dot_dimension_numbers<[1], [0], [0], [1], [0, 0, 1, 1], [], []>} : vector<2x128xf32>, vector<128x512xf32>, vector<2x512xf32> -> vector<2x512xf32>
    %752 = arith.addf %749, %751 : vector<2x512xf32>
    %753 = vector.extract_strided_slice %752 {offsets = [0, 0], sizes = [2, 128], strides = [1, 1]} : vector<2x512xf32> to vector<2x128xf32>
    %cst_276 = arith.constant 5.000000e-01 : f32
    %754 = vector.broadcast %cst_276 : f32 to vector<2x128xf32>
    %755 = arith.mulf %754, %753 : vector<2x128xf32>
    %756 = math.tanh %755 : vector<2x128xf32>
    %cst_277 = arith.constant 5.000000e-01 : f32
    %757 = vector.broadcast %cst_277 : f32 to vector<2x128xf32>
    %758 = arith.mulf %757, %756 : vector<2x128xf32>
    %cst_278 = arith.constant 5.000000e-01 : f32
    %759 = vector.broadcast %cst_278 : f32 to vector<2x128xf32>
    %760 = arith.addf %758, %759 : vector<2x128xf32>
    %761 = vector.extract_strided_slice %752 {offsets = [0, 128], sizes = [2, 128], strides = [1, 1]} : vector<2x512xf32> to vector<2x128xf32>
    %cst_279 = arith.constant 5.000000e-01 : f32
    %762 = vector.broadcast %cst_279 : f32 to vector<2x128xf32>
    %763 = arith.mulf %762, %761 : vector<2x128xf32>
    %764 = math.tanh %763 : vector<2x128xf32>
    %cst_280 = arith.constant 5.000000e-01 : f32
    %765 = vector.broadcast %cst_280 : f32 to vector<2x128xf32>
    %766 = arith.mulf %765, %764 : vector<2x128xf32>
    %cst_281 = arith.constant 5.000000e-01 : f32
    %767 = vector.broadcast %cst_281 : f32 to vector<2x128xf32>
    %768 = arith.addf %766, %767 : vector<2x128xf32>
    %769 = vector.extract_strided_slice %752 {offsets = [0, 256], sizes = [2, 128], strides = [1, 1]} : vector<2x512xf32> to vector<2x128xf32>
    %770 = math.tanh %769 : vector<2x128xf32>
    %771 = vector.extract_strided_slice %752 {offsets = [0, 384], sizes = [2, 128], strides = [1, 1]} : vector<2x512xf32> to vector<2x128xf32>
    %cst_282 = arith.constant 5.000000e-01 : f32
    %772 = vector.broadcast %cst_282 : f32 to vector<2x128xf32>
    %773 = arith.mulf %772, %771 : vector<2x128xf32>
    %774 = math.tanh %773 : vector<2x128xf32>
    %cst_283 = arith.constant 5.000000e-01 : f32
    %775 = vector.broadcast %cst_283 : f32 to vector<2x128xf32>
    %776 = arith.mulf %775, %774 : vector<2x128xf32>
    %cst_284 = arith.constant 5.000000e-01 : f32
    %777 = vector.broadcast %cst_284 : f32 to vector<2x128xf32>
    %778 = arith.addf %776, %777 : vector<2x128xf32>
    %779 = arith.mulf %768, %676 : vector<2x128xf32>
    %780 = arith.mulf %760, %770 : vector<2x128xf32>
    %781 = arith.addf %779, %780 : vector<2x128xf32>
    %782 = math.tanh %781 : vector<2x128xf32>
    %783 = arith.mulf %778, %782 : vector<2x128xf32>
    %784 = tpu.concatenate %783, %713 in 1 : vector<2x128xf32>, vector<2x128xf32> -> vector<2x256xf32>
    %c0_285 = arith.constant 0 : index
    %c0_286 = arith.constant 0 : index
    %785 = vector.load %arg4[%c0_285, %c0_286] : memref<256x512xf32, #tpu.memory_space<vmem>>, vector<256x512xf32>
    %cst_287 = arith.constant dense<0.000000e+00> : vector<2x512xf32>
    %786 = tpu.matmul %784, %785, %cst_287 {dimension_numbers = #tpu.dot_dimension_numbers<[1], [0], [0], [1], [0, 0, 1, 1], [], []>} : vector<2x256xf32>, vector<256x512xf32>, vector<2x512xf32> -> vector<2x512xf32>
    %787 = arith.addf %786, %9 : vector<2x512xf32>
    %788 = vector.extract_strided_slice %787 {offsets = [0, 0], sizes = [2, 128], strides = [1, 1]} : vector<2x512xf32> to vector<2x128xf32>
    %cst_288 = arith.constant 5.000000e-01 : f32
    %789 = vector.broadcast %cst_288 : f32 to vector<2x128xf32>
    %790 = arith.mulf %789, %788 : vector<2x128xf32>
    %791 = math.tanh %790 : vector<2x128xf32>
    %cst_289 = arith.constant 5.000000e-01 : f32
    %792 = vector.broadcast %cst_289 : f32 to vector<2x128xf32>
    %793 = arith.mulf %792, %791 : vector<2x128xf32>
    %cst_290 = arith.constant 5.000000e-01 : f32
    %794 = vector.broadcast %cst_290 : f32 to vector<2x128xf32>
    %795 = arith.addf %793, %794 : vector<2x128xf32>
    %796 = vector.extract_strided_slice %787 {offsets = [0, 128], sizes = [2, 128], strides = [1, 1]} : vector<2x512xf32> to vector<2x128xf32>
    %cst_291 = arith.constant 5.000000e-01 : f32
    %797 = vector.broadcast %cst_291 : f32 to vector<2x128xf32>
    %798 = arith.mulf %797, %796 : vector<2x128xf32>
    %799 = math.tanh %798 : vector<2x128xf32>
    %cst_292 = arith.constant 5.000000e-01 : f32
    %800 = vector.broadcast %cst_292 : f32 to vector<2x128xf32>
    %801 = arith.mulf %800, %799 : vector<2x128xf32>
    %cst_293 = arith.constant 5.000000e-01 : f32
    %802 = vector.broadcast %cst_293 : f32 to vector<2x128xf32>
    %803 = arith.addf %801, %802 : vector<2x128xf32>
    %804 = vector.extract_strided_slice %787 {offsets = [0, 256], sizes = [2, 128], strides = [1, 1]} : vector<2x512xf32> to vector<2x128xf32>
    %805 = math.tanh %804 : vector<2x128xf32>
    %806 = vector.extract_strided_slice %787 {offsets = [0, 384], sizes = [2, 128], strides = [1, 1]} : vector<2x512xf32> to vector<2x128xf32>
    %cst_294 = arith.constant 5.000000e-01 : f32
    %807 = vector.broadcast %cst_294 : f32 to vector<2x128xf32>
    %808 = arith.mulf %807, %806 : vector<2x128xf32>
    %809 = math.tanh %808 : vector<2x128xf32>
    %cst_295 = arith.constant 5.000000e-01 : f32
    %810 = vector.broadcast %cst_295 : f32 to vector<2x128xf32>
    %811 = arith.mulf %810, %809 : vector<2x128xf32>
    %cst_296 = arith.constant 5.000000e-01 : f32
    %812 = vector.broadcast %cst_296 : f32 to vector<2x128xf32>
    %813 = arith.addf %811, %812 : vector<2x128xf32>
    %814 = arith.mulf %803, %711 : vector<2x128xf32>
    %815 = arith.mulf %795, %805 : vector<2x128xf32>
    %816 = arith.addf %814, %815 : vector<2x128xf32>
    %817 = math.tanh %816 : vector<2x128xf32>
    %818 = arith.mulf %813, %817 : vector<2x128xf32>
    %819 = tpu.concatenate %818, %748 in 1 : vector<2x128xf32>, vector<2x128xf32> -> vector<2x256xf32>
    %c0_297 = arith.constant 0 : index
    %c0_298 = arith.constant 0 : index
    %820 = vector.load %arg6[%c0_297, %c0_298] : memref<256x512xf32, #tpu.memory_space<vmem>>, vector<256x512xf32>
    %cst_299 = arith.constant dense<0.000000e+00> : vector<2x512xf32>
    %821 = tpu.matmul %819, %820, %cst_299 {dimension_numbers = #tpu.dot_dimension_numbers<[1], [0], [0], [1], [0, 0, 1, 1], [], []>} : vector<2x256xf32>, vector<256x512xf32>, vector<2x512xf32> -> vector<2x512xf32>
    %822 = arith.addf %821, %12 : vector<2x512xf32>
    %823 = vector.extract_strided_slice %822 {offsets = [0, 0], sizes = [2, 128], strides = [1, 1]} : vector<2x512xf32> to vector<2x128xf32>
    %cst_300 = arith.constant 5.000000e-01 : f32
    %824 = vector.broadcast %cst_300 : f32 to vector<2x128xf32>
    %825 = arith.mulf %824, %823 : vector<2x128xf32>
    %826 = math.tanh %825 : vector<2x128xf32>
    %cst_301 = arith.constant 5.000000e-01 : f32
    %827 = vector.broadcast %cst_301 : f32 to vector<2x128xf32>
    %828 = arith.mulf %827, %826 : vector<2x128xf32>
    %cst_302 = arith.constant 5.000000e-01 : f32
    %829 = vector.broadcast %cst_302 : f32 to vector<2x128xf32>
    %830 = arith.addf %828, %829 : vector<2x128xf32>
    %831 = vector.extract_strided_slice %822 {offsets = [0, 128], sizes = [2, 128], strides = [1, 1]} : vector<2x512xf32> to vector<2x128xf32>
    %cst_303 = arith.constant 5.000000e-01 : f32
    %832 = vector.broadcast %cst_303 : f32 to vector<2x128xf32>
    %833 = arith.mulf %832, %831 : vector<2x128xf32>
    %834 = math.tanh %833 : vector<2x128xf32>
    %cst_304 = arith.constant 5.000000e-01 : f32
    %835 = vector.broadcast %cst_304 : f32 to vector<2x128xf32>
    %836 = arith.mulf %835, %834 : vector<2x128xf32>
    %cst_305 = arith.constant 5.000000e-01 : f32
    %837 = vector.broadcast %cst_305 : f32 to vector<2x128xf32>
    %838 = arith.addf %836, %837 : vector<2x128xf32>
    %839 = vector.extract_strided_slice %822 {offsets = [0, 256], sizes = [2, 128], strides = [1, 1]} : vector<2x512xf32> to vector<2x128xf32>
    %840 = math.tanh %839 : vector<2x128xf32>
    %841 = vector.extract_strided_slice %822 {offsets = [0, 384], sizes = [2, 128], strides = [1, 1]} : vector<2x512xf32> to vector<2x128xf32>
    %cst_306 = arith.constant 5.000000e-01 : f32
    %842 = vector.broadcast %cst_306 : f32 to vector<2x128xf32>
    %843 = arith.mulf %842, %841 : vector<2x128xf32>
    %844 = math.tanh %843 : vector<2x128xf32>
    %cst_307 = arith.constant 5.000000e-01 : f32
    %845 = vector.broadcast %cst_307 : f32 to vector<2x128xf32>
    %846 = arith.mulf %845, %844 : vector<2x128xf32>
    %cst_308 = arith.constant 5.000000e-01 : f32
    %847 = vector.broadcast %cst_308 : f32 to vector<2x128xf32>
    %848 = arith.addf %846, %847 : vector<2x128xf32>
    %849 = arith.mulf %838, %746 : vector<2x128xf32>
    %850 = arith.mulf %830, %840 : vector<2x128xf32>
    %851 = arith.addf %849, %850 : vector<2x128xf32>
    %852 = math.tanh %851 : vector<2x128xf32>
    %853 = arith.mulf %848, %852 : vector<2x128xf32>
    %c0_309 = arith.constant 0 : index
    %c0_310 = arith.constant 0 : index
    %854 = vector.load %arg8[%c0_309, %c0_310] : memref<128x1xf32, #tpu.memory_space<vmem>>, vector<128x1xf32>
    %cst_311 = arith.constant dense<0.000000e+00> : vector<2x1xf32>
    %855 = tpu.matmul %853, %854, %cst_311 {dimension_numbers = #tpu.dot_dimension_numbers<[1], [0], [0], [1], [0, 0, 1, 1], [], []>} : vector<2x128xf32>, vector<128x1xf32>, vector<2x1xf32> -> vector<2x1xf32>
    %c0_312 = arith.constant 0 : index
    %c0_313 = arith.constant 0 : index
    %856 = vector.load %arg9[%c0_312, %c0_313] : memref<1x1xf32, #tpu.memory_space<vmem>>, vector<1x1xf32>
    %857 = vector.broadcast %856 : vector<1x1xf32> to vector<2x1xf32>
    %858 = arith.addf %855, %857 : vector<2x1xf32>
    %c0_314 = arith.constant 0 : index
    %c0_315 = arith.constant 0 : index
    %859 = vector.load %arg10[%c0_314, %c0_315] : memref<2x1xf32, #tpu.memory_space<vmem>>, vector<2x1xf32>
    tpu.vector_store %arg10[%c0_314, %c0_315], %858 {strides = array<i32>} : memref<2x1xf32, #tpu.memory_space<vmem>>, vector<2x1xf32>,
    return
  }
}

</mosaic_0001>

<llo_original>
// kernel: tpu_custom_call.1
$region0: #{tpu_custom_call.1}
  #allocation0 [shape = 'u32[]', space=smem, size = 0x4, offset = 0x4, fixed_abs, tag = 'smem constant byte address 0x4 - core index']
  #allocation1 [shape = 'u32[144,128]{1,0:T(1,128)}', space=vmem, size = 0x12000, scoped, tag = 'internal scratch']
  #allocation2 [shape = 'f32[16,512]{1,0:T(8,128)}', space=vmem, size = 0x8000, scoped, tag = 'scratch operand']
  #allocation3 [shape = 'f32[1,1]{1,0:T(1,128)S(1)}', space=vmem, size = 0x200, scoped, tag = 'scoped memory for tpu_custom_call.1']
  %s0 = inlined_call_operand.hbm [shape: f32[16,32], index: 0, kind: input, shape index: {}]
  %s1 = inlined_call_operand.vmem [shape: f32[32,512], index: 1, kind: input, shape index: {}]
  %s2 = inlined_call_operand.vmem [shape: f32[1,512], index: 2, kind: input, shape index: {}]
  %s3 = inlined_call_operand.hbm [shape: f32[128,512], index: 3, kind: input, shape index: {}]
  %s4 = inlined_call_operand.hbm [shape: f32[256,512], index: 4, kind: input, shape index: {}]
  %s5 = inlined_call_operand.vmem [shape: f32[1,512], index: 5, kind: input, shape index: {}]
  %s6 = inlined_call_operand.hbm [shape: f32[256,512], index: 6, kind: input, shape index: {}]
  %s7 = inlined_call_operand.vmem [shape: f32[1,512], index: 7, kind: input, shape index: {}]
  %s8 = inlined_call_operand.vmem [shape: f32[128,1], index: 8, kind: input, shape index: {}]
  %s9 = inlined_call_operand.<no memory space> [shape: f32[1,1], index: 9, kind: input, shape index: {}]
  %s10 = inlined_call_operand.vmem [shape: f32[2,1], index: 10, kind: output, shape index: {}]
  %s11 = sld [smem:[#allocation0]]
  $region66: #{tpu_custom_call.1} parent=0
    _
  %s13 = ssub.s32 1, %s11
  %s14 = scalar_select 0, %s13, %s11
  %v15 = vstv %s9
  %16 = vst [vmem:[#allocation3] sm:$0x1] %v15
  $region1: #{tpu_custom_call.1} parent=0
    #allocation4 [shape = 'u8[8192]{0}', space=vmem, size = 0x2000, scoped, tag = 'input window, operand 0, single buffered']
    #allocation5 [shape = 's32[1]{0}', space=sflag, size = 0x4, scoped, tag = 'scoped memory for tpu_custom_call.1']
    #allocation6 [shape = 'u8[262144]{0}', space=vmem, size = 0x40000, scoped, tag = 'input window, operand 3, single buffered']
    #allocation7 [shape = 's32[1]{0}', space=sflag, size = 0x4, scoped, tag = 'scoped memory for tpu_custom_call.1']
    #allocation8 [shape = 'u8[524288]{0}', space=vmem, size = 0x80000, scoped, tag = 'input window, operand 4, single buffered']
    #allocation9 [shape = 'u8[524288]{0}', space=vmem, size = 0x80000, scoped, tag = 'input window, operand 6, single buffered']
    #allocation10 [shape = 's32[1]{0}', space=sflag, size = 0x4, scoped, tag = 'scoped memory for tpu_custom_call.1']
    %17 = vsyncpa [#allocation5], 0
    %18 = vsyncpa [#allocation7], 0
    %19 = vsyncpa [#allocation10], 0
    // Predicated region
    $region2: #{tpu_custom_call.1} parent=1 // pred_check
      _
    $region3: #{tpu_custom_call.1} parent=1 // pred_check_branch
      %21 = sbr.rel (0) target = $region5
    $region4: #{tpu_custom_call.1} parent=1 // pred_region
      %s23 = ssub.s32 256, 256
      %24 = vsyncadd [#allocation5], %s23
      %s25 = sshll.u32 [#allocation4], 4
      %s26 = int_to_ptr.vmem [resolvable:$true] %s25
      %31 = dma.hbm_to_vmem [thread:$0]  %s0, 256, %s26, [#allocation5], 128, 128, 8
    $region5: #{tpu_custom_call.1} parent=1 // pred_fallthru
      _
    // Predicated region
    $region6: #{tpu_custom_call.1} parent=1 // pred_check
      _
    $region7: #{tpu_custom_call.1} parent=1 // pred_check_branch
      %33 = sbr.rel (0) target = $region9
    $region8: #{tpu_custom_call.1} parent=1 // pred_region
      _
    $region9: #{tpu_custom_call.1} parent=1 // pred_fallthru
      _
    // Predicated region
    $region10: #{tpu_custom_call.1} parent=1 // pred_check
      _
    $region11: #{tpu_custom_call.1} parent=1 // pred_check_branch
      %35 = sbr.rel (0) target = $region13
    $region12: #{tpu_custom_call.1} parent=1 // pred_region
      _
    $region13: #{tpu_custom_call.1} parent=1 // pred_fallthru
      _
    // Predicated region
    $region14: #{tpu_custom_call.1} parent=1 // pred_check
      _
    $region15: #{tpu_custom_call.1} parent=1 // pred_check_branch
      %37 = sbr.rel (0) target = $region17
    $region16: #{tpu_custom_call.1} parent=1 // pred_region
      %s39 = ssub.s32 8192, 8192
      %40 = vsyncadd [#allocation7], %s39
      %s41 = sshll.u32 [#allocation6], 4
      %s42 = int_to_ptr.vmem [resolvable:$true] %s41
      %47 = dma.hbm_to_vmem [thread:$0]  %s3, 8192, %s42, [#allocation7], 512, 512, 32
    $region17: #{tpu_custom_call.1} parent=1 // pred_fallthru
      _
    // Predicated region
    $region18: #{tpu_custom_call.1} parent=1 // pred_check
      _
    $region19: #{tpu_custom_call.1} parent=1 // pred_check_branch
      %49 = sbr.rel (0) target = $region21
    $region20: #{tpu_custom_call.1} parent=1 // pred_region
      %s51 = ssub.s32 16384, 16384
      %52 = vsyncadd [#allocation7], %s51
      %s53 = sshll.u32 [#allocation8], 4
      %s54 = int_to_ptr.vmem [resolvable:$true] %s53
      %59 = dma.hbm_to_vmem [thread:$0]  %s4, 16384, %s54, [#allocation7], 512, 512, 32
    $region21: #{tpu_custom_call.1} parent=1 // pred_fallthru
      _
    // Predicated region
    $region22: #{tpu_custom_call.1} parent=1 // pred_check
      _
    $region23: #{tpu_custom_call.1} parent=1 // pred_check_branch
      %61 = sbr.rel (0) target = $region25
    $region24: #{tpu_custom_call.1} parent=1 // pred_region
      _
    $region25: #{tpu_custom_call.1} parent=1 // pred_fallthru
      _
    // Predicated region
    $region26: #{tpu_custom_call.1} parent=1 // pred_check
      _
    $region27: #{tpu_custom_call.1} parent=1 // pred_check_branch
      %63 = sbr.rel (0) target = $region29
    $region28: #{tpu_custom_call.1} parent=1 // pred_region
      %s65 = ssub.s32 16384, 16384
      %66 = vsyncadd [#allocation10], %s65
      %s67 = sshll.u32 [#allocation9], 4
      %s68 = int_to_ptr.vmem [resolvable:$true] %s67
      %73 = dma.hbm_to_vmem [thread:$0]  %s6, 16384, %s68, [#allocation10], 512, 512, 32
    $region29: #{tpu_custom_call.1} parent=1 // pred_fallthru
      _
    // Predicated region
    $region30: #{tpu_custom_call.1} parent=1 // pred_check
      _
    $region31: #{tpu_custom_call.1} parent=1 // pred_check_branch
      %75 = sbr.rel (0) target = $region33
    $region32: #{tpu_custom_call.1} parent=1 // pred_region
      _
    $region33: #{tpu_custom_call.1} parent=1 // pred_fallthru
      _
    // Predicated region
    $region34: #{tpu_custom_call.1} parent=1 // pred_check
      _
    $region35: #{tpu_custom_call.1} parent=1 // pred_check_branch
      %77 = sbr.rel (0) target = $region37
    $region36: #{tpu_custom_call.1} parent=1 // pred_region
      _
    $region37: #{tpu_custom_call.1} parent=1 // pred_fallthru
      _
    // Predicated region
    $region38: #{tpu_custom_call.1} parent=1 // pred_check
      _
    $region39: #{tpu_custom_call.1} parent=1 // pred_check_branch
      %79 = sbr.rel (0) target = $region41
    $region40: #{tpu_custom_call.1} parent=1 // pred_region
      _
    $region41: #{tpu_custom_call.1} parent=1 // pred_fallthru
      _
    // Predicated region
    $region42: #{tpu_custom_call.1} parent=1 // pred_check
      _
    $region43: #{tpu_custom_call.1} parent=1 // pred_check_branch
      %81 = sbr.rel (0) target = $region45
    $region44: #{tpu_custom_call.1} parent=1 // pred_region
      %82 = dma.done [#allocation5], 256
    $region45: #{tpu_custom_call.1} parent=1 // pred_fallthru
      _
    // Predicated region
    $region46: #{tpu_custom_call.1} parent=1 // pred_check
      _
    $region47: #{tpu_custom_call.1} parent=1 // pred_check_branch
      %84 = sbr.rel (0) target = $region49
    $region48: #{tpu_custom_call.1} parent=1 // pred_region
      %85 = dma.done [#allocation7], 8192
    $region49: #{tpu_custom_call.1} parent=1 // pred_fallthru
      _
    // Predicated region
    $region50: #{tpu_custom_call.1} parent=1 // pred_check
      _
    $region51: #{tpu_custom_call.1} parent=1 // pred_check_branch
      %87 = sbr.rel (0) target = $region53
    $region52: #{tpu_custom_call.1} parent=1 // pred_region
      %88 = dma.done [#allocation7], 16384
    $region53: #{tpu_custom_call.1} parent=1 // pred_fallthru
      _
    // Predicated region
    $region54: #{tpu_custom_call.1} parent=1 // pred_check
      _
    $region55: #{tpu_custom_call.1} parent=1 // pred_check_branch
      %90 = sbr.rel (0) target = $region57
    $region56: #{tpu_custom_call.1} parent=1 // pred_region
      %91 = dma.done [#allocation10], 16384
    $region57: #{tpu_custom_call.1} parent=1 // pred_fallthru
      _
    %v92 = vld [vmem:[#allocation4] sm:$0xff]
    %v93 = vld [vmem:[#allocation4 + $0x8] sm:$0xff]
    %v94 = vld [vmem:[%s1] sm:$0xff]
    %v95 = vld [vmem:[%s1 + $0x8] sm:$0xff]
    %v96 = vld [vmem:[%s1 + $0x10] sm:$0xff]
    %v97 = vld [vmem:[%s1 + $0x18] sm:$0xff]
    %v98 = vld [vmem:[%s1 + $0x20] sm:$0xff]
    %v99 = vld [vmem:[%s1 + $0x28] sm:$0xff]
    %v100 = vld [vmem:[%s1 + $0x30] sm:$0xff]
    %v101 = vld [vmem:[%s1 + $0x38] sm:$0xff]
    %v102 = vld [vmem:[%s1 + $0x40] sm:$0xff]
    %v103 = vld [vmem:[%s1 + $0x48] sm:$0xff]
    %v104 = vld [vmem:[%s1 + $0x50] sm:$0xff]
    %v105 = vld [vmem:[%s1 + $0x58] sm:$0xff]
    %v106 = vld [vmem:[%s1 + $0x60] sm:$0xff]
    %v107 = vld [vmem:[%s1 + $0x68] sm:$0xff]
    %v108 = vld [vmem:[%s1 + $0x70] sm:$0xff]
    %v109 = vld [vmem:[%s1 + $0x78] sm:$0xff]
    %v110 = vld [vmem:[%s2] sm:$0xf]
    %v112 = vlaneseq
    %v113 = vshrl.u32 %v112, 7
    %v114 = vsub.s32 0, %v113
    %v115 = vrot.slane %v110, %v114
    %v116 = vlaneseq
    %v117 = vshrl.u32 %v116, 7
    %v118 = vsub.s32 1, %v117
    %v119 = vrot.slane %v110, %v118
    %v120 = vlaneseq
    %v121 = vshrl.u32 %v120, 7
    %v122 = vsub.s32 2, %v121
    %v123 = vrot.slane %v110, %v122
    %v124 = vlaneseq
    %v125 = vshrl.u32 %v124, 7
    %v126 = vsub.s32 3, %v125
    %v127 = vrot.slane %v110, %v126
    %vm132 = vcmask 261120
    %v134 = vsel %vm132, %v92, 0
    %v137 = vsel %vm132, %v93, 0
    %139 = vmatprep.subr.mxu0 0.0
    %140 = vmatpush1.msra.mxu0 0.0
    %141 = vmatprep.subr.mxu0 0.0
    %142 = vmatpush1.msra.mxu0 0.0
    %143 = vmatprep.subr.mxu0 0.0
    %144 = vmatpush1.msra.mxu0 0.0
    %145 = vmatprep.subr.mxu0 0.0
    %146 = vmatpush1.msra.mxu0 0.0
    %147 = vmatprep.subr.mxu0 0.0
    %148 = vmatpush1.msra.mxu0 0.0
    %149 = vmatprep.subr.mxu0 0.0
    %150 = vmatpush1.msra.mxu0 0.0
    %151 = vmatprep.subr.mxu0 0.0
    %152 = vmatpush1.msra.mxu0 0.0
    %153 = vmatprep.subr.mxu0 0.0
    %154 = vmatpush1.msra.mxu0 0.0
    %155 = vmatprep.subr.mxu0 0.0
    %156 = vmatpush1.msra.mxu0 0.0
    %157 = vmatprep.subr.mxu0 0.0
    %158 = vmatpush1.msra.mxu0 0.0
    %159 = vmatprep.subr.mxu0 0.0
    %160 = vmatpush1.msra.mxu0 0.0
    %161 = vmatprep.subr.mxu0 0.0
    %162 = vmatpush1.msra.mxu0 0.0
    %163 = vmatprep.subr.mxu0 %v107
    %164 = vmatpush1.msra.mxu0 %v106
    %165 = vmatprep.subr.mxu0 %v103
    %166 = vmatpush1.msra.mxu0 %v102
    %167 = vmatprep.subr.mxu0 %v99
    %168 = vmatpush1.msra.mxu0 %v98
    %169 = vmatprep.subr.mxu0 %v95
    %170 = vmatpush1.msra.mxu0 %v94
    %171 = vmatprep.subr.mxu0 0.0
    %172 = vmatpush2.msra.mxu0 0.0
    %173 = vmatprep.subr.mxu0 0.0
    %174 = vmatpush2.msra.mxu0 0.0
    %175 = vmatprep.subr.mxu0 0.0
    %176 = vmatpush2.msra.mxu0 0.0
    %177 = vmatprep.subr.mxu0 0.0
    %178 = vmatpush2.msra.mxu0 0.0
    %179 = vmatprep.subr.mxu0 0.0
    %180 = vmatpush2.msra.mxu0 0.0
    %181 = vmatprep.subr.mxu0 0.0
    %182 = vmatpush2.msra.mxu0 0.0
    %183 = vmatprep.subr.mxu0 0.0
    %184 = vmatpush2.msra.mxu0 0.0
    %185 = vmatprep.subr.mxu0 0.0
    %186 = vmatpush2.msra.mxu0 0.0
    %187 = vmatprep.subr.mxu0 0.0
    %188 = vmatpush2.msra.mxu0 0.0
    %189 = vmatprep.subr.mxu0 0.0
    %190 = vmatpush2.msra.mxu0 0.0
    %191 = vmatprep.subr.mxu0 0.0
    %192 = vmatpush2.msra.mxu0 0.0
    %193 = vmatprep.subr.mxu0 0.0
    %194 = vmatpush2.msra.mxu0 0.0
    %195 = vmatprep.subr.mxu0 0.0
    %196 = vmatpush2.msra.mxu0 0.0
    %197 = vmatprep.subr.mxu0 0.0
    %198 = vmatpush2.msra.mxu0 0.0
    %199 = vmatprep.subr.mxu0 0.0
    %200 = vmatpush2.msra.mxu0 0.0
    %201 = vmatprep.subr.mxu0 0.0
    %202 = vmatpush2.msra.mxu0 0.0
    %203 = vmatprep.mubr.f32.mxu0 0.0
    %204 = vmatmul.mubr.f32.gmra.mxu0 %v134
    %v205 = vpop.f32.mrf.mxu0
    %v206 = vadd.f32 %v115, %v205
    %v207 = vpop.f32.mrf.mxu0
    %v208 = vadd.f32 %v119, %v207
    %209 = vmatprep.mubr.f32.mxu0 0.0
    %210 = vmatmul.mubr.f32.gmra.mxu0 %v137
    %v211 = vpop.f32.mrf.mxu0
    %v212 = vadd.f32 %v115, %v211
    %v213 = vpop.f32.mrf.mxu0
    %v214 = vadd.f32 %v119, %v213
    %215 = vdwg.mxu0
    %216 = vmatprep.subr.mxu0 0.0
    %217 = vmatpush1.msra.mxu0 0.0
    %218 = vmatprep.subr.mxu0 0.0
    %219 = vmatpush1.msra.mxu0 0.0
    %220 = vmatprep.subr.mxu0 0.0
    %221 = vmatpush1.msra.mxu0 0.0
    %222 = vmatprep.subr.mxu0 0.0
    %223 = vmatpush1.msra.mxu0 0.0
    %224 = vmatprep.subr.mxu0 0.0
    %225 = vmatpush1.msra.mxu0 0.0
    %226 = vmatprep.subr.mxu0 0.0
    %227 = vmatpush1.msra.mxu0 0.0
    %228 = vmatprep.subr.mxu0 0.0
    %229 = vmatpush1.msra.mxu0 0.0
    %230 = vmatprep.subr.mxu0 0.0
    %231 = vmatpush1.msra.mxu0 0.0
    %232 = vmatprep.subr.mxu0 0.0
    %233 = vmatpush1.msra.mxu0 0.0
    %234 = vmatprep.subr.mxu0 0.0
    %235 = vmatpush1.msra.mxu0 0.0
    %236 = vmatprep.subr.mxu0 0.0
    %237 = vmatpush1.msra.mxu0 0.0
    %238 = vmatprep.subr.mxu0 0.0
    %239 = vmatpush1.msra.mxu0 0.0
    %240 = vmatprep.subr.mxu0 %v109
    %241 = vmatpush1.msra.mxu0 %v108
    %242 = vmatprep.subr.mxu0 %v105
    %243 = vmatpush1.msra.mxu0 %v104
    %244 = vmatprep.subr.mxu0 %v101
    %245 = vmatpush1.msra.mxu0 %v100
    %246 = vmatprep.subr.mxu0 %v97
    %247 = vmatpush1.msra.mxu0 %v96
    %248 = vmatprep.subr.mxu0 0.0
    %249 = vmatpush2.msra.mxu0 0.0
    %250 = vmatprep.subr.mxu0 0.0
    %251 = vmatpush2.msra.mxu0 0.0
    %252 = vmatprep.subr.mxu0 0.0
    %253 = vmatpush2.msra.mxu0 0.0
    %254 = vmatprep.subr.mxu0 0.0
    %255 = vmatpush2.msra.mxu0 0.0
    %256 = vmatprep.subr.mxu0 0.0
    %257 = vmatpush2.msra.mxu0 0.0
    %258 = vmatprep.subr.mxu0 0.0
    %259 = vmatpush2.msra.mxu0 0.0
    %260 = vmatprep.subr.mxu0 0.0
    %261 = vmatpush2.msra.mxu0 0.0
    %262 = vmatprep.subr.mxu0 0.0
    %263 = vmatpush2.msra.mxu0 0.0
    %264 = vmatprep.subr.mxu0 0.0
    %265 = vmatpush2.msra.mxu0 0.0
    %266 = vmatprep.subr.mxu0 0.0
    %267 = vmatpush2.msra.mxu0 0.0
    %268 = vmatprep.subr.mxu0 0.0
    %269 = vmatpush2.msra.mxu0 0.0
    %270 = vmatprep.subr.mxu0 0.0
    %271 = vmatpush2.msra.mxu0 0.0
    %272 = vmatprep.subr.mxu0 0.0
    %273 = vmatpush2.msra.mxu0 0.0
    %274 = vmatprep.subr.mxu0 0.0
    %275 = vmatpush2.msra.mxu0 0.0
    %276 = vmatprep.subr.mxu0 0.0
    %277 = vmatpush2.msra.mxu0 0.0
    %278 = vmatprep.subr.mxu0 0.0
    %279 = vmatpush2.msra.mxu0 0.0
    %280 = vmatprep.mubr.f32.mxu0 0.0
    %281 = vmatmul.mubr.f32.gmra.mxu0 %v134
    %v282 = vpop.f32.mrf.mxu0
    %v283 = vadd.f32 %v123, %v282
    %v284 = vpop.f32.mrf.mxu0
    %v285 = vadd.f32 %v127, %v284
    %286 = vmatprep.mubr.f32.mxu0 0.0
    %287 = vmatmul.mubr.f32.gmra.mxu0 %v137
    %v288 = vpop.f32.mrf.mxu0
    %v289 = vadd.f32 %v123, %v288
    %v290 = vpop.f32.mrf.mxu0
    %v291 = vadd.f32 %v127, %v290
    %292 = vdwg.mxu0
    %293 = vst [vmem:[#allocation2] sm:$0xff] %v206
    %294 = vst [vmem:[#allocation2 + $0x8] sm:$0xff] %v208
    %295 = vst [vmem:[#allocation2 + $0x10] sm:$0xff] %v283
    %296 = vst [vmem:[#allocation2 + $0x18] sm:$0xff] %v285
    %297 = vst [vmem:[#allocation2 + $0x20] sm:$0xff] %v212
    %298 = vst [vmem:[#allocation2 + $0x28] sm:$0xff] %v214
    %299 = vst [vmem:[#allocation2 + $0x30] sm:$0xff] %v289
    %300 = vst [vmem:[#allocation2 + $0x38] sm:$0xff] %v291
    %v301 = vld [vmem:[%s5] sm:$0xf]
    %v303 = vlaneseq
    %v304 = vshrl.u32 %v303, 7
    %v305 = vsub.s32 0, %v304
    %v306 = vrot.slane %v301, %v305
    %v307 = vlaneseq
    %v308 = vshrl.u32 %v307, 7
    %v309 = vsub.s32 1, %v308
    %v310 = vrot.slane %v301, %v309
    %v311 = vlaneseq
    %v312 = vshrl.u32 %v311, 7
    %v313 = vsub.s32 2, %v312
    %v314 = vrot.slane %v301, %v313
    %v315 = vlaneseq
    %v316 = vshrl.u32 %v315, 7
    %v317 = vsub.s32 3, %v316
    %v318 = vrot.slane %v301, %v317
    %v323 = vld [vmem:[%s7] sm:$0xf]
    %v325 = vlaneseq
    %v326 = vshrl.u32 %v325, 7
    %v327 = vsub.s32 0, %v326
    %v328 = vrot.slane %v323, %v327
    %v329 = vlaneseq
    %v330 = vshrl.u32 %v329, 7
    %v331 = vsub.s32 1, %v330
    %v332 = vrot.slane %v323, %v331
    %v333 = vlaneseq
    %v334 = vshrl.u32 %v333, 7
    %v335 = vsub.s32 2, %v334
    %v336 = vrot.slane %v323, %v335
    %v337 = vlaneseq
    %v338 = vshrl.u32 %v337, 7
    %v339 = vsub.s32 3, %v338
    %v340 = vrot.slane %v323, %v339
    %v345 = vld [vmem:[#allocation2] sm:$0x3]
    %v346 = vld [vmem:[#allocation2 + $0x8] sm:$0x3]
    %v347 = vld [vmem:[#allocation2 + $0x10] sm:$0x3]
    %v348 = vld [vmem:[#allocation2 + $0x18] sm:$0x3]
    %v349 = vld [vmem:[#allocation6] sm:$0xff]
    %v350 = vld [vmem:[#allocation6 + $0x8] sm:$0xff]
    %v351 = vld [vmem:[#allocation6 + $0x10] sm:$0xff]
    %v352 = vld [vmem:[#allocation6 + $0x18] sm:$0xff]
    %v353 = vld [vmem:[#allocation6 + $0x20] sm:$0xff]
    %v354 = vld [vmem:[#allocation6 + $0x28] sm:$0xff]
    %v355 = vld [vmem:[#allocation6 + $0x30] sm:$0xff]
    %v356 = vld [vmem:[#allocation6 + $0x38] sm:$0xff]
    %v357 = vld [vmem:[#allocation6 + $0x40] sm:$0xff]
    %v358 = vld [vmem:[#allocation6 + $0x48] sm:$0xff]
    %v359 = vld [vmem:[#allocation6 + $0x50] sm:$0xff]
    %v360 = vld [vmem:[#allocation6 + $0x58] sm:$0xff]
    %v361 = vld [vmem:[#allocation6 + $0x60] sm:$0xff]
    %v362 = vld [vmem:[#allocation6 + $0x68] sm:$0xff]
    %v363 = vld [vmem:[#allocation6 + $0x70] sm:$0xff]
    %v364 = vld [vmem:[#allocation6 + $0x78] sm:$0xff]
    %v365 = vld [vmem:[#allocation6 + $0x80] sm:$0xff]
    %v366 = vld [vmem:[#allocation6 + $0x88] sm:$0xff]
    %v367 = vld [vmem:[#allocation6 + $0x90] sm:$0xff]
    %v368 = vld [vmem:[#allocation6 + $0x98] sm:$0xff]
    %v369 = vld [vmem:[#allocation6 + $0xa0] sm:$0xff]
    %v370 = vld [vmem:[#allocation6 + $0xa8] sm:$0xff]
    %v371 = vld [vmem:[#allocation6 + $0xb0] sm:$0xff]
    %v372 = vld [vmem:[#allocation6 + $0xb8] sm:$0xff]
    %v373 = vld [vmem:[#allocation6 + $0xc0] sm:$0xff]
    %v374 = vld [vmem:[#allocation6 + $0xc8] sm:$0xff]
    %v375 = vld [vmem:[#allocation6 + $0xd0] sm:$0xff]
    %v376 = vld [vmem:[#allocation6 + $0xd8] sm:$0xff]
    %v377 = vld [vmem:[#allocation6 + $0xe0] sm:$0xff]
    %v378 = vld [vmem:[#allocation6 + $0xe8] sm:$0xff]
    %v379 = vld [vmem:[#allocation6 + $0xf0] sm:$0xff]
    %v380 = vld [vmem:[#allocation6 + $0xf8] sm:$0xff]
    %v381 = vld [vmem:[#allocation6 + $0x100] sm:$0xff]
    %v382 = vld [vmem:[#allocation6 + $0x108] sm:$0xff]
    %v383 = vld [vmem:[#allocation6 + $0x110] sm:$0xff]
    %v384 = vld [vmem:[#allocation6 + $0x118] sm:$0xff]
    %v385 = vld [vmem:[#allocation6 + $0x120] sm:$0xff]
    %v386 = vld [vmem:[#allocation6 + $0x128] sm:$0xff]
    %v387 = vld [vmem:[#allocation6 + $0x130] sm:$0xff]
    %v388 = vld [vmem:[#allocation6 + $0x138] sm:$0xff]
    %v389 = vld [vmem:[#allocation6 + $0x140] sm:$0xff]
    %v390 = vld [vmem:[#allocation6 + $0x148] sm:$0xff]
    %v391 = vld [vmem:[#allocation6 + $0x150] sm:$0xff]
    %v392 = vld [vmem:[#allocation6 + $0x158] sm:$0xff]
    %v393 = vld [vmem:[#allocation6 + $0x160] sm:$0xff]
    %v394 = vld [vmem:[#allocation6 + $0x168] sm:$0xff]
    %v395 = vld [vmem:[#allocation6 + $0x170] sm:$0xff]
    %v396 = vld [vmem:[#allocation6 + $0x178] sm:$0xff]
    %v397 = vld [vmem:[#allocation6 + $0x180] sm:$0xff]
    %v398 = vld [vmem:[#allocation6 + $0x188] sm:$0xff]
    %v399 = vld [vmem:[#allocation6 + $0x190] sm:$0xff]
    %v400 = vld [vmem:[#allocation6 + $0x198] sm:$0xff]
    %v401 = vld [vmem:[#allocation6 + $0x1a0] sm:$0xff]
    %v402 = vld [vmem:[#allocation6 + $0x1a8] sm:$0xff]
    %v403 = vld [vmem:[#allocation6 + $0x1b0] sm:$0xff]
    %v404 = vld [vmem:[#allocation6 + $0x1b8] sm:$0xff]
    %v405 = vld [vmem:[#allocation6 + $0x1c0] sm:$0xff]
    %v406 = vld [vmem:[#allocation6 + $0x1c8] sm:$0xff]
    %v407 = vld [vmem:[#allocation6 + $0x1d0] sm:$0xff]
    %v408 = vld [vmem:[#allocation6 + $0x1d8] sm:$0xff]
    %v409 = vld [vmem:[#allocation6 + $0x1e0] sm:$0xff]
    %v410 = vld [vmem:[#allocation6 + $0x1e8] sm:$0xff]
    %v411 = vld [vmem:[#allocation6 + $0x1f0] sm:$0xff]
    %v412 = vld [vmem:[#allocation6 + $0x1f8] sm:$0xff]
    %413 = vmatprep.subr.mxu0 %v410
    %414 = vmatpush1.msra.mxu0 %v409
    %415 = vmatprep.subr.mxu0 %v406
    %416 = vmatpush1.msra.mxu0 %v405
    %417 = vmatprep.subr.mxu0 %v402
    %418 = vmatpush1.msra.mxu0 %v401
    %419 = vmatprep.subr.mxu0 %v398
    %420 = vmatpush1.msra.mxu0 %v397
    %421 = vmatprep.subr.mxu0 %v394
    %422 = vmatpush1.msra.mxu0 %v393
    %423 = vmatprep.subr.mxu0 %v390
    %424 = vmatpush1.msra.mxu0 %v389
    %425 = vmatprep.subr.mxu0 %v386
    %426 = vmatpush1.msra.mxu0 %v385
    %427 = vmatprep.subr.mxu0 %v382
    %428 = vmatpush1.msra.mxu0 %v381
    %429 = vmatprep.subr.mxu0 %v378
    %430 = vmatpush1.msra.mxu0 %v377
    %431 = vmatprep.subr.mxu0 %v374
    %432 = vmatpush1.msra.mxu0 %v373
    %433 = vmatprep.subr.mxu0 %v370
    %434 = vmatpush1.msra.mxu0 %v369
    %435 = vmatprep.subr.mxu0 %v366
    %436 = vmatpush1.msra.mxu0 %v365
    %437 = vmatprep.subr.mxu0 %v362
    %438 = vmatpush1.msra.mxu0 %v361
    %439 = vmatprep.subr.mxu0 %v358
    %440 = vmatpush1.msra.mxu0 %v357
    %441 = vmatprep.subr.mxu0 %v354
    %442 = vmatpush1.msra.mxu0 %v353
    %443 = vmatprep.subr.mxu0 %v350
    %444 = vmatpush1.msra.mxu0 %v349
    %445 = vmatprep.subr.mxu0 0.0
    %446 = vmatpush2.msra.mxu0 0.0
    %447 = vmatprep.subr.mxu0 0.0
    %448 = vmatpush2.msra.mxu0 0.0
    %449 = vmatprep.subr.mxu0 0.0
    %450 = vmatpush2.msra.mxu0 0.0
    %451 = vmatprep.subr.mxu0 0.0
    %452 = vmatpush2.msra.mxu0 0.0
    %453 = vmatprep.subr.mxu0 0.0
    %454 = vmatpush2.msra.mxu0 0.0
    %455 = vmatprep.subr.mxu0 0.0
    %456 = vmatpush2.msra.mxu0 0.0
    %457 = vmatprep.subr.mxu0 0.0
    %458 = vmatpush2.msra.mxu0 0.0
    %459 = vmatprep.subr.mxu0 0.0
    %460 = vmatpush2.msra.mxu0 0.0
    %461 = vmatprep.subr.mxu0 0.0
    %462 = vmatpush2.msra.mxu0 0.0
    %463 = vmatprep.subr.mxu0 0.0
    %464 = vmatpush2.msra.mxu0 0.0
    %465 = vmatprep.subr.mxu0 0.0
    %466 = vmatpush2.msra.mxu0 0.0
    %467 = vmatprep.subr.mxu0 0.0
    %468 = vmatpush2.msra.mxu0 0.0
    %469 = vmatprep.subr.mxu0 0.0
    %470 = vmatpush2.msra.mxu0 0.0
    %471 = vmatprep.subr.mxu0 0.0
    %472 = vmatpush2.msra.mxu0 0.0
    %473 = vmatprep.subr.mxu0 0.0
    %474 = vmatpush2.msra.mxu0 0.0
    %475 = vmatprep.subr.mxu0 0.0
    %476 = vmatpush2.msra.mxu0 0.0
    %477 = vmatprep.mubr.f32.mxu0 0.0
    %478 = vmatmul.mubr.f32.gmra.mxu0 0.0
    %v479 = vpop.f32.mrf.mxu0
    %v480 = vadd.f32 0.0, %v479
    %v481 = vpop.f32.mrf.mxu0
    %v482 = vadd.f32 0.0, %v481
    %483 = vdwg.mxu0
    %484 = vmatprep.subr.mxu0 %v412
    %485 = vmatpush1.msra.mxu0 %v411
    %486 = vmatprep.subr.mxu0 %v408
    %487 = vmatpush1.msra.mxu0 %v407
    %488 = vmatprep.subr.mxu0 %v404
    %489 = vmatpush1.msra.mxu0 %v403
    %490 = vmatprep.subr.mxu0 %v400
    %491 = vmatpush1.msra.mxu0 %v399
    %492 = vmatprep.subr.mxu0 %v396
    %493 = vmatpush1.msra.mxu0 %v395
    %494 = vmatprep.subr.mxu0 %v392
    %495 = vmatpush1.msra.mxu0 %v391
    %496 = vmatprep.subr.mxu0 %v388
    %497 = vmatpush1.msra.mxu0 %v387
    %498 = vmatprep.subr.mxu0 %v384
    %499 = vmatpush1.msra.mxu0 %v383
    %500 = vmatprep.subr.mxu0 %v380
    %501 = vmatpush1.msra.mxu0 %v379
    %502 = vmatprep.subr.mxu0 %v376
    %503 = vmatpush1.msra.mxu0 %v375
    %504 = vmatprep.subr.mxu0 %v372
    %505 = vmatpush1.msra.mxu0 %v371
    %506 = vmatprep.subr.mxu0 %v368
    %507 = vmatpush1.msra.mxu0 %v367
    %508 = vmatprep.subr.mxu0 %v364
    %509 = vmatpush1.msra.mxu0 %v363
    %510 = vmatprep.subr.mxu0 %v360
    %511 = vmatpush1.msra.mxu0 %v359
    %512 = vmatprep.subr.mxu0 %v356
    %513 = vmatpush1.msra.mxu0 %v355
    %514 = vmatprep.subr.mxu0 %v352
    %515 = vmatpush1.msra.mxu0 %v351
    %516 = vmatprep.subr.mxu0 0.0
    %517 = vmatpush2.msra.mxu0 0.0
    %518 = vmatprep.subr.mxu0 0.0
    %519 = vmatpush2.msra.mxu0 0.0
    %520 = vmatprep.subr.mxu0 0.0
    %521 = vmatpush2.msra.mxu0 0.0
    %522 = vmatprep.subr.mxu0 0.0
    %523 = vmatpush2.msra.mxu0 0.0
    %524 = vmatprep.subr.mxu0 0.0
    %525 = vmatpush2.msra.mxu0 0.0
    %526 = vmatprep.subr.mxu0 0.0
    %527 = vmatpush2.msra.mxu0 0.0
    %528 = vmatprep.subr.mxu0 0.0
    %529 = vmatpush2.msra.mxu0 0.0
    %530 = vmatprep.subr.mxu0 0.0
    %531 = vmatpush2.msra.mxu0 0.0
    %532 = vmatprep.subr.mxu0 0.0
    %533 = vmatpush2.msra.mxu0 0.0
    %534 = vmatprep.subr.mxu0 0.0
    %535 = vmatpush2.msra.mxu0 0.0
    %536 = vmatprep.subr.mxu0 0.0
    %537 = vmatpush2.msra.mxu0 0.0
    %538 = vmatprep.subr.mxu0 0.0
    %539 = vmatpush2.msra.mxu0 0.0
    %540 = vmatprep.subr.mxu0 0.0
    %541 = vmatpush2.msra.mxu0 0.0
    %542 = vmatprep.subr.mxu0 0.0
    %543 = vmatpush2.msra.mxu0 0.0
    %544 = vmatprep.subr.mxu0 0.0
    %545 = vmatpush2.msra.mxu0 0.0
    %546 = vmatprep.subr.mxu0 0.0
    %547 = vmatpush2.msra.mxu0 0.0
    %548 = vmatprep.mubr.f32.mxu0 0.0
    %549 = vmatmul.mubr.f32.gmra.mxu0 0.0
    %v550 = vpop.f32.mrf.mxu0
    %v551 = vadd.f32 0.0, %v550
    %v552 = vpop.f32.mrf.mxu0
    %v553 = vadd.f32 0.0, %v552
    %554 = vdwg.mxu0
    %v555 = vadd.f32 %v345, %v480
    %v556 = vadd.f32 %v346, %v482
    %v557 = vadd.f32 %v347, %v551
    %v558 = vadd.f32 %v348, %v553
    %v559 = vmul.f32 %v555, 0.5
    %v560 = vtanh.pop %v559
    %v561 = vmul.f32 %v560, 0.5
    %v562 = vadd.f32 %v561, 0.5
    %v563 = vmul.f32 %v556, 0.5
    %v564 = vtanh.pop %v563
    %v565 = vmul.f32 %v564, 0.5
    %v566 = vadd.f32 %v565, 0.5
    %v567 = vtanh.pop %v557
    %v568 = vmul.f32 %v558, 0.5
    %v569 = vtanh.pop %v568
    %v570 = vmul.f32 %v569, 0.5
    %v571 = vadd.f32 %v570, 0.5
    %v572 = vmul.f32 %v566, 0.0
    %v573 = vmul.f32 %v562, %v567
    %v574 = vadd.f32 %v572, %v573
    %v575 = vtanh.pop %v574
    %v576 = vmul.f32 %v571, %v575
    %v577 = vld [vmem:[#allocation8] sm:$0xff]
    %v578 = vld [vmem:[#allocation8 + $0x8] sm:$0xff]
    %v579 = vld [vmem:[#allocation8 + $0x10] sm:$0xff]
    %v580 = vld [vmem:[#allocation8 + $0x18] sm:$0xff]
    %v581 = vld [vmem:[#allocation8 + $0x20] sm:$0xff]
    %v582 = vld [vmem:[#allocation8 + $0x28] sm:$0xff]
    %v583 = vld [vmem:[#allocation8 + $0x30] sm:$0xff]
    %v584 = vld [vmem:[#allocation8 + $0x38] sm:$0xff]
    %v585 = vld [vmem:[#allocation8 + $0x40] sm:$0xff]
    %v586 = vld [vmem:[#allocation8 + $0x48] sm:$0xff]
    %v587 = vld [vmem:[#allocation8 + $0x50] sm:$0xff]
    %v588 = vld [vmem:[#allocation8 + $0x58] sm:$0xff]
    %v589 = vld [vmem:[#allocation8 + $0x60] sm:$0xff]
    %v590 = vld [vmem:[#allocation8 + $0x68] sm:$0xff]
    %v591 = vld [vmem:[#allocation8 + $0x70] sm:$0xff]
    %v592 = vld [vmem:[#allocation8 + $0x78] sm:$0xff]
    %v593 = vld [vmem:[#allocation8 + $0x80] sm:$0xff]
    %v594 = vld [vmem:[#allocation8 + $0x88] sm:$0xff]
    %v595 = vld [vmem:[#allocation8 + $0x90] sm:$0xff]
    %v596 = vld [vmem:[#allocation8 + $0x98] sm:$0xff]
    %v597 = vld [vmem:[#allocation8 + $0xa0] sm:$0xff]
    %v598 = vld [vmem:[#allocation8 + $0xa8] sm:$0xff]
    %v599 = vld [vmem:[#allocation8 + $0xb0] sm:$0xff]
    %v600 = vld [vmem:[#allocation8 + $0xb8] sm:$0xff]
    %v601 = vld [vmem:[#allocation8 + $0xc0] sm:$0xff]
    %v602 = vld [vmem:[#allocation8 + $0xc8] sm:$0xff]
    %v603 = vld [vmem:[#allocation8 + $0xd0] sm:$0xff]
    %v604 = vld [vmem:[#allocation8 + $0xd8] sm:$0xff]
    %v605 = vld [vmem:[#allocation8 + $0xe0] sm:$0xff]
    %v606 = vld [vmem:[#allocation8 + $0xe8] sm:$0xff]
    %v607 = vld [vmem:[#allocation8 + $0xf0] sm:$0xff]
    %v608 = vld [vmem:[#allocation8 + $0xf8] sm:$0xff]
    %v609 = vld [vmem:[#allocation8 + $0x100] sm:$0xff]
    %v610 = vld [vmem:[#allocation8 + $0x108] sm:$0xff]
    %v611 = vld [vmem:[#allocation8 + $0x110] sm:$0xff]
    %v612 = vld [vmem:[#allocation8 + $0x118] sm:$0xff]
    %v613 = vld [vmem:[#allocation8 + $0x120] sm:$0xff]
    %v614 = vld [vmem:[#allocation8 + $0x128] sm:$0xff]
    %v615 = vld [vmem:[#allocation8 + $0x130] sm:$0xff]
    %v616 = vld [vmem:[#allocation8 + $0x138] sm:$0xff]
    %v617 = vld [vmem:[#allocation8 + $0x140] sm:$0xff]
    %v618 = vld [vmem:[#allocation8 + $0x148] sm:$0xff]
    %v619 = vld [vmem:[#allocation8 + $0x150] sm:$0xff]
    %v620 = vld [vmem:[#allocation8 + $0x158] sm:$0xff]
    %v621 = vld [vmem:[#allocation8 + $0x160] sm:$0xff]
    %v622 = vld [vmem:[#allocation8 + $0x168] sm:$0xff]
    %v623 = vld [vmem:[#allocation8 + $0x170] sm:$0xff]
    %v624 = vld [vmem:[#allocation8 + $0x178] sm:$0xff]
    %v625 = vld [vmem:[#allocation8 + $0x180] sm:$0xff]
    %v626 = vld [vmem:[#allocation8 + $0x188] sm:$0xff]
    %v627 = vld [vmem:[#allocation8 + $0x190] sm:$0xff]
    %v628 = vld [vmem:[#allocation8 + $0x198] sm:$0xff]
    %v629 = vld [vmem:[#allocation8 + $0x1a0] sm:$0xff]
    %v630 = vld [vmem:[#allocation8 + $0x1a8] sm:$0xff]
    %v631 = vld [vmem:[#allocation8 + $0x1b0] sm:$0xff]
    %v632 = vld [vmem:[#allocation8 + $0x1b8] sm:$0xff]
    %v633 = vld [vmem:[#allocation8 + $0x1c0] sm:$0xff]
    %v634 = vld [vmem:[#allocation8 + $0x1c8] sm:$0xff]
    %v635 = vld [vmem:[#allocation8 + $0x1d0] sm:$0xff]
    %v636 = vld [vmem:[#allocation8 + $0x1d8] sm:$0xff]
    %v637 = vld [vmem:[#allocation8 + $0x1e0] sm:$0xff]
    %v638 = vld [vmem:[#allocation8 + $0x1e8] sm:$0xff]
    %v639 = vld [vmem:[#allocation8 + $0x1f0] sm:$0xff]
    %v640 = vld [vmem:[#allocation8 + $0x1f8] sm:$0xff]
    %v641 = vld [vmem:[#allocation8 + $0x200] sm:$0xff]
    %v642 = vld [vmem:[#allocation8 + $0x208] sm:$0xff]
    %v643 = vld [vmem:[#allocation8 + $0x210] sm:$0xff]
    %v644 = vld [vmem:[#allocation8 + $0x218] sm:$0xff]
    %v645 = vld [vmem:[#allocation8 + $0x220] sm:$0xff]
    %v646 = vld [vmem:[#allocation8 + $0x228] sm:$0xff]
    %v647 = vld [vmem:[#allocation8 + $0x230] sm:$0xff]
    %v648 = vld [vmem:[#allocation8 + $0x238] sm:$0xff]
    %v649 = vld [vmem:[#allocation8 + $0x240] sm:$0xff]
    %v650 = vld [vmem:[#allocation8 + $0x248] sm:$0xff]
    %v651 = vld [vmem:[#allocation8 + $0x250] sm:$0xff]
    %v652 = vld [vmem:[#allocation8 + $0x258] sm:$0xff]
    %v653 = vld [vmem:[#allocation8 + $0x260] sm:$0xff]
    %v654 = vld [vmem:[#allocation8 + $0x268] sm:$0xff]
    %v655 = vld [vmem:[#allocation8 + $0x270] sm:$0xff]
    %v656 = vld [vmem:[#allocation8 + $0x278] sm:$0xff]
    %v657 = vld [vmem:[#allocation8 + $0x280] sm:$0xff]
    %v658 = vld [vmem:[#allocation8 + $0x288] sm:$0xff]
    %v659 = vld [vmem:[#allocation8 + $0x290] sm:$0xff]
    %v660 = vld [vmem:[#allocation8 + $0x298] sm:$0xff]
    %v661 = vld [vmem:[#allocation8 + $0x2a0] sm:$0xff]
    %v662 = vld [vmem:[#allocation8 + $0x2a8] sm:$0xff]
    %v663 = vld [vmem:[#allocation8 + $0x2b0] sm:$0xff]
    %v664 = vld [vmem:[#allocation8 + $0x2b8] sm:$0xff]
    %v665 = vld [vmem:[#allocation8 + $0x2c0] sm:$0xff]
    %v666 = vld [vmem:[#allocation8 + $0x2c8] sm:$0xff]
    %v667 = vld [vmem:[#allocation8 + $0x2d0] sm:$0xff]
    %v668 = vld [vmem:[#allocation8 + $0x2d8] sm:$0xff]
    %v669 = vld [vmem:[#allocation8 + $0x2e0] sm:$0xff]
    %v670 = vld [vmem:[#allocation8 + $0x2e8] sm:$0xff]
    %v671 = vld [vmem:[#allocation8 + $0x2f0] sm:$0xff]
    %v672 = vld [vmem:[#allocation8 + $0x2f8] sm:$0xff]
    %v673 = vld [vmem:[#allocation8 + $0x300] sm:$0xff]
    %v674 = vld [vmem:[#allocation8 + $0x308] sm:$0xff]
    %v675 = vld [vmem:[#allocation8 + $0x310] sm:$0xff]
    %v676 = vld [vmem:[#allocation8 + $0x318] sm:$0xff]
    %v677 = vld [vmem:[#allocation8 + $0x320] sm:$0xff]
    %v678 = vld [vmem:[#allocation8 + $0x328] sm:$0xff]
    %v679 = vld [vmem:[#allocation8 + $0x330] sm:$0xff]
    %v680 = vld [vmem:[#allocation8 + $0x338] sm:$0xff]
    %v681 = vld [vmem:[#allocation8 + $0x340] sm:$0xff]
    %v682 = vld [vmem:[#allocation8 + $0x348] sm:$0xff]
    %v683 = vld [vmem:[#allocation8 + $0x350] sm:$0xff]
    %v684 = vld [vmem:[#allocation8 + $0x358] sm:$0xff]
    %v685 = vld [vmem:[#allocation8 + $0x360] sm:$0xff]
    %v686 = vld [vmem:[#allocation8 + $0x368] sm:$0xff]
    %v687 = vld [vmem:[#allocation8 + $0x370] sm:$0xff]
    %v688 = vld [vmem:[#allocation8 + $0x378] sm:$0xff]
    %v689 = vld [vmem:[#allocation8 + $0x380] sm:$0xff]
    %v690 = vld [vmem:[#allocation8 + $0x388] sm:$0xff]
    %v691 = vld [vmem:[#allocation8 + $0x390] sm:$0xff]
    %v692 = vld [vmem:[#allocation8 + $0x398] sm:$0xff]
    %v693 = vld [vmem:[#allocation8 + $0x3a0] sm:$0xff]
    %v694 = vld [vmem:[#allocation8 + $0x3a8] sm:$0xff]
    %v695 = vld [vmem:[#allocation8 + $0x3b0] sm:$0xff]
    %v696 = vld [vmem:[#allocation8 + $0x3b8] sm:$0xff]
    %v697 = vld [vmem:[#allocation8 + $0x3c0] sm:$0xff]
    %v698 = vld [vmem:[#allocation8 + $0x3c8] sm:$0xff]
    %v699 = vld [vmem:[#allocation8 + $0x3d0] sm:$0xff]
    %v700 = vld [vmem:[#allocation8 + $0x3d8] sm:$0xff]
    %v701 = vld [vmem:[#allocation8 + $0x3e0] sm:$0xff]
    %v702 = vld [vmem:[#allocation8 + $0x3e8] sm:$0xff]
    %v703 = vld [vmem:[#allocation8 + $0x3f0] sm:$0xff]
    %v704 = vld [vmem:[#allocation8 + $0x3f8] sm:$0xff]
    %705 = vmatprep.subr.mxu0 %v638
    %706 = vmatpush1.msra.mxu0 %v637
    %707 = vmatprep.subr.mxu0 %v634
    %708 = vmatpush1.msra.mxu0 %v633
    %709 = vmatprep.subr.mxu0 %v630
    %710 = vmatpush1.msra.mxu0 %v629
    %711 = vmatprep.subr.mxu0 %v626
    %712 = vmatpush1.msra.mxu0 %v625
    %713 = vmatprep.subr.mxu0 %v622
    %714 = vmatpush1.msra.mxu0 %v621
    %715 = vmatprep.subr.mxu0 %v618
    %716 = vmatpush1.msra.mxu0 %v617
    %717 = vmatprep.subr.mxu0 %v614
    %718 = vmatpush1.msra.mxu0 %v613
    %719 = vmatprep.subr.mxu0 %v610
    %720 = vmatpush1.msra.mxu0 %v609
    %721 = vmatprep.subr.mxu0 %v606
    %722 = vmatpush1.msra.mxu0 %v605
    %723 = vmatprep.subr.mxu0 %v602
    %724 = vmatpush1.msra.mxu0 %v601
    %725 = vmatprep.subr.mxu0 %v598
    %726 = vmatpush1.msra.mxu0 %v597
    %727 = vmatprep.subr.mxu0 %v594
    %728 = vmatpush1.msra.mxu0 %v593
    %729 = vmatprep.subr.mxu0 %v590
    %730 = vmatpush1.msra.mxu0 %v589
    %731 = vmatprep.subr.mxu0 %v586
    %732 = vmatpush1.msra.mxu0 %v585
    %733 = vmatprep.subr.mxu0 %v582
    %734 = vmatpush1.msra.mxu0 %v581
    %735 = vmatprep.subr.mxu0 %v578
    %736 = vmatpush1.msra.mxu0 %v577
    %737 = vmatprep.subr.mxu0 %v702
    %738 = vmatpush2.msra.mxu0 %v701
    %739 = vmatprep.subr.mxu0 %v698
    %740 = vmatpush2.msra.mxu0 %v697
    %741 = vmatprep.subr.mxu0 %v694
    %742 = vmatpush2.msra.mxu0 %v693
    %743 = vmatprep.subr.mxu0 %v690
    %744 = vmatpush2.msra.mxu0 %v689
    %745 = vmatprep.subr.mxu0 %v686
    %746 = vmatpush2.msra.mxu0 %v685
    %747 = vmatprep.subr.mxu0 %v682
    %748 = vmatpush2.msra.mxu0 %v681
    %749 = vmatprep.subr.mxu0 %v678
    %750 = vmatpush2.msra.mxu0 %v677
    %751 = vmatprep.subr.mxu0 %v674
    %752 = vmatpush2.msra.mxu0 %v673
    %753 = vmatprep.subr.mxu0 %v670
    %754 = vmatpush2.msra.mxu0 %v669
    %755 = vmatprep.subr.mxu0 %v666
    %756 = vmatpush2.msra.mxu0 %v665
    %757 = vmatprep.subr.mxu0 %v662
    %758 = vmatpush2.msra.mxu0 %v661
    %759 = vmatprep.subr.mxu0 %v658
    %760 = vmatpush2.msra.mxu0 %v657
    %761 = vmatprep.subr.mxu0 %v654
    %762 = vmatpush2.msra.mxu0 %v653
    %763 = vmatprep.subr.mxu0 %v650
    %764 = vmatpush2.msra.mxu0 %v649
    %765 = vmatprep.subr.mxu0 %v646
    %766 = vmatpush2.msra.mxu0 %v645
    %767 = vmatprep.subr.mxu0 %v642
    %768 = vmatpush2.msra.mxu0 %v641
    %769 = vmatprep.mubr.f32.mxu0 0.0
    %770 = vmatmul.mubr.f32.gmra.mxu0 %v576
    %v771 = vpop.f32.mrf.mxu0
    %v772 = vadd.f32 %v306, %v771
    %v773 = vpop.f32.mrf.mxu0
    %v774 = vadd.f32 %v310, %v773
    %775 = vdwg.mxu0
    %776 = vmatprep.subr.mxu0 %v640
    %777 = vmatpush1.msra.mxu0 %v639
    %778 = vmatprep.subr.mxu0 %v636
    %779 = vmatpush1.msra.mxu0 %v635
    %780 = vmatprep.subr.mxu0 %v632
    %781 = vmatpush1.msra.mxu0 %v631
    %782 = vmatprep.subr.mxu0 %v628
    %783 = vmatpush1.msra.mxu0 %v627
    %784 = vmatprep.subr.mxu0 %v624
    %785 = vmatpush1.msra.mxu0 %v623
    %786 = vmatprep.subr.mxu0 %v620
    %787 = vmatpush1.msra.mxu0 %v619
    %788 = vmatprep.subr.mxu0 %v616
    %789 = vmatpush1.msra.mxu0 %v615
    %790 = vmatprep.subr.mxu0 %v612
    %791 = vmatpush1.msra.mxu0 %v611
    %792 = vmatprep.subr.mxu0 %v608
    %793 = vmatpush1.msra.mxu0 %v607
    %794 = vmatprep.subr.mxu0 %v604
    %795 = vmatpush1.msra.mxu0 %v603
    %796 = vmatprep.subr.mxu0 %v600
    %797 = vmatpush1.msra.mxu0 %v599
    %798 = vmatprep.subr.mxu0 %v596
    %799 = vmatpush1.msra.mxu0 %v595
    %800 = vmatprep.subr.mxu0 %v592
    %801 = vmatpush1.msra.mxu0 %v591
    %802 = vmatprep.subr.mxu0 %v588
    %803 = vmatpush1.msra.mxu0 %v587
    %804 = vmatprep.subr.mxu0 %v584
    %805 = vmatpush1.msra.mxu0 %v583
    %806 = vmatprep.subr.mxu0 %v580
    %807 = vmatpush1.msra.mxu0 %v579
    %808 = vmatprep.subr.mxu0 %v704
    %809 = vmatpush2.msra.mxu0 %v703
    %810 = vmatprep.subr.mxu0 %v700
    %811 = vmatpush2.msra.mxu0 %v699
    %812 = vmatprep.subr.mxu0 %v696
    %813 = vmatpush2.msra.mxu0 %v695
    %814 = vmatprep.subr.mxu0 %v692
    %815 = vmatpush2.msra.mxu0 %v691
    %816 = vmatprep.subr.mxu0 %v688
    %817 = vmatpush2.msra.mxu0 %v687
    %818 = vmatprep.subr.mxu0 %v684
    %819 = vmatpush2.msra.mxu0 %v683
    %820 = vmatprep.subr.mxu0 %v680
    %821 = vmatpush2.msra.mxu0 %v679
    %822 = vmatprep.subr.mxu0 %v676
    %823 = vmatpush2.msra.mxu0 %v675
    %824 = vmatprep.subr.mxu0 %v672
    %825 = vmatpush2.msra.mxu0 %v671
    %826 = vmatprep.subr.mxu0 %v668
    %827 = vmatpush2.msra.mxu0 %v667
    %828 = vmatprep.subr.mxu0 %v664
    %829 = vmatpush2.msra.mxu0 %v663
    %830 = vmatprep.subr.mxu0 %v660
    %831 = vmatpush2.msra.mxu0 %v659
    %832 = vmatprep.subr.mxu0 %v656
    %833 = vmatpush2.msra.mxu0 %v655
    %834 = vmatprep.subr.mxu0 %v652
    %835 = vmatpush2.msra.mxu0 %v651
    %836 = vmatprep.subr.mxu0 %v648
    %837 = vmatpush2.msra.mxu0 %v647
    %838 = vmatprep.subr.mxu0 %v644
    %839 = vmatpush2.msra.mxu0 %v643
    %840 = vmatprep.mubr.f32.mxu0 0.0
    %841 = vmatmul.mubr.f32.gmra.mxu0 %v576
    %v842 = vpop.f32.mrf.mxu0
    %v843 = vadd.f32 %v314, %v842
    %v844 = vpop.f32.mrf.mxu0
    %v845 = vadd.f32 %v318, %v844
    %846 = vdwg.mxu0
    %v847 = vmul.f32 %v772, 0.5
    %v848 = vtanh.pop %v847
    %v849 = vmul.f32 %v848, 0.5
    %v850 = vadd.f32 %v849, 0.5
    %v851 = vmul.f32 %v774, 0.5
    %v852 = vtanh.pop %v851
    %v853 = vmul.f32 %v852, 0.5
    %v854 = vadd.f32 %v853, 0.5
    %v855 = vtanh.pop %v843
    %v856 = vmul.f32 %v845, 0.5
    %v857 = vtanh.pop %v856
    %v858 = vmul.f32 %v857, 0.5
    %v859 = vadd.f32 %v858, 0.5
    %v860 = vmul.f32 %v854, 0.0
    %v861 = vmul.f32 %v850, %v855
    %v862 = vadd.f32 %v860, %v861
    %v863 = vtanh.pop %v862
    %v864 = vmul.f32 %v859, %v863
    %v865 = vld [vmem:[#allocation9] sm:$0xff]
    %v866 = vld [vmem:[#allocation9 + $0x8] sm:$0xff]
    %v867 = vld [vmem:[#allocation9 + $0x10] sm:$0xff]
    %v868 = vld [vmem:[#allocation9 + $0x18] sm:$0xff]
    %v869 = vld [vmem:[#allocation9 + $0x20] sm:$0xff]
    %v870 = vld [vmem:[#allocation9 + $0x28] sm:$0xff]
    %v871 = vld [vmem:[#allocation9 + $0x30] sm:$0xff]
    %v872 = vld [vmem:[#allocation9 + $0x38] sm:$0xff]
    %v873 = vld [vmem:[#allocation9 + $0x40] sm:$0xff]
    %v874 = vld [vmem:[#allocation9 + $0x48] sm:$0xff]
    %v875 = vld [vmem:[#allocation9 + $0x50] sm:$0xff]
    %v876 = vld [vmem:[#allocation9 + $0x58] sm:$0xff]
    %v877 = vld [vmem:[#allocation9 + $0x60] sm:$0xff]
    %v878 = vld [vmem:[#allocation9 + $0x68] sm:$0xff]
    %v879 = vld [vmem:[#allocation9 + $0x70] sm:$0xff]
    %v880 = vld [vmem:[#allocation9 + $0x78] sm:$0xff]
    %v881 = vld [vmem:[#allocation9 + $0x80] sm:$0xff]
    %v882 = vld [vmem:[#allocation9 + $0x88] sm:$0xff]
    %v883 = vld [vmem:[#allocation9 + $0x90] sm:$0xff]
    %v884 = vld [vmem:[#allocation9 + $0x98] sm:$0xff]
    %v885 = vld [vmem:[#allocation9 + $0xa0] sm:$0xff]
    %v886 = vld [vmem:[#allocation9 + $0xa8] sm:$0xff]
    %v887 = vld [vmem:[#allocation9 + $0xb0] sm:$0xff]
    %v888 = vld [vmem:[#allocation9 + $0xb8] sm:$0xff]
    %v889 = vld [vmem:[#allocation9 + $0xc0] sm:$0xff]
    %v890 = vld [vmem:[#allocation9 + $0xc8] sm:$0xff]
    %v891 = vld [vmem:[#allocation9 + $0xd0] sm:$0xff]
    %v892 = vld [vmem:[#allocation9 + $0xd8] sm:$0xff]
    %v893 = vld [vmem:[#allocation9 + $0xe0] sm:$0xff]
    %v894 = vld [vmem:[#allocation9 + $0xe8] sm:$0xff]
    %v895 = vld [vmem:[#allocation9 + $0xf0] sm:$0xff]
    %v896 = vld [vmem:[#allocation9 + $0xf8] sm:$0xff]
    %v897 = vld [vmem:[#allocation9 + $0x100] sm:$0xff]
    %v898 = vld [vmem:[#allocation9 + $0x108] sm:$0xff]
    %v899 = vld [vmem:[#allocation9 + $0x110] sm:$0xff]
    %v900 = vld [vmem:[#allocation9 + $0x118] sm:$0xff]
    %v901 = vld [vmem:[#allocation9 + $0x120] sm:$0xff]
    %v902 = vld [vmem:[#allocation9 + $0x128] sm:$0xff]
    %v903 = vld [vmem:[#allocation9 + $0x130] sm:$0xff]
    %v904 = vld [vmem:[#allocation9 + $0x138] sm:$0xff]
    %v905 = vld [vmem:[#allocation9 + $0x140] sm:$0xff]
    %v906 = vld [vmem:[#allocation9 + $0x148] sm:$0xff]
    %v907 = vld [vmem:[#allocation9 + $0x150] sm:$0xff]
    %v908 = vld [vmem:[#allocation9 + $0x158] sm:$0xff]
    %v909 = vld [vmem:[#allocation9 + $0x160] sm:$0xff]
    %v910 = vld [vmem:[#allocation9 + $0x168] sm:$0xff]
    %v911 = vld [vmem:[#allocation9 + $0x170] sm:$0xff]
    %v912 = vld [vmem:[#allocation9 + $0x178] sm:$0xff]
    %v913 = vld [vmem:[#allocation9 + $0x180] sm:$0xff]
    %v914 = vld [vmem:[#allocation9 + $0x188] sm:$0xff]
    %v915 = vld [vmem:[#allocation9 + $0x190] sm:$0xff]
    %v916 = vld [vmem:[#allocation9 + $0x198] sm:$0xff]
    %v917 = vld [vmem:[#allocation9 + $0x1a0] sm:$0xff]
    %v918 = vld [vmem:[#allocation9 + $0x1a8] sm:$0xff]
    %v919 = vld [vmem:[#allocation9 + $0x1b0] sm:$0xff]
    %v920 = vld [vmem:[#allocation9 + $0x1b8] sm:$0xff]
    %v921 = vld [vmem:[#allocation9 + $0x1c0] sm:$0xff]
    %v922 = vld [vmem:[#allocation9 + $0x1c8] sm:$0xff]
    %v923 = vld [vmem:[#allocation9 + $0x1d0] sm:$0xff]
    %v924 = vld [vmem:[#allocation9 + $0x1d8] sm:$0xff]
    %v925 = vld [vmem:[#allocation9 + $0x1e0] sm:$0xff]
    %v926 = vld [vmem:[#allocation9 + $0x1e8] sm:$0xff]
    %v927 = vld [vmem:[#allocation9 + $0x1f0] sm:$0xff]
    %v928 = vld [vmem:[#allocation9 + $0x1f8] sm:$0xff]
    %v929 = vld [vmem:[#allocation9 + $0x200] sm:$0xff]
    %v930 = vld [vmem:[#allocation9 + $0x208] sm:$0xff]
    %v931 = vld [vmem:[#allocation9 + $0x210] sm:$0xff]
    %v932 = vld [vmem:[#allocation9 + $0x218] sm:$0xff]
    %v933 = vld [vmem:[#allocation9 + $0x220] sm:$0xff]
    %v934 = vld [vmem:[#allocation9 + $0x228] sm:$0xff]
    %v935 = vld [vmem:[#allocation9 + $0x230] sm:$0xff]
    %v936 = vld [vmem:[#allocation9 + $0x238] sm:$0xff]
    %v937 = vld [vmem:[#allocation9 + $0x240] sm:$0xff]
    %v938 = vld [vmem:[#allocation9 + $0x248] sm:$0xff]
    %v939 = vld [vmem:[#allocation9 + $0x250] sm:$0xff]
    %v940 = vld [vmem:[#allocation9 + $0x258] sm:$0xff]
    %v941 = vld [vmem:[#allocation9 + $0x260] sm:$0xff]
    %v942 = vld [vmem:[#allocation9 + $0x268] sm:$0xff]
    %v943 = vld [vmem:[#allocation9 + $0x270] sm:$0xff]
    %v944 = vld [vmem:[#allocation9 + $0x278] sm:$0xff]
    %v945 = vld [vmem:[#allocation9 + $0x280] sm:$0xff]
    %v946 = vld [vmem:[#allocation9 + $0x288] sm:$0xff]
    %v947 = vld [vmem:[#allocation9 + $0x290] sm:$0xff]
    %v948 = vld [vmem:[#allocation9 + $0x298] sm:$0xff]
    %v949 = vld [vmem:[#allocation9 + $0x2a0] sm:$0xff]
    %v950 = vld [vmem:[#allocation9 + $0x2a8] sm:$0xff]
    %v951 = vld [vmem:[#allocation9 + $0x2b0] sm:$0xff]
    %v952 = vld [vmem:[#allocation9 + $0x2b8] sm:$0xff]
    %v953 = vld [vmem:[#allocation9 + $0x2c0] sm:$0xff]
    %v954 = vld [vmem:[#allocation9 + $0x2c8] sm:$0xff]
    %v955 = vld [vmem:[#allocation9 + $0x2d0] sm:$0xff]
    %v956 = vld [vmem:[#allocation9 + $0x2d8] sm:$0xff]
    %v957 = vld [vmem:[#allocation9 + $0x2e0] sm:$0xff]
    %v958 = vld [vmem:[#allocation9 + $0x2e8] sm:$0xff]
    %v959 = vld [vmem:[#allocation9 + $0x2f0] sm:$0xff]
    %v960 = vld [vmem:[#allocation9 + $0x2f8] sm:$0xff]
    %v961 = vld [vmem:[#allocation9 + $0x300] sm:$0xff]
    %v962 = vld [vmem:[#allocation9 + $0x308] sm:$0xff]
    %v963 = vld [vmem:[#allocation9 + $0x310] sm:$0xff]
    %v964 = vld [vmem:[#allocation9 + $0x318] sm:$0xff]
    %v965 = vld [vmem:[#allocation9 + $0x320] sm:$0xff]
    %v966 = vld [vmem:[#allocation9 + $0x328] sm:$0xff]
    %v967 = vld [vmem:[#allocation9 + $0x330] sm:$0xff]
    %v968 = vld [vmem:[#allocation9 + $0x338] sm:$0xff]
    %v969 = vld [vmem:[#allocation9 + $0x340] sm:$0xff]
    %v970 = vld [vmem:[#allocation9 + $0x348] sm:$0xff]
    %v971 = vld [vmem:[#allocation9 + $0x350] sm:$0xff]
    %v972 = vld [vmem:[#allocation9 + $0x358] sm:$0xff]
    %v973 = vld [vmem:[#allocation9 + $0x360] sm:$0xff]
    %v974 = vld [vmem:[#allocation9 + $0x368] sm:$0xff]
    %v975 = vld [vmem:[#allocation9 + $0x370] sm:$0xff]
    %v976 = vld [vmem:[#allocation9 + $0x378] sm:$0xff]
    %v977 = vld [vmem:[#allocation9 + $0x380] sm:$0xff]
    %v978 = vld [vmem:[#allocation9 + $0x388] sm:$0xff]
    %v979 = vld [vmem:[#allocation9 + $0x390] sm:$0xff]
    %v980 = vld [vmem:[#allocation9 + $0x398] sm:$0xff]
    %v981 = vld [vmem:[#allocation9 + $0x3a0] sm:$0xff]
    %v982 = vld [vmem:[#allocation9 + $0x3a8] sm:$0xff]
    %v983 = vld [vmem:[#allocation9 + $0x3b0] sm:$0xff]
    %v984 = vld [vmem:[#allocation9 + $0x3b8] sm:$0xff]
    %v985 = vld [vmem:[#allocation9 + $0x3c0] sm:$0xff]
    %v986 = vld [vmem:[#allocation9 + $0x3c8] sm:$0xff]
    %v987 = vld [vmem:[#allocation9 + $0x3d0] sm:$0xff]
    %v988 = vld [vmem:[#allocation9 + $0x3d8] sm:$0xff]
    %v989 = vld [vmem:[#allocation9 + $0x3e0] sm:$0xff]
    %v990 = vld [vmem:[#allocation9 + $0x3e8] sm:$0xff]
    %v991 = vld [vmem:[#allocation9 + $0x3f0] sm:$0xff]
    %v992 = vld [vmem:[#allocation9 + $0x3f8] sm:$0xff]
    %993 = vmatprep.subr.mxu0 %v926
    %994 = vmatpush1.msra.mxu0 %v925
    %995 = vmatprep.subr.mxu0 %v922
    %996 = vmatpush1.msra.mxu0 %v921
    %997 = vmatprep.subr.mxu0 %v918
    %998 = vmatpush1.msra.mxu0 %v917
    %999 = vmatprep.subr.mxu0 %v914
    %1000 = vmatpush1.msra.mxu0 %v913
    %1001 = vmatprep.subr.mxu0 %v910
    %1002 = vmatpush1.msra.mxu0 %v909
    %1003 = vmatprep.subr.mxu0 %v906
    %1004 = vmatpush1.msra.mxu0 %v905
    %1005 = vmatprep.subr.mxu0 %v902
    %1006 = vmatpush1.msra.mxu0 %v901
    %1007 = vmatprep.subr.mxu0 %v898
    %1008 = vmatpush1.msra.mxu0 %v897
    %1009 = vmatprep.subr.mxu0 %v894
    %1010 = vmatpush1.msra.mxu0 %v893
    %1011 = vmatprep.subr.mxu0 %v890
    %1012 = vmatpush1.msra.mxu0 %v889
    %1013 = vmatprep.subr.mxu0 %v886
    %1014 = vmatpush1.msra.mxu0 %v885
    %1015 = vmatprep.subr.mxu0 %v882
    %1016 = vmatpush1.msra.mxu0 %v881
    %1017 = vmatprep.subr.mxu0 %v878
    %1018 = vmatpush1.msra.mxu0 %v877
    %1019 = vmatprep.subr.mxu0 %v874
    %1020 = vmatpush1.msra.mxu0 %v873
    %1021 = vmatprep.subr.mxu0 %v870
    %1022 = vmatpush1.msra.mxu0 %v869
    %1023 = vmatprep.subr.mxu0 %v866
    %1024 = vmatpush1.msra.mxu0 %v865
    %1025 = vmatprep.subr.mxu0 %v990
    %1026 = vmatpush2.msra.mxu0 %v989
    %1027 = vmatprep.subr.mxu0 %v986
    %1028 = vmatpush2.msra.mxu0 %v985
    %1029 = vmatprep.subr.mxu0 %v982
    %1030 = vmatpush2.msra.mxu0 %v981
    %1031 = vmatprep.subr.mxu0 %v978
    %1032 = vmatpush2.msra.mxu0 %v977
    %1033 = vmatprep.subr.mxu0 %v974
    %1034 = vmatpush2.msra.mxu0 %v973
    %1035 = vmatprep.subr.mxu0 %v970
    %1036 = vmatpush2.msra.mxu0 %v969
    %1037 = vmatprep.subr.mxu0 %v966
    %1038 = vmatpush2.msra.mxu0 %v965
    %1039 = vmatprep.subr.mxu0 %v962
    %1040 = vmatpush2.msra.mxu0 %v961
    %1041 = vmatprep.subr.mxu0 %v958
    %1042 = vmatpush2.msra.mxu0 %v957
    %1043 = vmatprep.subr.mxu0 %v954
    %1044 = vmatpush2.msra.mxu0 %v953
    %1045 = vmatprep.subr.mxu0 %v950
    %1046 = vmatpush2.msra.mxu0 %v949
    %1047 = vmatprep.subr.mxu0 %v946
    %1048 = vmatpush2.msra.mxu0 %v945
    %1049 = vmatprep.subr.mxu0 %v942
    %1050 = vmatpush2.msra.mxu0 %v941
    %1051 = vmatprep.subr.mxu0 %v938
    %1052 = vmatpush2.msra.mxu0 %v937
    %1053 = vmatprep.subr.mxu0 %v934
    %1054 = vmatpush2.msra.mxu0 %v933
    %1055 = vmatprep.subr.mxu0 %v930
    %1056 = vmatpush2.msra.mxu0 %v929
    %1057 = vmatprep.mubr.f32.mxu0 0.0
    %1058 = vmatmul.mubr.f32.gmra.mxu0 %v864
    %v1059 = vpop.f32.mrf.mxu0
    %v1060 = vadd.f32 %v328, %v1059
    %v1061 = vpop.f32.mrf.mxu0
    %v1062 = vadd.f32 %v332, %v1061
    %1063 = vdwg.mxu0
    %1064 = vmatprep.subr.mxu0 %v928
    %1065 = vmatpush1.msra.mxu0 %v927
    %1066 = vmatprep.subr.mxu0 %v924
    %1067 = vmatpush1.msra.mxu0 %v923
    %1068 = vmatprep.subr.mxu0 %v920
    %1069 = vmatpush1.msra.mxu0 %v919
    %1070 = vmatprep.subr.mxu0 %v916
    %1071 = vmatpush1.msra.mxu0 %v915
    %1072 = vmatprep.subr.mxu0 %v912
    %1073 = vmatpush1.msra.mxu0 %v911
    %1074 = vmatprep.subr.mxu0 %v908
    %1075 = vmatpush1.msra.mxu0 %v907
    %1076 = vmatprep.subr.mxu0 %v904
    %1077 = vmatpush1.msra.mxu0 %v903
    %1078 = vmatprep.subr.mxu0 %v900
    %1079 = vmatpush1.msra.mxu0 %v899
    %1080 = vmatprep.subr.mxu0 %v896
    %1081 = vmatpush1.msra.mxu0 %v895
    %1082 = vmatprep.subr.mxu0 %v892
    %1083 = vmatpush1.msra.mxu0 %v891
    %1084 = vmatprep.subr.mxu0 %v888
    %1085 = vmatpush1.msra.mxu0 %v887
    %1086 = vmatprep.subr.mxu0 %v884
    %1087 = vmatpush1.msra.mxu0 %v883
    %1088 = vmatprep.subr.mxu0 %v880
    %1089 = vmatpush1.msra.mxu0 %v879
    %1090 = vmatprep.subr.mxu0 %v876
    %1091 = vmatpush1.msra.mxu0 %v875
    %1092 = vmatprep.subr.mxu0 %v872
    %1093 = vmatpush1.msra.mxu0 %v871
    %1094 = vmatprep.subr.mxu0 %v868
    %1095 = vmatpush1.msra.mxu0 %v867
    %1096 = vmatprep.subr.mxu0 %v992
    %1097 = vmatpush2.msra.mxu0 %v991
    %1098 = vmatprep.subr.mxu0 %v988
    %1099 = vmatpush2.msra.mxu0 %v987
    %1100 = vmatprep.subr.mxu0 %v984
    %1101 = vmatpush2.msra.mxu0 %v983
    %1102 = vmatprep.subr.mxu0 %v980
    %1103 = vmatpush2.msra.mxu0 %v979
    %1104 = vmatprep.subr.mxu0 %v976
    %1105 = vmatpush2.msra.mxu0 %v975
    %1106 = vmatprep.subr.mxu0 %v972
    %1107 = vmatpush2.msra.mxu0 %v971
    %1108 = vmatprep.subr.mxu0 %v968
    %1109 = vmatpush2.msra.mxu0 %v967
    %1110 = vmatprep.subr.mxu0 %v964
    %1111 = vmatpush2.msra.mxu0 %v963
    %1112 = vmatprep.subr.mxu0 %v960
    %1113 = vmatpush2.msra.mxu0 %v959
    %1114 = vmatprep.subr.mxu0 %v956
    %1115 = vmatpush2.msra.mxu0 %v955
    %1116 = vmatprep.subr.mxu0 %v952
    %1117 = vmatpush2.msra.mxu0 %v951
    %1118 = vmatprep.subr.mxu0 %v948
    %1119 = vmatpush2.msra.mxu0 %v947
    %1120 = vmatprep.subr.mxu0 %v944
    %1121 = vmatpush2.msra.mxu0 %v943
    %1122 = vmatprep.subr.mxu0 %v940
    %1123 = vmatpush2.msra.mxu0 %v939
    %1124 = vmatprep.subr.mxu0 %v936
    %1125 = vmatpush2.msra.mxu0 %v935
    %1126 = vmatprep.subr.mxu0 %v932
    %1127 = vmatpush2.msra.mxu0 %v931
    %1128 = vmatprep.mubr.f32.mxu0 0.0
    %1129 = vmatmul.mubr.f32.gmra.mxu0 %v864
    %v1130 = vpop.f32.mrf.mxu0
    %v1131 = vadd.f32 %v336, %v1130
    %v1132 = vpop.f32.mrf.mxu0
    %v1133 = vadd.f32 %v340, %v1132
    %1134 = vdwg.mxu0
    %v1135 = vmul.f32 %v1060, 0.5
    %v1136 = vtanh.pop %v1135
    %v1137 = vmul.f32 %v1136, 0.5
    %v1138 = vadd.f32 %v1137, 0.5
    %v1139 = vmul.f32 %v1062, 0.5
    %v1140 = vtanh.pop %v1139
    %v1141 = vmul.f32 %v1140, 0.5
    %v1142 = vadd.f32 %v1141, 0.5
    %v1143 = vtanh.pop %v1131
    %v1144 = vmul.f32 %v1133, 0.5
    %v1145 = vtanh.pop %v1144
    %v1146 = vmul.f32 %v1145, 0.5
    %v1147 = vadd.f32 %v1146, 0.5
    %v1148 = vmul.f32 %v1142, 0.0
    %v1149 = vmul.f32 %v1138, %v1143
    %v1150 = vadd.f32 %v1148, %v1149
    %v1151 = vtanh.pop %v1150
    %v1152 = vmul.f32 %v1147, %v1151
    %v1153 = vld [vmem:[#allocation2] sm:$0xc]
    %v1154 = vld [vmem:[#allocation2 + $0x8] sm:$0xc]
    %v1155 = vld [vmem:[#allocation2 + $0x10] sm:$0xc]
    %v1156 = vld [vmem:[#allocation2 + $0x18] sm:$0xc]
    %1157 = vmatprep.subr.mxu0 %v410
    %1158 = vmatpush1.msra.mxu0 %v409
    %1159 = vmatprep.subr.mxu0 %v406
    %1160 = vmatpush1.msra.mxu0 %v405
    %1161 = vmatprep.subr.mxu0 %v402
    %1162 = vmatpush1.msra.mxu0 %v401
    %1163 = vmatprep.subr.mxu0 %v398
    %1164 = vmatpush1.msra.mxu0 %v397
    %1165 = vmatprep.subr.mxu0 %v394
    %1166 = vmatpush1.msra.mxu0 %v393
    %1167 = vmatprep.subr.mxu0 %v390
    %1168 = vmatpush1.msra.mxu0 %v389
    %1169 = vmatprep.subr.mxu0 %v386
    %1170 = vmatpush1.msra.mxu0 %v385
    %1171 = vmatprep.subr.mxu0 %v382
    %1172 = vmatpush1.msra.mxu0 %v381
    %1173 = vmatprep.subr.mxu0 %v378
    %1174 = vmatpush1.msra.mxu0 %v377
    %1175 = vmatprep.subr.mxu0 %v374
    %1176 = vmatpush1.msra.mxu0 %v373
    %1177 = vmatprep.subr.mxu0 %v370
    %1178 = vmatpush1.msra.mxu0 %v369
    %1179 = vmatprep.subr.mxu0 %v366
    %1180 = vmatpush1.msra.mxu0 %v365
    %1181 = vmatprep.subr.mxu0 %v362
    %1182 = vmatpush1.msra.mxu0 %v361
    %1183 = vmatprep.subr.mxu0 %v358
    %1184 = vmatpush1.msra.mxu0 %v357
    %1185 = vmatprep.subr.mxu0 %v354
    %1186 = vmatpush1.msra.mxu0 %v353
    %1187 = vmatprep.subr.mxu0 %v350
    %1188 = vmatpush1.msra.mxu0 %v349
    %1189 = vmatprep.subr.mxu0 0.0
    %1190 = vmatpush2.msra.mxu0 0.0
    %1191 = vmatprep.subr.mxu0 0.0
    %1192 = vmatpush2.msra.mxu0 0.0
    %1193 = vmatprep.subr.mxu0 0.0
    %1194 = vmatpush2.msra.mxu0 0.0
    %1195 = vmatprep.subr.mxu0 0.0
    %1196 = vmatpush2.msra.mxu0 0.0
    %1197 = vmatprep.subr.mxu0 0.0
    %1198 = vmatpush2.msra.mxu0 0.0
    %1199 = vmatprep.subr.mxu0 0.0
    %1200 = vmatpush2.msra.mxu0 0.0
    %1201 = vmatprep.subr.mxu0 0.0
    %1202 = vmatpush2.msra.mxu0 0.0
    %1203 = vmatprep.subr.mxu0 0.0
    %1204 = vmatpush2.msra.mxu0 0.0
    %1205 = vmatprep.subr.mxu0 0.0
    %1206 = vmatpush2.msra.mxu0 0.0
    %1207 = vmatprep.subr.mxu0 0.0
    %1208 = vmatpush2.msra.mxu0 0.0
    %1209 = vmatprep.subr.mxu0 0.0
    %1210 = vmatpush2.msra.mxu0 0.0
    %1211 = vmatprep.subr.mxu0 0.0
    %1212 = vmatpush2.msra.mxu0 0.0
    %1213 = vmatprep.subr.mxu0 0.0
    %1214 = vmatpush2.msra.mxu0 0.0
    %1215 = vmatprep.subr.mxu0 0.0
    %1216 = vmatpush2.msra.mxu0 0.0
    %1217 = vmatprep.subr.mxu0 0.0
    %1218 = vmatpush2.msra.mxu0 0.0
    %1219 = vmatprep.subr.mxu0 0.0
    %1220 = vmatpush2.msra.mxu0 0.0
    %1221 = vmatprep.mubr.f32.mxu0 0.0
    %1222 = vmatmul.mubr.f32.gmra.mxu0 %v576
    %v1223 = vpop.f32.mrf.mxu0
    %v1224 = vadd.f32 0.0, %v1223
    %v1225 = vpop.f32.mrf.mxu0
    %v1226 = vadd.f32 0.0, %v1225
    %1227 = vdwg.mxu0
    %1228 = vmatprep.subr.mxu0 %v412
    %1229 = vmatpush1.msra.mxu0 %v411
    %1230 = vmatprep.subr.mxu0 %v408
    %1231 = vmatpush1.msra.mxu0 %v407
    %1232 = vmatprep.subr.mxu0 %v404
    %1233 = vmatpush1.msra.mxu0 %v403
    %1234 = vmatprep.subr.mxu0 %v400
    %1235 = vmatpush1.msra.mxu0 %v399
    %1236 = vmatprep.subr.mxu0 %v396
    %1237 = vmatpush1.msra.mxu0 %v395
    %1238 = vmatprep.subr.mxu0 %v392
    %1239 = vmatpush1.msra.mxu0 %v391
    %1240 = vmatprep.subr.mxu0 %v388
    %1241 = vmatpush1.msra.mxu0 %v387
    %1242 = vmatprep.subr.mxu0 %v384
    %1243 = vmatpush1.msra.mxu0 %v383
    %1244 = vmatprep.subr.mxu0 %v380
    %1245 = vmatpush1.msra.mxu0 %v379
    %1246 = vmatprep.subr.mxu0 %v376
    %1247 = vmatpush1.msra.mxu0 %v375
    %1248 = vmatprep.subr.mxu0 %v372
    %1249 = vmatpush1.msra.mxu0 %v371
    %1250 = vmatprep.subr.mxu0 %v368
    %1251 = vmatpush1.msra.mxu0 %v367
    %1252 = vmatprep.subr.mxu0 %v364
    %1253 = vmatpush1.msra.mxu0 %v363
    %1254 = vmatprep.subr.mxu0 %v360
    %1255 = vmatpush1.msra.mxu0 %v359
    %1256 = vmatprep.subr.mxu0 %v356
    %1257 = vmatpush1.msra.mxu0 %v355
    %1258 = vmatprep.subr.mxu0 %v352
    %1259 = vmatpush1.msra.mxu0 %v351
    %1260 = vmatprep.subr.mxu0 0.0
    %1261 = vmatpush2.msra.mxu0 0.0
    %1262 = vmatprep.subr.mxu0 0.0
    %1263 = vmatpush2.msra.mxu0 0.0
    %1264 = vmatprep.subr.mxu0 0.0
    %1265 = vmatpush2.msra.mxu0 0.0
    %1266 = vmatprep.subr.mxu0 0.0
    %1267 = vmatpush2.msra.mxu0 0.0
    %1268 = vmatprep.subr.mxu0 0.0
    %1269 = vmatpush2.msra.mxu0 0.0
    %1270 = vmatprep.subr.mxu0 0.0
    %1271 = vmatpush2.msra.mxu0 0.0
    %1272 = vmatprep.subr.mxu0 0.0
    %1273 = vmatpush2.msra.mxu0 0.0
    %1274 = vmatprep.subr.mxu0 0.0
    %1275 = vmatpush2.msra.mxu0 0.0
    %1276 = vmatprep.subr.mxu0 0.0
    %1277 = vmatpush2.msra.mxu0 0.0
    %1278 = vmatprep.subr.mxu0 0.0
    %1279 = vmatpush2.msra.mxu0 0.0
    %1280 = vmatprep.subr.mxu0 0.0
    %1281 = vmatpush2.msra.mxu0 0.0
    %1282 = vmatprep.subr.mxu0 0.0
    %1283 = vmatpush2.msra.mxu0 0.0
    %1284 = vmatprep.subr.mxu0 0.0
    %1285 = vmatpush2.msra.mxu0 0.0
    %1286 = vmatprep.subr.mxu0 0.0
    %1287 = vmatpush2.msra.mxu0 0.0
    %1288 = vmatprep.subr.mxu0 0.0
    %1289 = vmatpush2.msra.mxu0 0.0
    %1290 = vmatprep.subr.mxu0 0.0
    %1291 = vmatpush2.msra.mxu0 0.0
    %1292 = vmatprep.mubr.f32.mxu0 0.0
    %1293 = vmatmul.mubr.f32.gmra.mxu0 %v576
    %v1294 = vpop.f32.mrf.mxu0
    %v1295 = vadd.f32 0.0, %v1294
    %v1296 = vpop.f32.mrf.mxu0
    %v1297 = vadd.f32 0.0, %v1296
    %1298 = vdwg.mxu0
    %v1303 = vrot.slane %v1224, 6
    %v1304 = vrot.slane %v1226, 6
    %v1305 = vrot.slane %v1295, 6
    %v1306 = vrot.slane %v1297, 6
    %v1311 = vadd.f32 %v1153, %v1303
    %v1312 = vadd.f32 %v1154, %v1304
    %v1313 = vadd.f32 %v1155, %v1305
    %v1314 = vadd.f32 %v1156, %v1306
    %v1315 = vmul.f32 %v1311, 0.5
    %v1316 = vtanh.pop %v1315
    %v1317 = vmul.f32 %v1316, 0.5
    %v1318 = vadd.f32 %v1317, 0.5
    %v1319 = vmul.f32 %v1312, 0.5
    %v1320 = vtanh.pop %v1319
    %v1321 = vmul.f32 %v1320, 0.5
    %v1322 = vadd.f32 %v1321, 0.5
    %v1323 = vtanh.pop %v1313
    %v1324 = vmul.f32 %v1314, 0.5
    %v1325 = vtanh.pop %v1324
    %v1326 = vmul.f32 %v1325, 0.5
    %v1327 = vadd.f32 %v1326, 0.5
    %v1329 = vrot.slane %v574, 6
    %v1331 = vmul.f32 %v1322, %v1329
    %v1332 = vmul.f32 %v1318, %v1323
    %v1333 = vadd.f32 %v1331, %v1332
    %v1334 = vtanh.pop %v1333
    %v1335 = vmul.f32 %v1327, %v1334
    %v1337 = vrot.slane %v864, 6
    %v1339 = vrot.slane %v1335, 2
    %v1340 = vrot.slane %v1337, 2
    %1343 = vmatprep.subr.mxu0 %v638
    %1344 = vmatpush1.msra.mxu0 %v637
    %1345 = vmatprep.subr.mxu0 %v634
    %1346 = vmatpush1.msra.mxu0 %v633
    %1347 = vmatprep.subr.mxu0 %v630
    %1348 = vmatpush1.msra.mxu0 %v629
    %1349 = vmatprep.subr.mxu0 %v626
    %1350 = vmatpush1.msra.mxu0 %v625
    %1351 = vmatprep.subr.mxu0 %v622
    %1352 = vmatpush1.msra.mxu0 %v621
    %1353 = vmatprep.subr.mxu0 %v618
    %1354 = vmatpush1.msra.mxu0 %v617
    %1355 = vmatprep.subr.mxu0 %v614
    %1356 = vmatpush1.msra.mxu0 %v613
    %1357 = vmatprep.subr.mxu0 %v610
    %1358 = vmatpush1.msra.mxu0 %v609
    %1359 = vmatprep.subr.mxu0 %v606
    %1360 = vmatpush1.msra.mxu0 %v605
    %1361 = vmatprep.subr.mxu0 %v602
    %1362 = vmatpush1.msra.mxu0 %v601
    %1363 = vmatprep.subr.mxu0 %v598
    %1364 = vmatpush1.msra.mxu0 %v597
    %1365 = vmatprep.subr.mxu0 %v594
    %1366 = vmatpush1.msra.mxu0 %v593
    %1367 = vmatprep.subr.mxu0 %v590
    %1368 = vmatpush1.msra.mxu0 %v589
    %1369 = vmatprep.subr.mxu0 %v586
    %1370 = vmatpush1.msra.mxu0 %v585
    %1371 = vmatprep.subr.mxu0 %v582
    %1372 = vmatpush1.msra.mxu0 %v581
    %1373 = vmatprep.subr.mxu0 %v578
    %1374 = vmatpush1.msra.mxu0 %v577
    %1375 = vmatprep.subr.mxu0 %v702
    %1376 = vmatpush2.msra.mxu0 %v701
    %1377 = vmatprep.subr.mxu0 %v698
    %1378 = vmatpush2.msra.mxu0 %v697
    %1379 = vmatprep.subr.mxu0 %v694
    %1380 = vmatpush2.msra.mxu0 %v693
    %1381 = vmatprep.subr.mxu0 %v690
    %1382 = vmatpush2.msra.mxu0 %v689
    %1383 = vmatprep.subr.mxu0 %v686
    %1384 = vmatpush2.msra.mxu0 %v685
    %1385 = vmatprep.subr.mxu0 %v682
    %1386 = vmatpush2.msra.mxu0 %v681
    %1387 = vmatprep.subr.mxu0 %v678
    %1388 = vmatpush2.msra.mxu0 %v677
    %1389 = vmatprep.subr.mxu0 %v674
    %1390 = vmatpush2.msra.mxu0 %v673
    %1391 = vmatprep.subr.mxu0 %v670
    %1392 = vmatpush2.msra.mxu0 %v669
    %1393 = vmatprep.subr.mxu0 %v666
    %1394 = vmatpush2.msra.mxu0 %v665
    %1395 = vmatprep.subr.mxu0 %v662
    %1396 = vmatpush2.msra.mxu0 %v661
    %1397 = vmatprep.subr.mxu0 %v658
    %1398 = vmatpush2.msra.mxu0 %v657
    %1399 = vmatprep.subr.mxu0 %v654
    %1400 = vmatpush2.msra.mxu0 %v653
    %1401 = vmatprep.subr.mxu0 %v650
    %1402 = vmatpush2.msra.mxu0 %v649
    %1403 = vmatprep.subr.mxu0 %v646
    %1404 = vmatpush2.msra.mxu0 %v645
    %1405 = vmatprep.subr.mxu0 %v642
    %1406 = vmatpush2.msra.mxu0 %v641
    %1407 = vmatprep.mubr.f32.mxu0 %v1340
    %1408 = vmatmul.mubr.f32.gmra.mxu0 %v1339
    %v1409 = vpop.f32.mrf.mxu0
    %v1410 = vadd.f32 %v306, %v1409
    %v1411 = vpop.f32.mrf.mxu0
    %v1412 = vadd.f32 %v310, %v1411
    %1413 = vdwg.mxu0
    %1414 = vmatprep.subr.mxu0 %v640
    %1415 = vmatpush1.msra.mxu0 %v639
    %1416 = vmatprep.subr.mxu0 %v636
    %1417 = vmatpush1.msra.mxu0 %v635
    %1418 = vmatprep.subr.mxu0 %v632
    %1419 = vmatpush1.msra.mxu0 %v631
    %1420 = vmatprep.subr.mxu0 %v628
    %1421 = vmatpush1.msra.mxu0 %v627
    %1422 = vmatprep.subr.mxu0 %v624
    %1423 = vmatpush1.msra.mxu0 %v623
    %1424 = vmatprep.subr.mxu0 %v620
    %1425 = vmatpush1.msra.mxu0 %v619
    %1426 = vmatprep.subr.mxu0 %v616
    %1427 = vmatpush1.msra.mxu0 %v615
    %1428 = vmatprep.subr.mxu0 %v612
    %1429 = vmatpush1.msra.mxu0 %v611
    %1430 = vmatprep.subr.mxu0 %v608
    %1431 = vmatpush1.msra.mxu0 %v607
    %1432 = vmatprep.subr.mxu0 %v604
    %1433 = vmatpush1.msra.mxu0 %v603
    %1434 = vmatprep.subr.mxu0 %v600
    %1435 = vmatpush1.msra.mxu0 %v599
    %1436 = vmatprep.subr.mxu0 %v596
    %1437 = vmatpush1.msra.mxu0 %v595
    %1438 = vmatprep.subr.mxu0 %v592
    %1439 = vmatpush1.msra.mxu0 %v591
    %1440 = vmatprep.subr.mxu0 %v588
    %1441 = vmatpush1.msra.mxu0 %v587
    %1442 = vmatprep.subr.mxu0 %v584
    %1443 = vmatpush1.msra.mxu0 %v583
    %1444 = vmatprep.subr.mxu0 %v580
    %1445 = vmatpush1.msra.mxu0 %v579
    %1446 = vmatprep.subr.mxu0 %v704
    %1447 = vmatpush2.msra.mxu0 %v703
    %1448 = vmatprep.subr.mxu0 %v700
    %1449 = vmatpush2.msra.mxu0 %v699
    %1450 = vmatprep.subr.mxu0 %v696
    %1451 = vmatpush2.msra.mxu0 %v695
    %1452 = vmatprep.subr.mxu0 %v692
    %1453 = vmatpush2.msra.mxu0 %v691
    %1454 = vmatprep.subr.mxu0 %v688
    %1455 = vmatpush2.msra.mxu0 %v687
    %1456 = vmatprep.subr.mxu0 %v684
    %1457 = vmatpush2.msra.mxu0 %v683
    %1458 = vmatprep.subr.mxu0 %v680
    %1459 = vmatpush2.msra.mxu0 %v679
    %1460 = vmatprep.subr.mxu0 %v676
    %1461 = vmatpush2.msra.mxu0 %v675
    %1462 = vmatprep.subr.mxu0 %v672
    %1463 = vmatpush2.msra.mxu0 %v671
    %1464 = vmatprep.subr.mxu0 %v668
    %1465 = vmatpush2.msra.mxu0 %v667
    %1466 = vmatprep.subr.mxu0 %v664
    %1467 = vmatpush2.msra.mxu0 %v663
    %1468 = vmatprep.subr.mxu0 %v660
    %1469 = vmatpush2.msra.mxu0 %v659
    %1470 = vmatprep.subr.mxu0 %v656
    %1471 = vmatpush2.msra.mxu0 %v655
    %1472 = vmatprep.subr.mxu0 %v652
    %1473 = vmatpush2.msra.mxu0 %v651
    %1474 = vmatprep.subr.mxu0 %v648
    %1475 = vmatpush2.msra.mxu0 %v647
    %1476 = vmatprep.subr.mxu0 %v644
    %1477 = vmatpush2.msra.mxu0 %v643
    %1478 = vmatprep.mubr.f32.mxu0 %v1340
    %1479 = vmatmul.mubr.f32.gmra.mxu0 %v1339
    %v1480 = vpop.f32.mrf.mxu0
    %v1481 = vadd.f32 %v314, %v1480
    %v1482 = vpop.f32.mrf.mxu0
    %v1483 = vadd.f32 %v318, %v1482
    %1484 = vdwg.mxu0
    %v1485 = vmul.f32 %v1410, 0.5
    %v1486 = vtanh.pop %v1485
    %v1487 = vmul.f32 %v1486, 0.5
    %v1488 = vadd.f32 %v1487, 0.5
    %v1489 = vmul.f32 %v1412, 0.5
    %v1490 = vtanh.pop %v1489
    %v1491 = vmul.f32 %v1490, 0.5
    %v1492 = vadd.f32 %v1491, 0.5
    %v1493 = vtanh.pop %v1481
    %v1494 = vmul.f32 %v1483, 0.5
    %v1495 = vtanh.pop %v1494
    %v1496 = vmul.f32 %v1495, 0.5
    %v1497 = vadd.f32 %v1496, 0.5
    %v1498 = vmul.f32 %v1492, %v862
    %v1499 = vmul.f32 %v1488, %v1493
    %v1500 = vadd.f32 %v1498, %v1499
    %v1501 = vtanh.pop %v1500
    %v1502 = vmul.f32 %v1497, %v1501
    %1503 = vmatprep.subr.mxu0 %v926
    %1504 = vmatpush1.msra.mxu0 %v925
    %1505 = vmatprep.subr.mxu0 %v922
    %1506 = vmatpush1.msra.mxu0 %v921
    %1507 = vmatprep.subr.mxu0 %v918
    %1508 = vmatpush1.msra.mxu0 %v917
    %1509 = vmatprep.subr.mxu0 %v914
    %1510 = vmatpush1.msra.mxu0 %v913
    %1511 = vmatprep.subr.mxu0 %v910
    %1512 = vmatpush1.msra.mxu0 %v909
    %1513 = vmatprep.subr.mxu0 %v906
    %1514 = vmatpush1.msra.mxu0 %v905
    %1515 = vmatprep.subr.mxu0 %v902
    %1516 = vmatpush1.msra.mxu0 %v901
    %1517 = vmatprep.subr.mxu0 %v898
    %1518 = vmatpush1.msra.mxu0 %v897
    %1519 = vmatprep.subr.mxu0 %v894
    %1520 = vmatpush1.msra.mxu0 %v893
    %1521 = vmatprep.subr.mxu0 %v890
    %1522 = vmatpush1.msra.mxu0 %v889
    %1523 = vmatprep.subr.mxu0 %v886
    %1524 = vmatpush1.msra.mxu0 %v885
    %1525 = vmatprep.subr.mxu0 %v882
    %1526 = vmatpush1.msra.mxu0 %v881
    %1527 = vmatprep.subr.mxu0 %v878
    %1528 = vmatpush1.msra.mxu0 %v877
    %1529 = vmatprep.subr.mxu0 %v874
    %1530 = vmatpush1.msra.mxu0 %v873
    %1531 = vmatprep.subr.mxu0 %v870
    %1532 = vmatpush1.msra.mxu0 %v869
    %1533 = vmatprep.subr.mxu0 %v866
    %1534 = vmatpush1.msra.mxu0 %v865
    %1535 = vmatprep.subr.mxu0 %v990
    %1536 = vmatpush2.msra.mxu0 %v989
    %1537 = vmatprep.subr.mxu0 %v986
    %1538 = vmatpush2.msra.mxu0 %v985
    %1539 = vmatprep.subr.mxu0 %v982
    %1540 = vmatpush2.msra.mxu0 %v981
    %1541 = vmatprep.subr.mxu0 %v978
    %1542 = vmatpush2.msra.mxu0 %v977
    %1543 = vmatprep.subr.mxu0 %v974
    %1544 = vmatpush2.msra.mxu0 %v973
    %1545 = vmatprep.subr.mxu0 %v970
    %1546 = vmatpush2.msra.mxu0 %v969
    %1547 = vmatprep.subr.mxu0 %v966
    %1548 = vmatpush2.msra.mxu0 %v965
    %1549 = vmatprep.subr.mxu0 %v962
    %1550 = vmatpush2.msra.mxu0 %v961
    %1551 = vmatprep.subr.mxu0 %v958
    %1552 = vmatpush2.msra.mxu0 %v957
    %1553 = vmatprep.subr.mxu0 %v954
    %1554 = vmatpush2.msra.mxu0 %v953
    %1555 = vmatprep.subr.mxu0 %v950
    %1556 = vmatpush2.msra.mxu0 %v949
    %1557 = vmatprep.subr.mxu0 %v946
    %1558 = vmatpush2.msra.mxu0 %v945
    %1559 = vmatprep.subr.mxu0 %v942
    %1560 = vmatpush2.msra.mxu0 %v941
    %1561 = vmatprep.subr.mxu0 %v938
    %1562 = vmatpush2.msra.mxu0 %v937
    %1563 = vmatprep.subr.mxu0 %v934
    %1564 = vmatpush2.msra.mxu0 %v933
    %1565 = vmatprep.subr.mxu0 %v930
    %1566 = vmatpush2.msra.mxu0 %v929
    %1567 = vmatprep.mubr.f32.mxu0 %v1152
    %1568 = vmatmul.mubr.f32.gmra.mxu0 %v1502
    %v1569 = vpop.f32.mrf.mxu0
    %v1570 = vadd.f32 %v328, %v1569
    %v1571 = vpop.f32.mrf.mxu0
    %v1572 = vadd.f32 %v332, %v1571
    %1573 = vdwg.mxu0
    %1574 = vmatprep.subr.mxu0 %v928
    %1575 = vmatpush1.msra.mxu0 %v927
    %1576 = vmatprep.subr.mxu0 %v924
    %1577 = vmatpush1.msra.mxu0 %v923
    %1578 = vmatprep.subr.mxu0 %v920
    %1579 = vmatpush1.msra.mxu0 %v919
    %1580 = vmatprep.subr.mxu0 %v916
    %1581 = vmatpush1.msra.mxu0 %v915
    %1582 = vmatprep.subr.mxu0 %v912
    %1583 = vmatpush1.msra.mxu0 %v911
    %1584 = vmatprep.subr.mxu0 %v908
    %1585 = vmatpush1.msra.mxu0 %v907
    %1586 = vmatprep.subr.mxu0 %v904
    %1587 = vmatpush1.msra.mxu0 %v903
    %1588 = vmatprep.subr.mxu0 %v900
    %1589 = vmatpush1.msra.mxu0 %v899
    %1590 = vmatprep.subr.mxu0 %v896
    %1591 = vmatpush1.msra.mxu0 %v895
    %1592 = vmatprep.subr.mxu0 %v892
    %1593 = vmatpush1.msra.mxu0 %v891
    %1594 = vmatprep.subr.mxu0 %v888
    %1595 = vmatpush1.msra.mxu0 %v887
    %1596 = vmatprep.subr.mxu0 %v884
    %1597 = vmatpush1.msra.mxu0 %v883
    %1598 = vmatprep.subr.mxu0 %v880
    %1599 = vmatpush1.msra.mxu0 %v879
    %1600 = vmatprep.subr.mxu0 %v876
    %1601 = vmatpush1.msra.mxu0 %v875
    %1602 = vmatprep.subr.mxu0 %v872
    %1603 = vmatpush1.msra.mxu0 %v871
    %1604 = vmatprep.subr.mxu0 %v868
    %1605 = vmatpush1.msra.mxu0 %v867
    %1606 = vmatprep.subr.mxu0 %v992
    %1607 = vmatpush2.msra.mxu0 %v991
    %1608 = vmatprep.subr.mxu0 %v988
    %1609 = vmatpush2.msra.mxu0 %v987
    %1610 = vmatprep.subr.mxu0 %v984
    %1611 = vmatpush2.msra.mxu0 %v983
    %1612 = vmatprep.subr.mxu0 %v980
    %1613 = vmatpush2.msra.mxu0 %v979
    %1614 = vmatprep.subr.mxu0 %v976
    %1615 = vmatpush2.msra.mxu0 %v975
    %1616 = vmatprep.subr.mxu0 %v972
    %1617 = vmatpush2.msra.mxu0 %v971
    %1618 = vmatprep.subr.mxu0 %v968
    %1619 = vmatpush2.msra.mxu0 %v967
    %1620 = vmatprep.subr.mxu0 %v964
    %1621 = vmatpush2.msra.mxu0 %v963
    %1622 = vmatprep.subr.mxu0 %v960
    %1623 = vmatpush2.msra.mxu0 %v959
    %1624 = vmatprep.subr.mxu0 %v956
    %1625 = vmatpush2.msra.mxu0 %v955
    %1626 = vmatprep.subr.mxu0 %v952
    %1627 = vmatpush2.msra.mxu0 %v951
    %1628 = vmatprep.subr.mxu0 %v948
    %1629 = vmatpush2.msra.mxu0 %v947
    %1630 = vmatprep.subr.mxu0 %v944
    %1631 = vmatpush2.msra.mxu0 %v943
    %1632 = vmatprep.subr.mxu0 %v940
    %1633 = vmatpush2.msra.mxu0 %v939
    %1634 = vmatprep.subr.mxu0 %v936
    %1635 = vmatpush2.msra.mxu0 %v935
    %1636 = vmatprep.subr.mxu0 %v932
    %1637 = vmatpush2.msra.mxu0 %v931
    %1638 = vmatprep.mubr.f32.mxu0 %v1152
    %1639 = vmatmul.mubr.f32.gmra.mxu0 %v1502
    %v1640 = vpop.f32.mrf.mxu0
    %v1641 = vadd.f32 %v336, %v1640
    %v1642 = vpop.f32.mrf.mxu0
    %v1643 = vadd.f32 %v340, %v1642
    %1644 = vdwg.mxu0
    %v1645 = vmul.f32 %v1570, 0.5
    %v1646 = vtanh.pop %v1645
    %v1647 = vmul.f32 %v1646, 0.5
    %v1648 = vadd.f32 %v1647, 0.5
    %v1649 = vmul.f32 %v1572, 0.5
    %v1650 = vtanh.pop %v1649
    %v1651 = vmul.f32 %v1650, 0.5
    %v1652 = vadd.f32 %v1651, 0.5
    %v1653 = vtanh.pop %v1641
    %v1654 = vmul.f32 %v1643, 0.5
    %v1655 = vtanh.pop %v1654
    %v1656 = vmul.f32 %v1655, 0.5
    %v1657 = vadd.f32 %v1656, 0.5
    %v1658 = vmul.f32 %v1652, %v1150
    %v1659 = vmul.f32 %v1648, %v1653
    %v1660 = vadd.f32 %v1658, %v1659
    %v1661 = vtanh.pop %v1660
    %v1662 = vmul.f32 %v1657, %v1661
    %v1663 = vld [vmem:[#allocation2] sm:$0x30]
    %v1664 = vld [vmem:[#allocation2 + $0x8] sm:$0x30]
    %v1665 = vld [vmem:[#allocation2 + $0x10] sm:$0x30]
    %v1666 = vld [vmem:[#allocation2 + $0x18] sm:$0x30]
    %1667 = vmatprep.subr.mxu0 %v410
    %1668 = vmatpush1.msra.mxu0 %v409
    %1669 = vmatprep.subr.mxu0 %v406
    %1670 = vmatpush1.msra.mxu0 %v405
    %1671 = vmatprep.subr.mxu0 %v402
    %1672 = vmatpush1.msra.mxu0 %v401
    %1673 = vmatprep.subr.mxu0 %v398
    %1674 = vmatpush1.msra.mxu0 %v397
    %1675 = vmatprep.subr.mxu0 %v394
    %1676 = vmatpush1.msra.mxu0 %v393
    %1677 = vmatprep.subr.mxu0 %v390
    %1678 = vmatpush1.msra.mxu0 %v389
    %1679 = vmatprep.subr.mxu0 %v386
    %1680 = vmatpush1.msra.mxu0 %v385
    %1681 = vmatprep.subr.mxu0 %v382
    %1682 = vmatpush1.msra.mxu0 %v381
    %1683 = vmatprep.subr.mxu0 %v378
    %1684 = vmatpush1.msra.mxu0 %v377
    %1685 = vmatprep.subr.mxu0 %v374
    %1686 = vmatpush1.msra.mxu0 %v373
    %1687 = vmatprep.subr.mxu0 %v370
    %1688 = vmatpush1.msra.mxu0 %v369
    %1689 = vmatprep.subr.mxu0 %v366
    %1690 = vmatpush1.msra.mxu0 %v365
    %1691 = vmatprep.subr.mxu0 %v362
    %1692 = vmatpush1.msra.mxu0 %v361
    %1693 = vmatprep.subr.mxu0 %v358
    %1694 = vmatpush1.msra.mxu0 %v357
    %1695 = vmatprep.subr.mxu0 %v354
    %1696 = vmatpush1.msra.mxu0 %v353
    %1697 = vmatprep.subr.mxu0 %v350
    %1698 = vmatpush1.msra.mxu0 %v349
    %1699 = vmatprep.subr.mxu0 0.0
    %1700 = vmatpush2.msra.mxu0 0.0
    %1701 = vmatprep.subr.mxu0 0.0
    %1702 = vmatpush2.msra.mxu0 0.0
    %1703 = vmatprep.subr.mxu0 0.0
    %1704 = vmatpush2.msra.mxu0 0.0
    %1705 = vmatprep.subr.mxu0 0.0
    %1706 = vmatpush2.msra.mxu0 0.0
    %1707 = vmatprep.subr.mxu0 0.0
    %1708 = vmatpush2.msra.mxu0 0.0
    %1709 = vmatprep.subr.mxu0 0.0
    %1710 = vmatpush2.msra.mxu0 0.0
    %1711 = vmatprep.subr.mxu0 0.0
    %1712 = vmatpush2.msra.mxu0 0.0
    %1713 = vmatprep.subr.mxu0 0.0
    %1714 = vmatpush2.msra.mxu0 0.0
    %1715 = vmatprep.subr.mxu0 0.0
    %1716 = vmatpush2.msra.mxu0 0.0
    %1717 = vmatprep.subr.mxu0 0.0
    %1718 = vmatpush2.msra.mxu0 0.0
    %1719 = vmatprep.subr.mxu0 0.0
    %1720 = vmatpush2.msra.mxu0 0.0
    %1721 = vmatprep.subr.mxu0 0.0
    %1722 = vmatpush2.msra.mxu0 0.0
    %1723 = vmatprep.subr.mxu0 0.0
    %1724 = vmatpush2.msra.mxu0 0.0
    %1725 = vmatprep.subr.mxu0 0.0
    %1726 = vmatpush2.msra.mxu0 0.0
    %1727 = vmatprep.subr.mxu0 0.0
    %1728 = vmatpush2.msra.mxu0 0.0
    %1729 = vmatprep.subr.mxu0 0.0
    %1730 = vmatpush2.msra.mxu0 0.0
    %1731 = vmatprep.mubr.f32.mxu0 0.0
    %1732 = vmatmul.mubr.f32.gmra.mxu0 %v1339
    %v1733 = vpop.f32.mrf.mxu0
    %v1734 = vadd.f32 0.0, %v1733
    %v1735 = vpop.f32.mrf.mxu0
    %v1736 = vadd.f32 0.0, %v1735
    %1737 = vdwg.mxu0
    %1738 = vmatprep.subr.mxu0 %v412
    %1739 = vmatpush1.msra.mxu0 %v411
    %1740 = vmatprep.subr.mxu0 %v408
    %1741 = vmatpush1.msra.mxu0 %v407
    %1742 = vmatprep.subr.mxu0 %v404
    %1743 = vmatpush1.msra.mxu0 %v403
    %1744 = vmatprep.subr.mxu0 %v400
    %1745 = vmatpush1.msra.mxu0 %v399
    %1746 = vmatprep.subr.mxu0 %v396
    %1747 = vmatpush1.msra.mxu0 %v395
    %1748 = vmatprep.subr.mxu0 %v392
    %1749 = vmatpush1.msra.mxu0 %v391
    %1750 = vmatprep.subr.mxu0 %v388
    %1751 = vmatpush1.msra.mxu0 %v387
    %1752 = vmatprep.subr.mxu0 %v384
    %1753 = vmatpush1.msra.mxu0 %v383
    %1754 = vmatprep.subr.mxu0 %v380
    %1755 = vmatpush1.msra.mxu0 %v379
    %1756 = vmatprep.subr.mxu0 %v376
    %1757 = vmatpush1.msra.mxu0 %v375
    %1758 = vmatprep.subr.mxu0 %v372
    %1759 = vmatpush1.msra.mxu0 %v371
    %1760 = vmatprep.subr.mxu0 %v368
    %1761 = vmatpush1.msra.mxu0 %v367
    %1762 = vmatprep.subr.mxu0 %v364
    %1763 = vmatpush1.msra.mxu0 %v363
    %1764 = vmatprep.subr.mxu0 %v360
    %1765 = vmatpush1.msra.mxu0 %v359
    %1766 = vmatprep.subr.mxu0 %v356
    %1767 = vmatpush1.msra.mxu0 %v355
    %1768 = vmatprep.subr.mxu0 %v352
    %1769 = vmatpush1.msra.mxu0 %v351
    %1770 = vmatprep.subr.mxu0 0.0
    %1771 = vmatpush2.msra.mxu0 0.0
    %1772 = vmatprep.subr.mxu0 0.0
    %1773 = vmatpush2.msra.mxu0 0.0
    %1774 = vmatprep.subr.mxu0 0.0
    %1775 = vmatpush2.msra.mxu0 0.0
    %1776 = vmatprep.subr.mxu0 0.0
    %1777 = vmatpush2.msra.mxu0 0.0
    %1778 = vmatprep.subr.mxu0 0.0
    %1779 = vmatpush2.msra.mxu0 0.0
    %1780 = vmatprep.subr.mxu0 0.0
    %1781 = vmatpush2.msra.mxu0 0.0
    %1782 = vmatprep.subr.mxu0 0.0
    %1783 = vmatpush2.msra.mxu0 0.0
    %1784 = vmatprep.subr.mxu0 0.0
    %1785 = vmatpush2.msra.mxu0 0.0
    %1786 = vmatprep.subr.mxu0 0.0
    %1787 = vmatpush2.msra.mxu0 0.0
    %1788 = vmatprep.subr.mxu0 0.0
    %1789 = vmatpush2.msra.mxu0 0.0
    %1790 = vmatprep.subr.mxu0 0.0
    %1791 = vmatpush2.msra.mxu0 0.0
    %1792 = vmatprep.subr.mxu0 0.0
    %1793 = vmatpush2.msra.mxu0 0.0
    %1794 = vmatprep.subr.mxu0 0.0
    %1795 = vmatpush2.msra.mxu0 0.0
    %1796 = vmatprep.subr.mxu0 0.0
    %1797 = vmatpush2.msra.mxu0 0.0
    %1798 = vmatprep.subr.mxu0 0.0
    %1799 = vmatpush2.msra.mxu0 0.0
    %1800 = vmatprep.subr.mxu0 0.0
    %1801 = vmatpush2.msra.mxu0 0.0
    %1802 = vmatprep.mubr.f32.mxu0 0.0
    %1803 = vmatmul.mubr.f32.gmra.mxu0 %v1339
    %v1804 = vpop.f32.mrf.mxu0
    %v1805 = vadd.f32 0.0, %v1804
    %v1806 = vpop.f32.mrf.mxu0
    %v1807 = vadd.f32 0.0, %v1806
    %1808 = vdwg.mxu0
    %v1813 = vrot.slane %v1734, 4
    %v1814 = vrot.slane %v1736, 4
    %v1815 = vrot.slane %v1805, 4
    %v1816 = vrot.slane %v1807, 4
    %v1821 = vadd.f32 %v1663, %v1813
    %v1822 = vadd.f32 %v1664, %v1814
    %v1823 = vadd.f32 %v1665, %v1815
    %v1824 = vadd.f32 %v1666, %v1816
    %v1825 = vmul.f32 %v1821, 0.5
    %v1826 = vtanh.pop %v1825
    %v1827 = vmul.f32 %v1826, 0.5
    %v1828 = vadd.f32 %v1827, 0.5
    %v1829 = vmul.f32 %v1822, 0.5
    %v1830 = vtanh.pop %v1829
    %v1831 = vmul.f32 %v1830, 0.5
    %v1832 = vadd.f32 %v1831, 0.5
    %v1833 = vtanh.pop %v1823
    %v1834 = vmul.f32 %v1824, 0.5
    %v1835 = vtanh.pop %v1834
    %v1836 = vmul.f32 %v1835, 0.5
    %v1837 = vadd.f32 %v1836, 0.5
    %v1839 = vrot.slane %v1333, 6
    %v1841 = vmul.f32 %v1832, %v1839
    %v1842 = vmul.f32 %v1828, %v1833
    %v1843 = vadd.f32 %v1841, %v1842
    %v1844 = vtanh.pop %v1843
    %v1845 = vmul.f32 %v1837, %v1844
    %v1847 = vrot.slane %v1502, 4
    %v1849 = vrot.slane %v1845, 4
    %v1850 = vrot.slane %v1847, 4
    %1853 = vmatprep.subr.mxu0 %v638
    %1854 = vmatpush1.msra.mxu0 %v637
    %1855 = vmatprep.subr.mxu0 %v634
    %1856 = vmatpush1.msra.mxu0 %v633
    %1857 = vmatprep.subr.mxu0 %v630
    %1858 = vmatpush1.msra.mxu0 %v629
    %1859 = vmatprep.subr.mxu0 %v626
    %1860 = vmatpush1.msra.mxu0 %v625
    %1861 = vmatprep.subr.mxu0 %v622
    %1862 = vmatpush1.msra.mxu0 %v621
    %1863 = vmatprep.subr.mxu0 %v618
    %1864 = vmatpush1.msra.mxu0 %v617
    %1865 = vmatprep.subr.mxu0 %v614
    %1866 = vmatpush1.msra.mxu0 %v613
    %1867 = vmatprep.subr.mxu0 %v610
    %1868 = vmatpush1.msra.mxu0 %v609
    %1869 = vmatprep.subr.mxu0 %v606
    %1870 = vmatpush1.msra.mxu0 %v605
    %1871 = vmatprep.subr.mxu0 %v602
    %1872 = vmatpush1.msra.mxu0 %v601
    %1873 = vmatprep.subr.mxu0 %v598
    %1874 = vmatpush1.msra.mxu0 %v597
    %1875 = vmatprep.subr.mxu0 %v594
    %1876 = vmatpush1.msra.mxu0 %v593
    %1877 = vmatprep.subr.mxu0 %v590
    %1878 = vmatpush1.msra.mxu0 %v589
    %1879 = vmatprep.subr.mxu0 %v586
    %1880 = vmatpush1.msra.mxu0 %v585
    %1881 = vmatprep.subr.mxu0 %v582
    %1882 = vmatpush1.msra.mxu0 %v581
    %1883 = vmatprep.subr.mxu0 %v578
    %1884 = vmatpush1.msra.mxu0 %v577
    %1885 = vmatprep.subr.mxu0 %v702
    %1886 = vmatpush2.msra.mxu0 %v701
    %1887 = vmatprep.subr.mxu0 %v698
    %1888 = vmatpush2.msra.mxu0 %v697
    %1889 = vmatprep.subr.mxu0 %v694
    %1890 = vmatpush2.msra.mxu0 %v693
    %1891 = vmatprep.subr.mxu0 %v690
    %1892 = vmatpush2.msra.mxu0 %v689
    %1893 = vmatprep.subr.mxu0 %v686
    %1894 = vmatpush2.msra.mxu0 %v685
    %1895 = vmatprep.subr.mxu0 %v682
    %1896 = vmatpush2.msra.mxu0 %v681
    %1897 = vmatprep.subr.mxu0 %v678
    %1898 = vmatpush2.msra.mxu0 %v677
    %1899 = vmatprep.subr.mxu0 %v674
    %1900 = vmatpush2.msra.mxu0 %v673
    %1901 = vmatprep.subr.mxu0 %v670
    %1902 = vmatpush2.msra.mxu0 %v669
    %1903 = vmatprep.subr.mxu0 %v666
    %1904 = vmatpush2.msra.mxu0 %v665
    %1905 = vmatprep.subr.mxu0 %v662
    %1906 = vmatpush2.msra.mxu0 %v661
    %1907 = vmatprep.subr.mxu0 %v658
    %1908 = vmatpush2.msra.mxu0 %v657
    %1909 = vmatprep.subr.mxu0 %v654
    %1910 = vmatpush2.msra.mxu0 %v653
    %1911 = vmatprep.subr.mxu0 %v650
    %1912 = vmatpush2.msra.mxu0 %v649
    %1913 = vmatprep.subr.mxu0 %v646
    %1914 = vmatpush2.msra.mxu0 %v645
    %1915 = vmatprep.subr.mxu0 %v642
    %1916 = vmatpush2.msra.mxu0 %v641
    %1917 = vmatprep.mubr.f32.mxu0 %v1850
    %1918 = vmatmul.mubr.f32.gmra.mxu0 %v1849
    %v1919 = vpop.f32.mrf.mxu0
    %v1920 = vadd.f32 %v306, %v1919
    %v1921 = vpop.f32.mrf.mxu0
    %v1922 = vadd.f32 %v310, %v1921
    %1923 = vdwg.mxu0
    %1924 = vmatprep.subr.mxu0 %v640
    %1925 = vmatpush1.msra.mxu0 %v639
    %1926 = vmatprep.subr.mxu0 %v636
    %1927 = vmatpush1.msra.mxu0 %v635
    %1928 = vmatprep.subr.mxu0 %v632
    %1929 = vmatpush1.msra.mxu0 %v631
    %1930 = vmatprep.subr.mxu0 %v628
    %1931 = vmatpush1.msra.mxu0 %v627
    %1932 = vmatprep.subr.mxu0 %v624
    %1933 = vmatpush1.msra.mxu0 %v623
    %1934 = vmatprep.subr.mxu0 %v620
    %1935 = vmatpush1.msra.mxu0 %v619
    %1936 = vmatprep.subr.mxu0 %v616
    %1937 = vmatpush1.msra.mxu0 %v615
    %1938 = vmatprep.subr.mxu0 %v612
    %1939 = vmatpush1.msra.mxu0 %v611
    %1940 = vmatprep.subr.mxu0 %v608
    %1941 = vmatpush1.msra.mxu0 %v607
    %1942 = vmatprep.subr.mxu0 %v604
    %1943 = vmatpush1.msra.mxu0 %v603
    %1944 = vmatprep.subr.mxu0 %v600
    %1945 = vmatpush1.msra.mxu0 %v599
    %1946 = vmatprep.subr.mxu0 %v596
    %1947 = vmatpush1.msra.mxu0 %v595
    %1948 = vmatprep.subr.mxu0 %v592
    %1949 = vmatpush1.msra.mxu0 %v591
    %1950 = vmatprep.subr.mxu0 %v588
    %1951 = vmatpush1.msra.mxu0 %v587
    %1952 = vmatprep.subr.mxu0 %v584
    %1953 = vmatpush1.msra.mxu0 %v583
    %1954 = vmatprep.subr.mxu0 %v580
    %1955 = vmatpush1.msra.mxu0 %v579
    %1956 = vmatprep.subr.mxu0 %v704
    %1957 = vmatpush2.msra.mxu0 %v703
    %1958 = vmatprep.subr.mxu0 %v700
    %1959 = vmatpush2.msra.mxu0 %v699
    %1960 = vmatprep.subr.mxu0 %v696
    %1961 = vmatpush2.msra.mxu0 %v695
    %1962 = vmatprep.subr.mxu0 %v692
    %1963 = vmatpush2.msra.mxu0 %v691
    %1964 = vmatprep.subr.mxu0 %v688
    %1965 = vmatpush2.msra.mxu0 %v687
    %1966 = vmatprep.subr.mxu0 %v684
    %1967 = vmatpush2.msra.mxu0 %v683
    %1968 = vmatprep.subr.mxu0 %v680
    %1969 = vmatpush2.msra.mxu0 %v679
    %1970 = vmatprep.subr.mxu0 %v676
    %1971 = vmatpush2.msra.mxu0 %v675
    %1972 = vmatprep.subr.mxu0 %v672
    %1973 = vmatpush2.msra.mxu0 %v671
    %1974 = vmatprep.subr.mxu0 %v668
    %1975 = vmatpush2.msra.mxu0 %v667
    %1976 = vmatprep.subr.mxu0 %v664
    %1977 = vmatpush2.msra.mxu0 %v663
    %1978 = vmatprep.subr.mxu0 %v660
    %1979 = vmatpush2.msra.mxu0 %v659
    %1980 = vmatprep.subr.mxu0 %v656
    %1981 = vmatpush2.msra.mxu0 %v655
    %1982 = vmatprep.subr.mxu0 %v652
    %1983 = vmatpush2.msra.mxu0 %v651
    %1984 = vmatprep.subr.mxu0 %v648
    %1985 = vmatpush2.msra.mxu0 %v647
    %1986 = vmatprep.subr.mxu0 %v644
    %1987 = vmatpush2.msra.mxu0 %v643
    %1988 = vmatprep.mubr.f32.mxu0 %v1850
    %1989 = vmatmul.mubr.f32.gmra.mxu0 %v1849
    %v1990 = vpop.f32.mrf.mxu0
    %v1991 = vadd.f32 %v314, %v1990
    %v1992 = vpop.f32.mrf.mxu0
    %v1993 = vadd.f32 %v318, %v1992
    %1994 = vdwg.mxu0
    %v1995 = vmul.f32 %v1920, 0.5
    %v1996 = vtanh.pop %v1995
    %v1997 = vmul.f32 %v1996, 0.5
    %v1998 = vadd.f32 %v1997, 0.5
    %v1999 = vmul.f32 %v1922, 0.5
    %v2000 = vtanh.pop %v1999
    %v2001 = vmul.f32 %v2000, 0.5
    %v2002 = vadd.f32 %v2001, 0.5
    %v2003 = vtanh.pop %v1991
    %v2004 = vmul.f32 %v1993, 0.5
    %v2005 = vtanh.pop %v2004
    %v2006 = vmul.f32 %v2005, 0.5
    %v2007 = vadd.f32 %v2006, 0.5
    %v2008 = vmul.f32 %v2002, %v1500
    %v2009 = vmul.f32 %v1998, %v2003
    %v2010 = vadd.f32 %v2008, %v2009
    %v2011 = vtanh.pop %v2010
    %v2012 = vmul.f32 %v2007, %v2011
    %2013 = vmatprep.subr.mxu0 %v926
    %2014 = vmatpush1.msra.mxu0 %v925
    %2015 = vmatprep.subr.mxu0 %v922
    %2016 = vmatpush1.msra.mxu0 %v921
    %2017 = vmatprep.subr.mxu0 %v918
    %2018 = vmatpush1.msra.mxu0 %v917
    %2019 = vmatprep.subr.mxu0 %v914
    %2020 = vmatpush1.msra.mxu0 %v913
    %2021 = vmatprep.subr.mxu0 %v910
    %2022 = vmatpush1.msra.mxu0 %v909
    %2023 = vmatprep.subr.mxu0 %v906
    %2024 = vmatpush1.msra.mxu0 %v905
    %2025 = vmatprep.subr.mxu0 %v902
    %2026 = vmatpush1.msra.mxu0 %v901
    %2027 = vmatprep.subr.mxu0 %v898
    %2028 = vmatpush1.msra.mxu0 %v897
    %2029 = vmatprep.subr.mxu0 %v894
    %2030 = vmatpush1.msra.mxu0 %v893
    %2031 = vmatprep.subr.mxu0 %v890
    %2032 = vmatpush1.msra.mxu0 %v889
    %2033 = vmatprep.subr.mxu0 %v886
    %2034 = vmatpush1.msra.mxu0 %v885
    %2035 = vmatprep.subr.mxu0 %v882
    %2036 = vmatpush1.msra.mxu0 %v881
    %2037 = vmatprep.subr.mxu0 %v878
    %2038 = vmatpush1.msra.mxu0 %v877
    %2039 = vmatprep.subr.mxu0 %v874
    %2040 = vmatpush1.msra.mxu0 %v873
    %2041 = vmatprep.subr.mxu0 %v870
    %2042 = vmatpush1.msra.mxu0 %v869
    %2043 = vmatprep.subr.mxu0 %v866
    %2044 = vmatpush1.msra.mxu0 %v865
    %2045 = vmatprep.subr.mxu0 %v990
    %2046 = vmatpush2.msra.mxu0 %v989
    %2047 = vmatprep.subr.mxu0 %v986
    %2048 = vmatpush2.msra.mxu0 %v985
    %2049 = vmatprep.subr.mxu0 %v982
    %2050 = vmatpush2.msra.mxu0 %v981
    %2051 = vmatprep.subr.mxu0 %v978
    %2052 = vmatpush2.msra.mxu0 %v977
    %2053 = vmatprep.subr.mxu0 %v974
    %2054 = vmatpush2.msra.mxu0 %v973
    %2055 = vmatprep.subr.mxu0 %v970
    %2056 = vmatpush2.msra.mxu0 %v969
    %2057 = vmatprep.subr.mxu0 %v966
    %2058 = vmatpush2.msra.mxu0 %v965
    %2059 = vmatprep.subr.mxu0 %v962
    %2060 = vmatpush2.msra.mxu0 %v961
    %2061 = vmatprep.subr.mxu0 %v958
    %2062 = vmatpush2.msra.mxu0 %v957
    %2063 = vmatprep.subr.mxu0 %v954
    %2064 = vmatpush2.msra.mxu0 %v953
    %2065 = vmatprep.subr.mxu0 %v950
    %2066 = vmatpush2.msra.mxu0 %v949
    %2067 = vmatprep.subr.mxu0 %v946
    %2068 = vmatpush2.msra.mxu0 %v945
    %2069 = vmatprep.subr.mxu0 %v942
    %2070 = vmatpush2.msra.mxu0 %v941
    %2071 = vmatprep.subr.mxu0 %v938
    %2072 = vmatpush2.msra.mxu0 %v937
    %2073 = vmatprep.subr.mxu0 %v934
    %2074 = vmatpush2.msra.mxu0 %v933
    %2075 = vmatprep.subr.mxu0 %v930
    %2076 = vmatpush2.msra.mxu0 %v929
    %2077 = vmatprep.mubr.f32.mxu0 %v1662
    %2078 = vmatmul.mubr.f32.gmra.mxu0 %v2012
    %v2079 = vpop.f32.mrf.mxu0
    %v2080 = vadd.f32 %v328, %v2079
    %v2081 = vpop.f32.mrf.mxu0
    %v2082 = vadd.f32 %v332, %v2081
    %2083 = vdwg.mxu0
    %2084 = vmatprep.subr.mxu0 %v928
    %2085 = vmatpush1.msra.mxu0 %v927
    %2086 = vmatprep.subr.mxu0 %v924
    %2087 = vmatpush1.msra.mxu0 %v923
    %2088 = vmatprep.subr.mxu0 %v920
    %2089 = vmatpush1.msra.mxu0 %v919
    %2090 = vmatprep.subr.mxu0 %v916
    %2091 = vmatpush1.msra.mxu0 %v915
    %2092 = vmatprep.subr.mxu0 %v912
    %2093 = vmatpush1.msra.mxu0 %v911
    %2094 = vmatprep.subr.mxu0 %v908
    %2095 = vmatpush1.msra.mxu0 %v907
    %2096 = vmatprep.subr.mxu0 %v904
    %2097 = vmatpush1.msra.mxu0 %v903
    %2098 = vmatprep.subr.mxu0 %v900
    %2099 = vmatpush1.msra.mxu0 %v899
    %2100 = vmatprep.subr.mxu0 %v896
    %2101 = vmatpush1.msra.mxu0 %v895
    %2102 = vmatprep.subr.mxu0 %v892
    %2103 = vmatpush1.msra.mxu0 %v891
    %2104 = vmatprep.subr.mxu0 %v888
    %2105 = vmatpush1.msra.mxu0 %v887
    %2106 = vmatprep.subr.mxu0 %v884
    %2107 = vmatpush1.msra.mxu0 %v883
    %2108 = vmatprep.subr.mxu0 %v880
    %2109 = vmatpush1.msra.mxu0 %v879
    %2110 = vmatprep.subr.mxu0 %v876
    %2111 = vmatpush1.msra.mxu0 %v875
    %2112 = vmatprep.subr.mxu0 %v872
    %2113 = vmatpush1.msra.mxu0 %v871
    %2114 = vmatprep.subr.mxu0 %v868
    %2115 = vmatpush1.msra.mxu0 %v867
    %2116 = vmatprep.subr.mxu0 %v992
    %2117 = vmatpush2.msra.mxu0 %v991
    %2118 = vmatprep.subr.mxu0 %v988
    %2119 = vmatpush2.msra.mxu0 %v987
    %2120 = vmatprep.subr.mxu0 %v984
    %2121 = vmatpush2.msra.mxu0 %v983
    %2122 = vmatprep.subr.mxu0 %v980
    %2123 = vmatpush2.msra.mxu0 %v979
    %2124 = vmatprep.subr.mxu0 %v976
    %2125 = vmatpush2.msra.mxu0 %v975
    %2126 = vmatprep.subr.mxu0 %v972
    %2127 = vmatpush2.msra.mxu0 %v971
    %2128 = vmatprep.subr.mxu0 %v968
    %2129 = vmatpush2.msra.mxu0 %v967
    %2130 = vmatprep.subr.mxu0 %v964
    %2131 = vmatpush2.msra.mxu0 %v963
    %2132 = vmatprep.subr.mxu0 %v960
    %2133 = vmatpush2.msra.mxu0 %v959
    %2134 = vmatprep.subr.mxu0 %v956
    %2135 = vmatpush2.msra.mxu0 %v955
    %2136 = vmatprep.subr.mxu0 %v952
    %2137 = vmatpush2.msra.mxu0 %v951
    %2138 = vmatprep.subr.mxu0 %v948
    %2139 = vmatpush2.msra.mxu0 %v947
    %2140 = vmatprep.subr.mxu0 %v944
    %2141 = vmatpush2.msra.mxu0 %v943
    %2142 = vmatprep.subr.mxu0 %v940
    %2143 = vmatpush2.msra.mxu0 %v939
    %2144 = vmatprep.subr.mxu0 %v936
    %2145 = vmatpush2.msra.mxu0 %v935
    %2146 = vmatprep.subr.mxu0 %v932
    %2147 = vmatpush2.msra.mxu0 %v931
    %2148 = vmatprep.mubr.f32.mxu0 %v1662
    %2149 = vmatmul.mubr.f32.gmra.mxu0 %v2012
    %v2150 = vpop.f32.mrf.mxu0
    %v2151 = vadd.f32 %v336, %v2150
    %v2152 = vpop.f32.mrf.mxu0
    %v2153 = vadd.f32 %v340, %v2152
    %2154 = vdwg.mxu0
    %v2155 = vmul.f32 %v2080, 0.5
    %v2156 = vtanh.pop %v2155
    %v2157 = vmul.f32 %v2156, 0.5
    %v2158 = vadd.f32 %v2157, 0.5
    %v2159 = vmul.f32 %v2082, 0.5
    %v2160 = vtanh.pop %v2159
    %v2161 = vmul.f32 %v2160, 0.5
    %v2162 = vadd.f32 %v2161, 0.5
    %v2163 = vtanh.pop %v2151
    %v2164 = vmul.f32 %v2153, 0.5
    %v2165 = vtanh.pop %v2164
    %v2166 = vmul.f32 %v2165, 0.5
    %v2167 = vadd.f32 %v2166, 0.5
    %v2168 = vmul.f32 %v2162, %v1660
    %v2169 = vmul.f32 %v2158, %v2163
    %v2170 = vadd.f32 %v2168, %v2169
    %v2171 = vtanh.pop %v2170
    %v2172 = vmul.f32 %v2167, %v2171
    %v2173 = vld [vmem:[#allocation2] sm:$0xc0]
    %v2174 = vld [vmem:[#allocation2 + $0x8] sm:$0xc0]
    %v2175 = vld [vmem:[#allocation2 + $0x10] sm:$0xc0]
    %v2176 = vld [vmem:[#allocation2 + $0x18] sm:$0xc0]
    %2177 = vmatprep.subr.mxu0 %v410
    %2178 = vmatpush1.msra.mxu0 %v409
    %2179 = vmatprep.subr.mxu0 %v406
    %2180 = vmatpush1.msra.mxu0 %v405
    %2181 = vmatprep.subr.mxu0 %v402
    %2182 = vmatpush1.msra.mxu0 %v401
    %2183 = vmatprep.subr.mxu0 %v398
    %2184 = vmatpush1.msra.mxu0 %v397
    %2185 = vmatprep.subr.mxu0 %v394
    %2186 = vmatpush1.msra.mxu0 %v393
    %2187 = vmatprep.subr.mxu0 %v390
    %2188 = vmatpush1.msra.mxu0 %v389
    %2189 = vmatprep.subr.mxu0 %v386
    %2190 = vmatpush1.msra.mxu0 %v385
    %2191 = vmatprep.subr.mxu0 %v382
    %2192 = vmatpush1.msra.mxu0 %v381
    %2193 = vmatprep.subr.mxu0 %v378
    %2194 = vmatpush1.msra.mxu0 %v377
    %2195 = vmatprep.subr.mxu0 %v374
    %2196 = vmatpush1.msra.mxu0 %v373
    %2197 = vmatprep.subr.mxu0 %v370
    %2198 = vmatpush1.msra.mxu0 %v369
    %2199 = vmatprep.subr.mxu0 %v366
    %2200 = vmatpush1.msra.mxu0 %v365
    %2201 = vmatprep.subr.mxu0 %v362
    %2202 = vmatpush1.msra.mxu0 %v361
    %2203 = vmatprep.subr.mxu0 %v358
    %2204 = vmatpush1.msra.mxu0 %v357
    %2205 = vmatprep.subr.mxu0 %v354
    %2206 = vmatpush1.msra.mxu0 %v353
    %2207 = vmatprep.subr.mxu0 %v350
    %2208 = vmatpush1.msra.mxu0 %v349
    %2209 = vmatprep.subr.mxu0 0.0
    %2210 = vmatpush2.msra.mxu0 0.0
    %2211 = vmatprep.subr.mxu0 0.0
    %2212 = vmatpush2.msra.mxu0 0.0
    %2213 = vmatprep.subr.mxu0 0.0
    %2214 = vmatpush2.msra.mxu0 0.0
    %2215 = vmatprep.subr.mxu0 0.0
    %2216 = vmatpush2.msra.mxu0 0.0
    %2217 = vmatprep.subr.mxu0 0.0
    %2218 = vmatpush2.msra.mxu0 0.0
    %2219 = vmatprep.subr.mxu0 0.0
    %2220 = vmatpush2.msra.mxu0 0.0
    %2221 = vmatprep.subr.mxu0 0.0
    %2222 = vmatpush2.msra.mxu0 0.0
    %2223 = vmatprep.subr.mxu0 0.0
    %2224 = vmatpush2.msra.mxu0 0.0
    %2225 = vmatprep.subr.mxu0 0.0
    %2226 = vmatpush2.msra.mxu0 0.0
    %2227 = vmatprep.subr.mxu0 0.0
    %2228 = vmatpush2.msra.mxu0 0.0
    %2229 = vmatprep.subr.mxu0 0.0
    %2230 = vmatpush2.msra.mxu0 0.0
    %2231 = vmatprep.subr.mxu0 0.0
    %2232 = vmatpush2.msra.mxu0 0.0
    %2233 = vmatprep.subr.mxu0 0.0
    %2234 = vmatpush2.msra.mxu0 0.0
    %2235 = vmatprep.subr.mxu0 0.0
    %2236 = vmatpush2.msra.mxu0 0.0
    %2237 = vmatprep.subr.mxu0 0.0
    %2238 = vmatpush2.msra.mxu0 0.0
    %2239 = vmatprep.subr.mxu0 0.0
    %2240 = vmatpush2.msra.mxu0 0.0
    %2241 = vmatprep.mubr.f32.mxu0 0.0
    %2242 = vmatmul.mubr.f32.gmra.mxu0 %v1849
    %v2243 = vpop.f32.mrf.mxu0
    %v2244 = vadd.f32 0.0, %v2243
    %v2245 = vpop.f32.mrf.mxu0
    %v2246 = vadd.f32 0.0, %v2245
    %2247 = vdwg.mxu0
    %2248 = vmatprep.subr.mxu0 %v412
    %2249 = vmatpush1.msra.mxu0 %v411
    %2250 = vmatprep.subr.mxu0 %v408
    %2251 = vmatpush1.msra.mxu0 %v407
    %2252 = vmatprep.subr.mxu0 %v404
    %2253 = vmatpush1.msra.mxu0 %v403
    %2254 = vmatprep.subr.mxu0 %v400
    %2255 = vmatpush1.msra.mxu0 %v399
    %2256 = vmatprep.subr.mxu0 %v396
    %2257 = vmatpush1.msra.mxu0 %v395
    %2258 = vmatprep.subr.mxu0 %v392
    %2259 = vmatpush1.msra.mxu0 %v391
    %2260 = vmatprep.subr.mxu0 %v388
    %2261 = vmatpush1.msra.mxu0 %v387
    %2262 = vmatprep.subr.mxu0 %v384
    %2263 = vmatpush1.msra.mxu0 %v383
    %2264 = vmatprep.subr.mxu0 %v380
    %2265 = vmatpush1.msra.mxu0 %v379
    %2266 = vmatprep.subr.mxu0 %v376
    %2267 = vmatpush1.msra.mxu0 %v375
    %2268 = vmatprep.subr.mxu0 %v372
    %2269 = vmatpush1.msra.mxu0 %v371
    %2270 = vmatprep.subr.mxu0 %v368
    %2271 = vmatpush1.msra.mxu0 %v367
    %2272 = vmatprep.subr.mxu0 %v364
    %2273 = vmatpush1.msra.mxu0 %v363
    %2274 = vmatprep.subr.mxu0 %v360
    %2275 = vmatpush1.msra.mxu0 %v359
    %2276 = vmatprep.subr.mxu0 %v356
    %2277 = vmatpush1.msra.mxu0 %v355
    %2278 = vmatprep.subr.mxu0 %v352
    %2279 = vmatpush1.msra.mxu0 %v351
    %2280 = vmatprep.subr.mxu0 0.0
    %2281 = vmatpush2.msra.mxu0 0.0
    %2282 = vmatprep.subr.mxu0 0.0
    %2283 = vmatpush2.msra.mxu0 0.0
    %2284 = vmatprep.subr.mxu0 0.0
    %2285 = vmatpush2.msra.mxu0 0.0
    %2286 = vmatprep.subr.mxu0 0.0
    %2287 = vmatpush2.msra.mxu0 0.0
    %2288 = vmatprep.subr.mxu0 0.0
    %2289 = vmatpush2.msra.mxu0 0.0
    %2290 = vmatprep.subr.mxu0 0.0
    %2291 = vmatpush2.msra.mxu0 0.0
    %2292 = vmatprep.subr.mxu0 0.0
    %2293 = vmatpush2.msra.mxu0 0.0
    %2294 = vmatprep.subr.mxu0 0.0
    %2295 = vmatpush2.msra.mxu0 0.0
    %2296 = vmatprep.subr.mxu0 0.0
    %2297 = vmatpush2.msra.mxu0 0.0
    %2298 = vmatprep.subr.mxu0 0.0
    %2299 = vmatpush2.msra.mxu0 0.0
    %2300 = vmatprep.subr.mxu0 0.0
    %2301 = vmatpush2.msra.mxu0 0.0
    %2302 = vmatprep.subr.mxu0 0.0
    %2303 = vmatpush2.msra.mxu0 0.0
    %2304 = vmatprep.subr.mxu0 0.0
    %2305 = vmatpush2.msra.mxu0 0.0
    %2306 = vmatprep.subr.mxu0 0.0
    %2307 = vmatpush2.msra.mxu0 0.0
    %2308 = vmatprep.subr.mxu0 0.0
    %2309 = vmatpush2.msra.mxu0 0.0
    %2310 = vmatprep.subr.mxu0 0.0
    %2311 = vmatpush2.msra.mxu0 0.0
    %2312 = vmatprep.mubr.f32.mxu0 0.0
    %2313 = vmatmul.mubr.f32.gmra.mxu0 %v1849
    %v2314 = vpop.f32.mrf.mxu0
    %v2315 = vadd.f32 0.0, %v2314
    %v2316 = vpop.f32.mrf.mxu0
    %v2317 = vadd.f32 0.0, %v2316
    %2318 = vdwg.mxu0
    %v2323 = vrot.slane %v2244, 2
    %v2324 = vrot.slane %v2246, 2
    %v2325 = vrot.slane %v2315, 2
    %v2326 = vrot.slane %v2317, 2
    %v2331 = vadd.f32 %v2173, %v2323
    %v2332 = vadd.f32 %v2174, %v2324
    %v2333 = vadd.f32 %v2175, %v2325
    %v2334 = vadd.f32 %v2176, %v2326
    %v2335 = vmul.f32 %v2331, 0.5
    %v2336 = vtanh.pop %v2335
    %v2337 = vmul.f32 %v2336, 0.5
    %v2338 = vadd.f32 %v2337, 0.5
    %v2339 = vmul.f32 %v2332, 0.5
    %v2340 = vtanh.pop %v2339
    %v2341 = vmul.f32 %v2340, 0.5
    %v2342 = vadd.f32 %v2341, 0.5
    %v2343 = vtanh.pop %v2333
    %v2344 = vmul.f32 %v2334, 0.5
    %v2345 = vtanh.pop %v2344
    %v2346 = vmul.f32 %v2345, 0.5
    %v2347 = vadd.f32 %v2346, 0.5
    %v2349 = vrot.slane %v1843, 6
    %v2351 = vmul.f32 %v2342, %v2349
    %v2352 = vmul.f32 %v2338, %v2343
    %v2353 = vadd.f32 %v2351, %v2352
    %v2354 = vtanh.pop %v2353
    %v2355 = vmul.f32 %v2347, %v2354
    %v2357 = vrot.slane %v2012, 2
    %v2359 = vrot.slane %v2355, 6
    %v2360 = vrot.slane %v2357, 6
    %2363 = vmatprep.subr.mxu0 %v638
    %2364 = vmatpush1.msra.mxu0 %v637
    %2365 = vmatprep.subr.mxu0 %v634
    %2366 = vmatpush1.msra.mxu0 %v633
    %2367 = vmatprep.subr.mxu0 %v630
    %2368 = vmatpush1.msra.mxu0 %v629
    %2369 = vmatprep.subr.mxu0 %v626
    %2370 = vmatpush1.msra.mxu0 %v625
    %2371 = vmatprep.subr.mxu0 %v622
    %2372 = vmatpush1.msra.mxu0 %v621
    %2373 = vmatprep.subr.mxu0 %v618
    %2374 = vmatpush1.msra.mxu0 %v617
    %2375 = vmatprep.subr.mxu0 %v614
    %2376 = vmatpush1.msra.mxu0 %v613
    %2377 = vmatprep.subr.mxu0 %v610
    %2378 = vmatpush1.msra.mxu0 %v609
    %2379 = vmatprep.subr.mxu0 %v606
    %2380 = vmatpush1.msra.mxu0 %v605
    %2381 = vmatprep.subr.mxu0 %v602
    %2382 = vmatpush1.msra.mxu0 %v601
    %2383 = vmatprep.subr.mxu0 %v598
    %2384 = vmatpush1.msra.mxu0 %v597
    %2385 = vmatprep.subr.mxu0 %v594
    %2386 = vmatpush1.msra.mxu0 %v593
    %2387 = vmatprep.subr.mxu0 %v590
    %2388 = vmatpush1.msra.mxu0 %v589
    %2389 = vmatprep.subr.mxu0 %v586
    %2390 = vmatpush1.msra.mxu0 %v585
    %2391 = vmatprep.subr.mxu0 %v582
    %2392 = vmatpush1.msra.mxu0 %v581
    %2393 = vmatprep.subr.mxu0 %v578
    %2394 = vmatpush1.msra.mxu0 %v577
    %2395 = vmatprep.subr.mxu0 %v702
    %2396 = vmatpush2.msra.mxu0 %v701
    %2397 = vmatprep.subr.mxu0 %v698
    %2398 = vmatpush2.msra.mxu0 %v697
    %2399 = vmatprep.subr.mxu0 %v694
    %2400 = vmatpush2.msra.mxu0 %v693
    %2401 = vmatprep.subr.mxu0 %v690
    %2402 = vmatpush2.msra.mxu0 %v689
    %2403 = vmatprep.subr.mxu0 %v686
    %2404 = vmatpush2.msra.mxu0 %v685
    %2405 = vmatprep.subr.mxu0 %v682
    %2406 = vmatpush2.msra.mxu0 %v681
    %2407 = vmatprep.subr.mxu0 %v678
    %2408 = vmatpush2.msra.mxu0 %v677
    %2409 = vmatprep.subr.mxu0 %v674
    %2410 = vmatpush2.msra.mxu0 %v673
    %2411 = vmatprep.subr.mxu0 %v670
    %2412 = vmatpush2.msra.mxu0 %v669
    %2413 = vmatprep.subr.mxu0 %v666
    %2414 = vmatpush2.msra.mxu0 %v665
    %2415 = vmatprep.subr.mxu0 %v662
    %2416 = vmatpush2.msra.mxu0 %v661
    %2417 = vmatprep.subr.mxu0 %v658
    %2418 = vmatpush2.msra.mxu0 %v657
    %2419 = vmatprep.subr.mxu0 %v654
    %2420 = vmatpush2.msra.mxu0 %v653
    %2421 = vmatprep.subr.mxu0 %v650
    %2422 = vmatpush2.msra.mxu0 %v649
    %2423 = vmatprep.subr.mxu0 %v646
    %2424 = vmatpush2.msra.mxu0 %v645
    %2425 = vmatprep.subr.mxu0 %v642
    %2426 = vmatpush2.msra.mxu0 %v641
    %2427 = vmatprep.mubr.f32.mxu0 %v2360
    %2428 = vmatmul.mubr.f32.gmra.mxu0 %v2359
    %v2429 = vpop.f32.mrf.mxu0
    %v2430 = vadd.f32 %v306, %v2429
    %v2431 = vpop.f32.mrf.mxu0
    %v2432 = vadd.f32 %v310, %v2431
    %2433 = vdwg.mxu0
    %2434 = vmatprep.subr.mxu0 %v640
    %2435 = vmatpush1.msra.mxu0 %v639
    %2436 = vmatprep.subr.mxu0 %v636
    %2437 = vmatpush1.msra.mxu0 %v635
    %2438 = vmatprep.subr.mxu0 %v632
    %2439 = vmatpush1.msra.mxu0 %v631
    %2440 = vmatprep.subr.mxu0 %v628
    %2441 = vmatpush1.msra.mxu0 %v627
    %2442 = vmatprep.subr.mxu0 %v624
    %2443 = vmatpush1.msra.mxu0 %v623
    %2444 = vmatprep.subr.mxu0 %v620
    %2445 = vmatpush1.msra.mxu0 %v619
    %2446 = vmatprep.subr.mxu0 %v616
    %2447 = vmatpush1.msra.mxu0 %v615
    %2448 = vmatprep.subr.mxu0 %v612
    %2449 = vmatpush1.msra.mxu0 %v611
    %2450 = vmatprep.subr.mxu0 %v608
    %2451 = vmatpush1.msra.mxu0 %v607
    %2452 = vmatprep.subr.mxu0 %v604
    %2453 = vmatpush1.msra.mxu0 %v603
    %2454 = vmatprep.subr.mxu0 %v600
    %2455 = vmatpush1.msra.mxu0 %v599
    %2456 = vmatprep.subr.mxu0 %v596
    %2457 = vmatpush1.msra.mxu0 %v595
    %2458 = vmatprep.subr.mxu0 %v592
    %2459 = vmatpush1.msra.mxu0 %v591
    %2460 = vmatprep.subr.mxu0 %v588
    %2461 = vmatpush1.msra.mxu0 %v587
    %2462 = vmatprep.subr.mxu0 %v584
    %2463 = vmatpush1.msra.mxu0 %v583
    %2464 = vmatprep.subr.mxu0 %v580
    %2465 = vmatpush1.msra.mxu0 %v579
    %2466 = vmatprep.subr.mxu0 %v704
    %2467 = vmatpush2.msra.mxu0 %v703
    %2468 = vmatprep.subr.mxu0 %v700
    %2469 = vmatpush2.msra.mxu0 %v699
    %2470 = vmatprep.subr.mxu0 %v696
    %2471 = vmatpush2.msra.mxu0 %v695
    %2472 = vmatprep.subr.mxu0 %v692
    %2473 = vmatpush2.msra.mxu0 %v691
    %2474 = vmatprep.subr.mxu0 %v688
    %2475 = vmatpush2.msra.mxu0 %v687
    %2476 = vmatprep.subr.mxu0 %v684
    %2477 = vmatpush2.msra.mxu0 %v683
    %2478 = vmatprep.subr.mxu0 %v680
    %2479 = vmatpush2.msra.mxu0 %v679
    %2480 = vmatprep.subr.mxu0 %v676
    %2481 = vmatpush2.msra.mxu0 %v675
    %2482 = vmatprep.subr.mxu0 %v672
    %2483 = vmatpush2.msra.mxu0 %v671
    %2484 = vmatprep.subr.mxu0 %v668
    %2485 = vmatpush2.msra.mxu0 %v667
    %2486 = vmatprep.subr.mxu0 %v664
    %2487 = vmatpush2.msra.mxu0 %v663
    %2488 = vmatprep.subr.mxu0 %v660
    %2489 = vmatpush2.msra.mxu0 %v659
    %2490 = vmatprep.subr.mxu0 %v656
    %2491 = vmatpush2.msra.mxu0 %v655
    %2492 = vmatprep.subr.mxu0 %v652
    %2493 = vmatpush2.msra.mxu0 %v651
    %2494 = vmatprep.subr.mxu0 %v648
    %2495 = vmatpush2.msra.mxu0 %v647
    %2496 = vmatprep.subr.mxu0 %v644
    %2497 = vmatpush2.msra.mxu0 %v643
    %2498 = vmatprep.mubr.f32.mxu0 %v2360
    %2499 = vmatmul.mubr.f32.gmra.mxu0 %v2359
    %v2500 = vpop.f32.mrf.mxu0
    %v2501 = vadd.f32 %v314, %v2500
    %v2502 = vpop.f32.mrf.mxu0
    %v2503 = vadd.f32 %v318, %v2502
    %2504 = vdwg.mxu0
    %v2505 = vmul.f32 %v2430, 0.5
    %v2506 = vtanh.pop %v2505
    %v2507 = vmul.f32 %v2506, 0.5
    %v2508 = vadd.f32 %v2507, 0.5
    %v2509 = vmul.f32 %v2432, 0.5
    %v2510 = vtanh.pop %v2509
    %v2511 = vmul.f32 %v2510, 0.5
    %v2512 = vadd.f32 %v2511, 0.5
    %v2513 = vtanh.pop %v2501
    %v2514 = vmul.f32 %v2503, 0.5
    %v2515 = vtanh.pop %v2514
    %v2516 = vmul.f32 %v2515, 0.5
    %v2517 = vadd.f32 %v2516, 0.5
    %v2518 = vmul.f32 %v2512, %v2010
    %v2519 = vmul.f32 %v2508, %v2513
    %v2520 = vadd.f32 %v2518, %v2519
    %v2521 = vtanh.pop %v2520
    %v2522 = vmul.f32 %v2517, %v2521
    %2523 = vmatprep.subr.mxu0 %v926
    %2524 = vmatpush1.msra.mxu0 %v925
    %2525 = vmatprep.subr.mxu0 %v922
    %2526 = vmatpush1.msra.mxu0 %v921
    %2527 = vmatprep.subr.mxu0 %v918
    %2528 = vmatpush1.msra.mxu0 %v917
    %2529 = vmatprep.subr.mxu0 %v914
    %2530 = vmatpush1.msra.mxu0 %v913
    %2531 = vmatprep.subr.mxu0 %v910
    %2532 = vmatpush1.msra.mxu0 %v909
    %2533 = vmatprep.subr.mxu0 %v906
    %2534 = vmatpush1.msra.mxu0 %v905
    %2535 = vmatprep.subr.mxu0 %v902
    %2536 = vmatpush1.msra.mxu0 %v901
    %2537 = vmatprep.subr.mxu0 %v898
    %2538 = vmatpush1.msra.mxu0 %v897
    %2539 = vmatprep.subr.mxu0 %v894
    %2540 = vmatpush1.msra.mxu0 %v893
    %2541 = vmatprep.subr.mxu0 %v890
    %2542 = vmatpush1.msra.mxu0 %v889
    %2543 = vmatprep.subr.mxu0 %v886
    %2544 = vmatpush1.msra.mxu0 %v885
    %2545 = vmatprep.subr.mxu0 %v882
    %2546 = vmatpush1.msra.mxu0 %v881
    %2547 = vmatprep.subr.mxu0 %v878
    %2548 = vmatpush1.msra.mxu0 %v877
    %2549 = vmatprep.subr.mxu0 %v874
    %2550 = vmatpush1.msra.mxu0 %v873
    %2551 = vmatprep.subr.mxu0 %v870
    %2552 = vmatpush1.msra.mxu0 %v869
    %2553 = vmatprep.subr.mxu0 %v866
    %2554 = vmatpush1.msra.mxu0 %v865
    %2555 = vmatprep.subr.mxu0 %v990
    %2556 = vmatpush2.msra.mxu0 %v989
    %2557 = vmatprep.subr.mxu0 %v986
    %2558 = vmatpush2.msra.mxu0 %v985
    %2559 = vmatprep.subr.mxu0 %v982
    %2560 = vmatpush2.msra.mxu0 %v981
    %2561 = vmatprep.subr.mxu0 %v978
    %2562 = vmatpush2.msra.mxu0 %v977
    %2563 = vmatprep.subr.mxu0 %v974
    %2564 = vmatpush2.msra.mxu0 %v973
    %2565 = vmatprep.subr.mxu0 %v970
    %2566 = vmatpush2.msra.mxu0 %v969
    %2567 = vmatprep.subr.mxu0 %v966
    %2568 = vmatpush2.msra.mxu0 %v965
    %2569 = vmatprep.subr.mxu0 %v962
    %2570 = vmatpush2.msra.mxu0 %v961
    %2571 = vmatprep.subr.mxu0 %v958
    %2572 = vmatpush2.msra.mxu0 %v957
    %2573 = vmatprep.subr.mxu0 %v954
    %2574 = vmatpush2.msra.mxu0 %v953
    %2575 = vmatprep.subr.mxu0 %v950
    %2576 = vmatpush2.msra.mxu0 %v949
    %2577 = vmatprep.subr.mxu0 %v946
    %2578 = vmatpush2.msra.mxu0 %v945
    %2579 = vmatprep.subr.mxu0 %v942
    %2580 = vmatpush2.msra.mxu0 %v941
    %2581 = vmatprep.subr.mxu0 %v938
    %2582 = vmatpush2.msra.mxu0 %v937
    %2583 = vmatprep.subr.mxu0 %v934
    %2584 = vmatpush2.msra.mxu0 %v933
    %2585 = vmatprep.subr.mxu0 %v930
    %2586 = vmatpush2.msra.mxu0 %v929
    %2587 = vmatprep.mubr.f32.mxu0 %v2172
    %2588 = vmatmul.mubr.f32.gmra.mxu0 %v2522
    %v2589 = vpop.f32.mrf.mxu0
    %v2590 = vadd.f32 %v328, %v2589
    %v2591 = vpop.f32.mrf.mxu0
    %v2592 = vadd.f32 %v332, %v2591
    %2593 = vdwg.mxu0
    %2594 = vmatprep.subr.mxu0 %v928
    %2595 = vmatpush1.msra.mxu0 %v927
    %2596 = vmatprep.subr.mxu0 %v924
    %2597 = vmatpush1.msra.mxu0 %v923
    %2598 = vmatprep.subr.mxu0 %v920
    %2599 = vmatpush1.msra.mxu0 %v919
    %2600 = vmatprep.subr.mxu0 %v916
    %2601 = vmatpush1.msra.mxu0 %v915
    %2602 = vmatprep.subr.mxu0 %v912
    %2603 = vmatpush1.msra.mxu0 %v911
    %2604 = vmatprep.subr.mxu0 %v908
    %2605 = vmatpush1.msra.mxu0 %v907
    %2606 = vmatprep.subr.mxu0 %v904
    %2607 = vmatpush1.msra.mxu0 %v903
    %2608 = vmatprep.subr.mxu0 %v900
    %2609 = vmatpush1.msra.mxu0 %v899
    %2610 = vmatprep.subr.mxu0 %v896
    %2611 = vmatpush1.msra.mxu0 %v895
    %2612 = vmatprep.subr.mxu0 %v892
    %2613 = vmatpush1.msra.mxu0 %v891
    %2614 = vmatprep.subr.mxu0 %v888
    %2615 = vmatpush1.msra.mxu0 %v887
    %2616 = vmatprep.subr.mxu0 %v884
    %2617 = vmatpush1.msra.mxu0 %v883
    %2618 = vmatprep.subr.mxu0 %v880
    %2619 = vmatpush1.msra.mxu0 %v879
    %2620 = vmatprep.subr.mxu0 %v876
    %2621 = vmatpush1.msra.mxu0 %v875
    %2622 = vmatprep.subr.mxu0 %v872
    %2623 = vmatpush1.msra.mxu0 %v871
    %2624 = vmatprep.subr.mxu0 %v868
    %2625 = vmatpush1.msra.mxu0 %v867
    %2626 = vmatprep.subr.mxu0 %v992
    %2627 = vmatpush2.msra.mxu0 %v991
    %2628 = vmatprep.subr.mxu0 %v988
    %2629 = vmatpush2.msra.mxu0 %v987
    %2630 = vmatprep.subr.mxu0 %v984
    %2631 = vmatpush2.msra.mxu0 %v983
    %2632 = vmatprep.subr.mxu0 %v980
    %2633 = vmatpush2.msra.mxu0 %v979
    %2634 = vmatprep.subr.mxu0 %v976
    %2635 = vmatpush2.msra.mxu0 %v975
    %2636 = vmatprep.subr.mxu0 %v972
    %2637 = vmatpush2.msra.mxu0 %v971
    %2638 = vmatprep.subr.mxu0 %v968
    %2639 = vmatpush2.msra.mxu0 %v967
    %2640 = vmatprep.subr.mxu0 %v964
    %2641 = vmatpush2.msra.mxu0 %v963
    %2642 = vmatprep.subr.mxu0 %v960
    %2643 = vmatpush2.msra.mxu0 %v959
    %2644 = vmatprep.subr.mxu0 %v956
    %2645 = vmatpush2.msra.mxu0 %v955
    %2646 = vmatprep.subr.mxu0 %v952
    %2647 = vmatpush2.msra.mxu0 %v951
    %2648 = vmatprep.subr.mxu0 %v948
    %2649 = vmatpush2.msra.mxu0 %v947
    %2650 = vmatprep.subr.mxu0 %v944
    %2651 = vmatpush2.msra.mxu0 %v943
    %2652 = vmatprep.subr.mxu0 %v940
    %2653 = vmatpush2.msra.mxu0 %v939
    %2654 = vmatprep.subr.mxu0 %v936
    %2655 = vmatpush2.msra.mxu0 %v935
    %2656 = vmatprep.subr.mxu0 %v932
    %2657 = vmatpush2.msra.mxu0 %v931
    %2658 = vmatprep.mubr.f32.mxu0 %v2172
    %2659 = vmatmul.mubr.f32.gmra.mxu0 %v2522
    %v2660 = vpop.f32.mrf.mxu0
    %v2661 = vadd.f32 %v336, %v2660
    %v2662 = vpop.f32.mrf.mxu0
    %v2663 = vadd.f32 %v340, %v2662
    %2664 = vdwg.mxu0
    %v2665 = vmul.f32 %v2590, 0.5
    %v2666 = vtanh.pop %v2665
    %v2667 = vmul.f32 %v2666, 0.5
    %v2668 = vadd.f32 %v2667, 0.5
    %v2669 = vmul.f32 %v2592, 0.5
    %v2670 = vtanh.pop %v2669
    %v2671 = vmul.f32 %v2670, 0.5
    %v2672 = vadd.f32 %v2671, 0.5
    %v2673 = vtanh.pop %v2661
    %v2674 = vmul.f32 %v2663, 0.5
    %v2675 = vtanh.pop %v2674
    %v2676 = vmul.f32 %v2675, 0.5
    %v2677 = vadd.f32 %v2676, 0.5
    %v2678 = vmul.f32 %v2672, %v2170
    %v2679 = vmul.f32 %v2668, %v2673
    %v2680 = vadd.f32 %v2678, %v2679
    %v2681 = vtanh.pop %v2680
    %v2682 = vmul.f32 %v2677, %v2681
    %v2683 = vld [vmem:[#allocation2 + $0x20] sm:$0x3]
    %v2684 = vld [vmem:[#allocation2 + $0x28] sm:$0x3]
    %v2685 = vld [vmem:[#allocation2 + $0x30] sm:$0x3]
    %v2686 = vld [vmem:[#allocation2 + $0x38] sm:$0x3]
    %2687 = vmatprep.subr.mxu0 %v410
    %2688 = vmatpush1.msra.mxu0 %v409
    %2689 = vmatprep.subr.mxu0 %v406
    %2690 = vmatpush1.msra.mxu0 %v405
    %2691 = vmatprep.subr.mxu0 %v402
    %2692 = vmatpush1.msra.mxu0 %v401
    %2693 = vmatprep.subr.mxu0 %v398
    %2694 = vmatpush1.msra.mxu0 %v397
    %2695 = vmatprep.subr.mxu0 %v394
    %2696 = vmatpush1.msra.mxu0 %v393
    %2697 = vmatprep.subr.mxu0 %v390
    %2698 = vmatpush1.msra.mxu0 %v389
    %2699 = vmatprep.subr.mxu0 %v386
    %2700 = vmatpush1.msra.mxu0 %v385
    %2701 = vmatprep.subr.mxu0 %v382
    %2702 = vmatpush1.msra.mxu0 %v381
    %2703 = vmatprep.subr.mxu0 %v378
    %2704 = vmatpush1.msra.mxu0 %v377
    %2705 = vmatprep.subr.mxu0 %v374
    %2706 = vmatpush1.msra.mxu0 %v373
    %2707 = vmatprep.subr.mxu0 %v370
    %2708 = vmatpush1.msra.mxu0 %v369
    %2709 = vmatprep.subr.mxu0 %v366
    %2710 = vmatpush1.msra.mxu0 %v365
    %2711 = vmatprep.subr.mxu0 %v362
    %2712 = vmatpush1.msra.mxu0 %v361
    %2713 = vmatprep.subr.mxu0 %v358
    %2714 = vmatpush1.msra.mxu0 %v357
    %2715 = vmatprep.subr.mxu0 %v354
    %2716 = vmatpush1.msra.mxu0 %v353
    %2717 = vmatprep.subr.mxu0 %v350
    %2718 = vmatpush1.msra.mxu0 %v349
    %2719 = vmatprep.subr.mxu0 0.0
    %2720 = vmatpush2.msra.mxu0 0.0
    %2721 = vmatprep.subr.mxu0 0.0
    %2722 = vmatpush2.msra.mxu0 0.0
    %2723 = vmatprep.subr.mxu0 0.0
    %2724 = vmatpush2.msra.mxu0 0.0
    %2725 = vmatprep.subr.mxu0 0.0
    %2726 = vmatpush2.msra.mxu0 0.0
    %2727 = vmatprep.subr.mxu0 0.0
    %2728 = vmatpush2.msra.mxu0 0.0
    %2729 = vmatprep.subr.mxu0 0.0
    %2730 = vmatpush2.msra.mxu0 0.0
    %2731 = vmatprep.subr.mxu0 0.0
    %2732 = vmatpush2.msra.mxu0 0.0
    %2733 = vmatprep.subr.mxu0 0.0
    %2734 = vmatpush2.msra.mxu0 0.0
    %2735 = vmatprep.subr.mxu0 0.0
    %2736 = vmatpush2.msra.mxu0 0.0
    %2737 = vmatprep.subr.mxu0 0.0
    %2738 = vmatpush2.msra.mxu0 0.0
    %2739 = vmatprep.subr.mxu0 0.0
    %2740 = vmatpush2.msra.mxu0 0.0
    %2741 = vmatprep.subr.mxu0 0.0
    %2742 = vmatpush2.msra.mxu0 0.0
    %2743 = vmatprep.subr.mxu0 0.0
    %2744 = vmatpush2.msra.mxu0 0.0
    %2745 = vmatprep.subr.mxu0 0.0
    %2746 = vmatpush2.msra.mxu0 0.0
    %2747 = vmatprep.subr.mxu0 0.0
    %2748 = vmatpush2.msra.mxu0 0.0
    %2749 = vmatprep.subr.mxu0 0.0
    %2750 = vmatpush2.msra.mxu0 0.0
    %2751 = vmatprep.mubr.f32.mxu0 0.0
    %2752 = vmatmul.mubr.f32.gmra.mxu0 %v2359
    %v2753 = vpop.f32.mrf.mxu0
    %v2754 = vadd.f32 0.0, %v2753
    %v2755 = vpop.f32.mrf.mxu0
    %v2756 = vadd.f32 0.0, %v2755
    %2757 = vdwg.mxu0
    %2758 = vmatprep.subr.mxu0 %v412
    %2759 = vmatpush1.msra.mxu0 %v411
    %2760 = vmatprep.subr.mxu0 %v408
    %2761 = vmatpush1.msra.mxu0 %v407
    %2762 = vmatprep.subr.mxu0 %v404
    %2763 = vmatpush1.msra.mxu0 %v403
    %2764 = vmatprep.subr.mxu0 %v400
    %2765 = vmatpush1.msra.mxu0 %v399
    %2766 = vmatprep.subr.mxu0 %v396
    %2767 = vmatpush1.msra.mxu0 %v395
    %2768 = vmatprep.subr.mxu0 %v392
    %2769 = vmatpush1.msra.mxu0 %v391
    %2770 = vmatprep.subr.mxu0 %v388
    %2771 = vmatpush1.msra.mxu0 %v387
    %2772 = vmatprep.subr.mxu0 %v384
    %2773 = vmatpush1.msra.mxu0 %v383
    %2774 = vmatprep.subr.mxu0 %v380
    %2775 = vmatpush1.msra.mxu0 %v379
    %2776 = vmatprep.subr.mxu0 %v376
    %2777 = vmatpush1.msra.mxu0 %v375
    %2778 = vmatprep.subr.mxu0 %v372
    %2779 = vmatpush1.msra.mxu0 %v371
    %2780 = vmatprep.subr.mxu0 %v368
    %2781 = vmatpush1.msra.mxu0 %v367
    %2782 = vmatprep.subr.mxu0 %v364
    %2783 = vmatpush1.msra.mxu0 %v363
    %2784 = vmatprep.subr.mxu0 %v360
    %2785 = vmatpush1.msra.mxu0 %v359
    %2786 = vmatprep.subr.mxu0 %v356
    %2787 = vmatpush1.msra.mxu0 %v355
    %2788 = vmatprep.subr.mxu0 %v352
    %2789 = vmatpush1.msra.mxu0 %v351
    %2790 = vmatprep.subr.mxu0 0.0
    %2791 = vmatpush2.msra.mxu0 0.0
    %2792 = vmatprep.subr.mxu0 0.0
    %2793 = vmatpush2.msra.mxu0 0.0
    %2794 = vmatprep.subr.mxu0 0.0
    %2795 = vmatpush2.msra.mxu0 0.0
    %2796 = vmatprep.subr.mxu0 0.0
    %2797 = vmatpush2.msra.mxu0 0.0
    %2798 = vmatprep.subr.mxu0 0.0
    %2799 = vmatpush2.msra.mxu0 0.0
    %2800 = vmatprep.subr.mxu0 0.0
    %2801 = vmatpush2.msra.mxu0 0.0
    %2802 = vmatprep.subr.mxu0 0.0
    %2803 = vmatpush2.msra.mxu0 0.0
    %2804 = vmatprep.subr.mxu0 0.0
    %2805 = vmatpush2.msra.mxu0 0.0
    %2806 = vmatprep.subr.mxu0 0.0
    %2807 = vmatpush2.msra.mxu0 0.0
    %2808 = vmatprep.subr.mxu0 0.0
    %2809 = vmatpush2.msra.mxu0 0.0
    %2810 = vmatprep.subr.mxu0 0.0
    %2811 = vmatpush2.msra.mxu0 0.0
    %2812 = vmatprep.subr.mxu0 0.0
    %2813 = vmatpush2.msra.mxu0 0.0
    %2814 = vmatprep.subr.mxu0 0.0
    %2815 = vmatpush2.msra.mxu0 0.0
    %2816 = vmatprep.subr.mxu0 0.0
    %2817 = vmatpush2.msra.mxu0 0.0
    %2818 = vmatprep.subr.mxu0 0.0
    %2819 = vmatpush2.msra.mxu0 0.0
    %2820 = vmatprep.subr.mxu0 0.0
    %2821 = vmatpush2.msra.mxu0 0.0
    %2822 = vmatprep.mubr.f32.mxu0 0.0
    %2823 = vmatmul.mubr.f32.gmra.mxu0 %v2359
    %v2824 = vpop.f32.mrf.mxu0
    %v2825 = vadd.f32 0.0, %v2824
    %v2826 = vpop.f32.mrf.mxu0
    %v2827 = vadd.f32 0.0, %v2826
    %2828 = vdwg.mxu0
    %v2829 = vadd.f32 %v2683, %v2754
    %v2830 = vadd.f32 %v2684, %v2756
    %v2831 = vadd.f32 %v2685, %v2825
    %v2832 = vadd.f32 %v2686, %v2827
    %v2833 = vmul.f32 %v2829, 0.5
    %v2834 = vtanh.pop %v2833
    %v2835 = vmul.f32 %v2834, 0.5
    %v2836 = vadd.f32 %v2835, 0.5
    %v2837 = vmul.f32 %v2830, 0.5
    %v2838 = vtanh.pop %v2837
    %v2839 = vmul.f32 %v2838, 0.5
    %v2840 = vadd.f32 %v2839, 0.5
    %v2841 = vtanh.pop %v2831
    %v2842 = vmul.f32 %v2832, 0.5
    %v2843 = vtanh.pop %v2842
    %v2844 = vmul.f32 %v2843, 0.5
    %v2845 = vadd.f32 %v2844, 0.5
    %v2847 = vrot.slane %v2353, 6
    %v2849 = vmul.f32 %v2840, %v2847
    %v2850 = vmul.f32 %v2836, %v2841
    %v2851 = vadd.f32 %v2849, %v2850
    %v2852 = vtanh.pop %v2851
    %v2853 = vmul.f32 %v2845, %v2852
    %2854 = vmatprep.subr.mxu0 %v638
    %2855 = vmatpush1.msra.mxu0 %v637
    %2856 = vmatprep.subr.mxu0 %v634
    %2857 = vmatpush1.msra.mxu0 %v633
    %2858 = vmatprep.subr.mxu0 %v630
    %2859 = vmatpush1.msra.mxu0 %v629
    %2860 = vmatprep.subr.mxu0 %v626
    %2861 = vmatpush1.msra.mxu0 %v625
    %2862 = vmatprep.subr.mxu0 %v622
    %2863 = vmatpush1.msra.mxu0 %v621
    %2864 = vmatprep.subr.mxu0 %v618
    %2865 = vmatpush1.msra.mxu0 %v617
    %2866 = vmatprep.subr.mxu0 %v614
    %2867 = vmatpush1.msra.mxu0 %v613
    %2868 = vmatprep.subr.mxu0 %v610
    %2869 = vmatpush1.msra.mxu0 %v609
    %2870 = vmatprep.subr.mxu0 %v606
    %2871 = vmatpush1.msra.mxu0 %v605
    %2872 = vmatprep.subr.mxu0 %v602
    %2873 = vmatpush1.msra.mxu0 %v601
    %2874 = vmatprep.subr.mxu0 %v598
    %2875 = vmatpush1.msra.mxu0 %v597
    %2876 = vmatprep.subr.mxu0 %v594
    %2877 = vmatpush1.msra.mxu0 %v593
    %2878 = vmatprep.subr.mxu0 %v590
    %2879 = vmatpush1.msra.mxu0 %v589
    %2880 = vmatprep.subr.mxu0 %v586
    %2881 = vmatpush1.msra.mxu0 %v585
    %2882 = vmatprep.subr.mxu0 %v582
    %2883 = vmatpush1.msra.mxu0 %v581
    %2884 = vmatprep.subr.mxu0 %v578
    %2885 = vmatpush1.msra.mxu0 %v577
    %2886 = vmatprep.subr.mxu0 %v702
    %2887 = vmatpush2.msra.mxu0 %v701
    %2888 = vmatprep.subr.mxu0 %v698
    %2889 = vmatpush2.msra.mxu0 %v697
    %2890 = vmatprep.subr.mxu0 %v694
    %2891 = vmatpush2.msra.mxu0 %v693
    %2892 = vmatprep.subr.mxu0 %v690
    %2893 = vmatpush2.msra.mxu0 %v689
    %2894 = vmatprep.subr.mxu0 %v686
    %2895 = vmatpush2.msra.mxu0 %v685
    %2896 = vmatprep.subr.mxu0 %v682
    %2897 = vmatpush2.msra.mxu0 %v681
    %2898 = vmatprep.subr.mxu0 %v678
    %2899 = vmatpush2.msra.mxu0 %v677
    %2900 = vmatprep.subr.mxu0 %v674
    %2901 = vmatpush2.msra.mxu0 %v673
    %2902 = vmatprep.subr.mxu0 %v670
    %2903 = vmatpush2.msra.mxu0 %v669
    %2904 = vmatprep.subr.mxu0 %v666
    %2905 = vmatpush2.msra.mxu0 %v665
    %2906 = vmatprep.subr.mxu0 %v662
    %2907 = vmatpush2.msra.mxu0 %v661
    %2908 = vmatprep.subr.mxu0 %v658
    %2909 = vmatpush2.msra.mxu0 %v657
    %2910 = vmatprep.subr.mxu0 %v654
    %2911 = vmatpush2.msra.mxu0 %v653
    %2912 = vmatprep.subr.mxu0 %v650
    %2913 = vmatpush2.msra.mxu0 %v649
    %2914 = vmatprep.subr.mxu0 %v646
    %2915 = vmatpush2.msra.mxu0 %v645
    %2916 = vmatprep.subr.mxu0 %v642
    %2917 = vmatpush2.msra.mxu0 %v641
    %2918 = vmatprep.mubr.f32.mxu0 %v2522
    %2919 = vmatmul.mubr.f32.gmra.mxu0 %v2853
    %v2920 = vpop.f32.mrf.mxu0
    %v2921 = vadd.f32 %v306, %v2920
    %v2922 = vpop.f32.mrf.mxu0
    %v2923 = vadd.f32 %v310, %v2922
    %2924 = vdwg.mxu0
    %2925 = vmatprep.subr.mxu0 %v640
    %2926 = vmatpush1.msra.mxu0 %v639
    %2927 = vmatprep.subr.mxu0 %v636
    %2928 = vmatpush1.msra.mxu0 %v635
    %2929 = vmatprep.subr.mxu0 %v632
    %2930 = vmatpush1.msra.mxu0 %v631
    %2931 = vmatprep.subr.mxu0 %v628
    %2932 = vmatpush1.msra.mxu0 %v627
    %2933 = vmatprep.subr.mxu0 %v624
    %2934 = vmatpush1.msra.mxu0 %v623
    %2935 = vmatprep.subr.mxu0 %v620
    %2936 = vmatpush1.msra.mxu0 %v619
    %2937 = vmatprep.subr.mxu0 %v616
    %2938 = vmatpush1.msra.mxu0 %v615
    %2939 = vmatprep.subr.mxu0 %v612
    %2940 = vmatpush1.msra.mxu0 %v611
    %2941 = vmatprep.subr.mxu0 %v608
    %2942 = vmatpush1.msra.mxu0 %v607
    %2943 = vmatprep.subr.mxu0 %v604
    %2944 = vmatpush1.msra.mxu0 %v603
    %2945 = vmatprep.subr.mxu0 %v600
    %2946 = vmatpush1.msra.mxu0 %v599
    %2947 = vmatprep.subr.mxu0 %v596
    %2948 = vmatpush1.msra.mxu0 %v595
    %2949 = vmatprep.subr.mxu0 %v592
    %2950 = vmatpush1.msra.mxu0 %v591
    %2951 = vmatprep.subr.mxu0 %v588
    %2952 = vmatpush1.msra.mxu0 %v587
    %2953 = vmatprep.subr.mxu0 %v584
    %2954 = vmatpush1.msra.mxu0 %v583
    %2955 = vmatprep.subr.mxu0 %v580
    %2956 = vmatpush1.msra.mxu0 %v579
    %2957 = vmatprep.subr.mxu0 %v704
    %2958 = vmatpush2.msra.mxu0 %v703
    %2959 = vmatprep.subr.mxu0 %v700
    %2960 = vmatpush2.msra.mxu0 %v699
    %2961 = vmatprep.subr.mxu0 %v696
    %2962 = vmatpush2.msra.mxu0 %v695
    %2963 = vmatprep.subr.mxu0 %v692
    %2964 = vmatpush2.msra.mxu0 %v691
    %2965 = vmatprep.subr.mxu0 %v688
    %2966 = vmatpush2.msra.mxu0 %v687
    %2967 = vmatprep.subr.mxu0 %v684
    %2968 = vmatpush2.msra.mxu0 %v683
    %2969 = vmatprep.subr.mxu0 %v680
    %2970 = vmatpush2.msra.mxu0 %v679
    %2971 = vmatprep.subr.mxu0 %v676
    %2972 = vmatpush2.msra.mxu0 %v675
    %2973 = vmatprep.subr.mxu0 %v672
    %2974 = vmatpush2.msra.mxu0 %v671
    %2975 = vmatprep.subr.mxu0 %v668
    %2976 = vmatpush2.msra.mxu0 %v667
    %2977 = vmatprep.subr.mxu0 %v664
    %2978 = vmatpush2.msra.mxu0 %v663
    %2979 = vmatprep.subr.mxu0 %v660
    %2980 = vmatpush2.msra.mxu0 %v659
    %2981 = vmatprep.subr.mxu0 %v656
    %2982 = vmatpush2.msra.mxu0 %v655
    %2983 = vmatprep.subr.mxu0 %v652
    %2984 = vmatpush2.msra.mxu0 %v651
    %2985 = vmatprep.subr.mxu0 %v648
    %2986 = vmatpush2.msra.mxu0 %v647
    %2987 = vmatprep.subr.mxu0 %v644
    %2988 = vmatpush2.msra.mxu0 %v643
    %2989 = vmatprep.mubr.f32.mxu0 %v2522
    %2990 = vmatmul.mubr.f32.gmra.mxu0 %v2853
    %v2991 = vpop.f32.mrf.mxu0
    %v2992 = vadd.f32 %v314, %v2991
    %v2993 = vpop.f32.mrf.mxu0
    %v2994 = vadd.f32 %v318, %v2993
    %2995 = vdwg.mxu0
    %v2996 = vmul.f32 %v2921, 0.5
    %v2997 = vtanh.pop %v2996
    %v2998 = vmul.f32 %v2997, 0.5
    %v2999 = vadd.f32 %v2998, 0.5
    %v3000 = vmul.f32 %v2923, 0.5
    %v3001 = vtanh.pop %v3000
    %v3002 = vmul.f32 %v3001, 0.5
    %v3003 = vadd.f32 %v3002, 0.5
    %v3004 = vtanh.pop %v2992
    %v3005 = vmul.f32 %v2994, 0.5
    %v3006 = vtanh.pop %v3005
    %v3007 = vmul.f32 %v3006, 0.5
    %v3008 = vadd.f32 %v3007, 0.5
    %v3009 = vmul.f32 %v3003, %v2520
    %v3010 = vmul.f32 %v2999, %v3004
    %v3011 = vadd.f32 %v3009, %v3010
    %v3012 = vtanh.pop %v3011
    %v3013 = vmul.f32 %v3008, %v3012
    %3014 = vmatprep.subr.mxu0 %v926
    %3015 = vmatpush1.msra.mxu0 %v925
    %3016 = vmatprep.subr.mxu0 %v922
    %3017 = vmatpush1.msra.mxu0 %v921
    %3018 = vmatprep.subr.mxu0 %v918
    %3019 = vmatpush1.msra.mxu0 %v917
    %3020 = vmatprep.subr.mxu0 %v914
    %3021 = vmatpush1.msra.mxu0 %v913
    %3022 = vmatprep.subr.mxu0 %v910
    %3023 = vmatpush1.msra.mxu0 %v909
    %3024 = vmatprep.subr.mxu0 %v906
    %3025 = vmatpush1.msra.mxu0 %v905
    %3026 = vmatprep.subr.mxu0 %v902
    %3027 = vmatpush1.msra.mxu0 %v901
    %3028 = vmatprep.subr.mxu0 %v898
    %3029 = vmatpush1.msra.mxu0 %v897
    %3030 = vmatprep.subr.mxu0 %v894
    %3031 = vmatpush1.msra.mxu0 %v893
    %3032 = vmatprep.subr.mxu0 %v890
    %3033 = vmatpush1.msra.mxu0 %v889
    %3034 = vmatprep.subr.mxu0 %v886
    %3035 = vmatpush1.msra.mxu0 %v885
    %3036 = vmatprep.subr.mxu0 %v882
    %3037 = vmatpush1.msra.mxu0 %v881
    %3038 = vmatprep.subr.mxu0 %v878
    %3039 = vmatpush1.msra.mxu0 %v877
    %3040 = vmatprep.subr.mxu0 %v874
    %3041 = vmatpush1.msra.mxu0 %v873
    %3042 = vmatprep.subr.mxu0 %v870
    %3043 = vmatpush1.msra.mxu0 %v869
    %3044 = vmatprep.subr.mxu0 %v866
    %3045 = vmatpush1.msra.mxu0 %v865
    %3046 = vmatprep.subr.mxu0 %v990
    %3047 = vmatpush2.msra.mxu0 %v989
    %3048 = vmatprep.subr.mxu0 %v986
    %3049 = vmatpush2.msra.mxu0 %v985
    %3050 = vmatprep.subr.mxu0 %v982
    %3051 = vmatpush2.msra.mxu0 %v981
    %3052 = vmatprep.subr.mxu0 %v978
    %3053 = vmatpush2.msra.mxu0 %v977
    %3054 = vmatprep.subr.mxu0 %v974
    %3055 = vmatpush2.msra.mxu0 %v973
    %3056 = vmatprep.subr.mxu0 %v970
    %3057 = vmatpush2.msra.mxu0 %v969
    %3058 = vmatprep.subr.mxu0 %v966
    %3059 = vmatpush2.msra.mxu0 %v965
    %3060 = vmatprep.subr.mxu0 %v962
    %3061 = vmatpush2.msra.mxu0 %v961
    %3062 = vmatprep.subr.mxu0 %v958
    %3063 = vmatpush2.msra.mxu0 %v957
    %3064 = vmatprep.subr.mxu0 %v954
    %3065 = vmatpush2.msra.mxu0 %v953
    %3066 = vmatprep.subr.mxu0 %v950
    %3067 = vmatpush2.msra.mxu0 %v949
    %3068 = vmatprep.subr.mxu0 %v946
    %3069 = vmatpush2.msra.mxu0 %v945
    %3070 = vmatprep.subr.mxu0 %v942
    %3071 = vmatpush2.msra.mxu0 %v941
    %3072 = vmatprep.subr.mxu0 %v938
    %3073 = vmatpush2.msra.mxu0 %v937
    %3074 = vmatprep.subr.mxu0 %v934
    %3075 = vmatpush2.msra.mxu0 %v933
    %3076 = vmatprep.subr.mxu0 %v930
    %3077 = vmatpush2.msra.mxu0 %v929
    %3078 = vmatprep.mubr.f32.mxu0 %v2682
    %3079 = vmatmul.mubr.f32.gmra.mxu0 %v3013
    %v3080 = vpop.f32.mrf.mxu0
    %v3081 = vadd.f32 %v328, %v3080
    %v3082 = vpop.f32.mrf.mxu0
    %v3083 = vadd.f32 %v332, %v3082
    %3084 = vdwg.mxu0
    %3085 = vmatprep.subr.mxu0 %v928
    %3086 = vmatpush1.msra.mxu0 %v927
    %3087 = vmatprep.subr.mxu0 %v924
    %3088 = vmatpush1.msra.mxu0 %v923
    %3089 = vmatprep.subr.mxu0 %v920
    %3090 = vmatpush1.msra.mxu0 %v919
    %3091 = vmatprep.subr.mxu0 %v916
    %3092 = vmatpush1.msra.mxu0 %v915
    %3093 = vmatprep.subr.mxu0 %v912
    %3094 = vmatpush1.msra.mxu0 %v911
    %3095 = vmatprep.subr.mxu0 %v908
    %3096 = vmatpush1.msra.mxu0 %v907
    %3097 = vmatprep.subr.mxu0 %v904
    %3098 = vmatpush1.msra.mxu0 %v903
    %3099 = vmatprep.subr.mxu0 %v900
    %3100 = vmatpush1.msra.mxu0 %v899
    %3101 = vmatprep.subr.mxu0 %v896
    %3102 = vmatpush1.msra.mxu0 %v895
    %3103 = vmatprep.subr.mxu0 %v892
    %3104 = vmatpush1.msra.mxu0 %v891
    %3105 = vmatprep.subr.mxu0 %v888
    %3106 = vmatpush1.msra.mxu0 %v887
    %3107 = vmatprep.subr.mxu0 %v884
    %3108 = vmatpush1.msra.mxu0 %v883
    %3109 = vmatprep.subr.mxu0 %v880
    %3110 = vmatpush1.msra.mxu0 %v879
    %3111 = vmatprep.subr.mxu0 %v876
    %3112 = vmatpush1.msra.mxu0 %v875
    %3113 = vmatprep.subr.mxu0 %v872
    %3114 = vmatpush1.msra.mxu0 %v871
    %3115 = vmatprep.subr.mxu0 %v868
    %3116 = vmatpush1.msra.mxu0 %v867
    %3117 = vmatprep.subr.mxu0 %v992
    %3118 = vmatpush2.msra.mxu0 %v991
    %3119 = vmatprep.subr.mxu0 %v988
    %3120 = vmatpush2.msra.mxu0 %v987
    %3121 = vmatprep.subr.mxu0 %v984
    %3122 = vmatpush2.msra.mxu0 %v983
    %3123 = vmatprep.subr.mxu0 %v980
    %3124 = vmatpush2.msra.mxu0 %v979
    %3125 = vmatprep.subr.mxu0 %v976
    %3126 = vmatpush2.msra.mxu0 %v975
    %3127 = vmatprep.subr.mxu0 %v972
    %3128 = vmatpush2.msra.mxu0 %v971
    %3129 = vmatprep.subr.mxu0 %v968
    %3130 = vmatpush2.msra.mxu0 %v967
    %3131 = vmatprep.subr.mxu0 %v964
    %3132 = vmatpush2.msra.mxu0 %v963
    %3133 = vmatprep.subr.mxu0 %v960
    %3134 = vmatpush2.msra.mxu0 %v959
    %3135 = vmatprep.subr.mxu0 %v956
    %3136 = vmatpush2.msra.mxu0 %v955
    %3137 = vmatprep.subr.mxu0 %v952
    %3138 = vmatpush2.msra.mxu0 %v951
    %3139 = vmatprep.subr.mxu0 %v948
    %3140 = vmatpush2.msra.mxu0 %v947
    %3141 = vmatprep.subr.mxu0 %v944
    %3142 = vmatpush2.msra.mxu0 %v943
    %3143 = vmatprep.subr.mxu0 %v940
    %3144 = vmatpush2.msra.mxu0 %v939
    %3145 = vmatprep.subr.mxu0 %v936
    %3146 = vmatpush2.msra.mxu0 %v935
    %3147 = vmatprep.subr.mxu0 %v932
    %3148 = vmatpush2.msra.mxu0 %v931
    %3149 = vmatprep.mubr.f32.mxu0 %v2682
    %3150 = vmatmul.mubr.f32.gmra.mxu0 %v3013
    %v3151 = vpop.f32.mrf.mxu0
    %v3152 = vadd.f32 %v336, %v3151
    %v3153 = vpop.f32.mrf.mxu0
    %v3154 = vadd.f32 %v340, %v3153
    %3155 = vdwg.mxu0
    %v3156 = vmul.f32 %v3081, 0.5
    %v3157 = vtanh.pop %v3156
    %v3158 = vmul.f32 %v3157, 0.5
    %v3159 = vadd.f32 %v3158, 0.5
    %v3160 = vmul.f32 %v3083, 0.5
    %v3161 = vtanh.pop %v3160
    %v3162 = vmul.f32 %v3161, 0.5
    %v3163 = vadd.f32 %v3162, 0.5
    %v3164 = vtanh.pop %v3152
    %v3165 = vmul.f32 %v3154, 0.5
    %v3166 = vtanh.pop %v3165
    %v3167 = vmul.f32 %v3166, 0.5
    %v3168 = vadd.f32 %v3167, 0.5
    %v3169 = vmul.f32 %v3163, %v2680
    %v3170 = vmul.f32 %v3159, %v3164
    %v3171 = vadd.f32 %v3169, %v3170
    %v3172 = vtanh.pop %v3171
    %v3173 = vmul.f32 %v3168, %v3172
    %v3174 = vld [vmem:[#allocation2 + $0x20] sm:$0xc]
    %v3175 = vld [vmem:[#allocation2 + $0x28] sm:$0xc]
    %v3176 = vld [vmem:[#allocation2 + $0x30] sm:$0xc]
    %v3177 = vld [vmem:[#allocation2 + $0x38] sm:$0xc]
    %3178 = vmatprep.subr.mxu0 %v410
    %3179 = vmatpush1.msra.mxu0 %v409
    %3180 = vmatprep.subr.mxu0 %v406
    %3181 = vmatpush1.msra.mxu0 %v405
    %3182 = vmatprep.subr.mxu0 %v402
    %3183 = vmatpush1.msra.mxu0 %v401
    %3184 = vmatprep.subr.mxu0 %v398
    %3185 = vmatpush1.msra.mxu0 %v397
    %3186 = vmatprep.subr.mxu0 %v394
    %3187 = vmatpush1.msra.mxu0 %v393
    %3188 = vmatprep.subr.mxu0 %v390
    %3189 = vmatpush1.msra.mxu0 %v389
    %3190 = vmatprep.subr.mxu0 %v386
    %3191 = vmatpush1.msra.mxu0 %v385
    %3192 = vmatprep.subr.mxu0 %v382
    %3193 = vmatpush1.msra.mxu0 %v381
    %3194 = vmatprep.subr.mxu0 %v378
    %3195 = vmatpush1.msra.mxu0 %v377
    %3196 = vmatprep.subr.mxu0 %v374
    %3197 = vmatpush1.msra.mxu0 %v373
    %3198 = vmatprep.subr.mxu0 %v370
    %3199 = vmatpush1.msra.mxu0 %v369
    %3200 = vmatprep.subr.mxu0 %v366
    %3201 = vmatpush1.msra.mxu0 %v365
    %3202 = vmatprep.subr.mxu0 %v362
    %3203 = vmatpush1.msra.mxu0 %v361
    %3204 = vmatprep.subr.mxu0 %v358
    %3205 = vmatpush1.msra.mxu0 %v357
    %3206 = vmatprep.subr.mxu0 %v354
    %3207 = vmatpush1.msra.mxu0 %v353
    %3208 = vmatprep.subr.mxu0 %v350
    %3209 = vmatpush1.msra.mxu0 %v349
    %3210 = vmatprep.subr.mxu0 0.0
    %3211 = vmatpush2.msra.mxu0 0.0
    %3212 = vmatprep.subr.mxu0 0.0
    %3213 = vmatpush2.msra.mxu0 0.0
    %3214 = vmatprep.subr.mxu0 0.0
    %3215 = vmatpush2.msra.mxu0 0.0
    %3216 = vmatprep.subr.mxu0 0.0
    %3217 = vmatpush2.msra.mxu0 0.0
    %3218 = vmatprep.subr.mxu0 0.0
    %3219 = vmatpush2.msra.mxu0 0.0
    %3220 = vmatprep.subr.mxu0 0.0
    %3221 = vmatpush2.msra.mxu0 0.0
    %3222 = vmatprep.subr.mxu0 0.0
    %3223 = vmatpush2.msra.mxu0 0.0
    %3224 = vmatprep.subr.mxu0 0.0
    %3225 = vmatpush2.msra.mxu0 0.0
    %3226 = vmatprep.subr.mxu0 0.0
    %3227 = vmatpush2.msra.mxu0 0.0
    %3228 = vmatprep.subr.mxu0 0.0
    %3229 = vmatpush2.msra.mxu0 0.0
    %3230 = vmatprep.subr.mxu0 0.0
    %3231 = vmatpush2.msra.mxu0 0.0
    %3232 = vmatprep.subr.mxu0 0.0
    %3233 = vmatpush2.msra.mxu0 0.0
    %3234 = vmatprep.subr.mxu0 0.0
    %3235 = vmatpush2.msra.mxu0 0.0
    %3236 = vmatprep.subr.mxu0 0.0
    %3237 = vmatpush2.msra.mxu0 0.0
    %3238 = vmatprep.subr.mxu0 0.0
    %3239 = vmatpush2.msra.mxu0 0.0
    %3240 = vmatprep.subr.mxu0 0.0
    %3241 = vmatpush2.msra.mxu0 0.0
    %3242 = vmatprep.mubr.f32.mxu0 0.0
    %3243 = vmatmul.mubr.f32.gmra.mxu0 %v2853
    %v3244 = vpop.f32.mrf.mxu0
    %v3245 = vadd.f32 0.0, %v3244
    %v3246 = vpop.f32.mrf.mxu0
    %v3247 = vadd.f32 0.0, %v3246
    %3248 = vdwg.mxu0
    %3249 = vmatprep.subr.mxu0 %v412
    %3250 = vmatpush1.msra.mxu0 %v411
    %3251 = vmatprep.subr.mxu0 %v408
    %3252 = vmatpush1.msra.mxu0 %v407
    %3253 = vmatprep.subr.mxu0 %v404
    %3254 = vmatpush1.msra.mxu0 %v403
    %3255 = vmatprep.subr.mxu0 %v400
    %3256 = vmatpush1.msra.mxu0 %v399
    %3257 = vmatprep.subr.mxu0 %v396
    %3258 = vmatpush1.msra.mxu0 %v395
    %3259 = vmatprep.subr.mxu0 %v392
    %3260 = vmatpush1.msra.mxu0 %v391
    %3261 = vmatprep.subr.mxu0 %v388
    %3262 = vmatpush1.msra.mxu0 %v387
    %3263 = vmatprep.subr.mxu0 %v384
    %3264 = vmatpush1.msra.mxu0 %v383
    %3265 = vmatprep.subr.mxu0 %v380
    %3266 = vmatpush1.msra.mxu0 %v379
    %3267 = vmatprep.subr.mxu0 %v376
    %3268 = vmatpush1.msra.mxu0 %v375
    %3269 = vmatprep.subr.mxu0 %v372
    %3270 = vmatpush1.msra.mxu0 %v371
    %3271 = vmatprep.subr.mxu0 %v368
    %3272 = vmatpush1.msra.mxu0 %v367
    %3273 = vmatprep.subr.mxu0 %v364
    %3274 = vmatpush1.msra.mxu0 %v363
    %3275 = vmatprep.subr.mxu0 %v360
    %3276 = vmatpush1.msra.mxu0 %v359
    %3277 = vmatprep.subr.mxu0 %v356
    %3278 = vmatpush1.msra.mxu0 %v355
    %3279 = vmatprep.subr.mxu0 %v352
    %3280 = vmatpush1.msra.mxu0 %v351
    %3281 = vmatprep.subr.mxu0 0.0
    %3282 = vmatpush2.msra.mxu0 0.0
    %3283 = vmatprep.subr.mxu0 0.0
    %3284 = vmatpush2.msra.mxu0 0.0
    %3285 = vmatprep.subr.mxu0 0.0
    %3286 = vmatpush2.msra.mxu0 0.0
    %3287 = vmatprep.subr.mxu0 0.0
    %3288 = vmatpush2.msra.mxu0 0.0
    %3289 = vmatprep.subr.mxu0 0.0
    %3290 = vmatpush2.msra.mxu0 0.0
    %3291 = vmatprep.subr.mxu0 0.0
    %3292 = vmatpush2.msra.mxu0 0.0
    %3293 = vmatprep.subr.mxu0 0.0
    %3294 = vmatpush2.msra.mxu0 0.0
    %3295 = vmatprep.subr.mxu0 0.0
    %3296 = vmatpush2.msra.mxu0 0.0
    %3297 = vmatprep.subr.mxu0 0.0
    %3298 = vmatpush2.msra.mxu0 0.0
    %3299 = vmatprep.subr.mxu0 0.0
    %3300 = vmatpush2.msra.mxu0 0.0
    %3301 = vmatprep.subr.mxu0 0.0
    %3302 = vmatpush2.msra.mxu0 0.0
    %3303 = vmatprep.subr.mxu0 0.0
    %3304 = vmatpush2.msra.mxu0 0.0
    %3305 = vmatprep.subr.mxu0 0.0
    %3306 = vmatpush2.msra.mxu0 0.0
    %3307 = vmatprep.subr.mxu0 0.0
    %3308 = vmatpush2.msra.mxu0 0.0
    %3309 = vmatprep.subr.mxu0 0.0
    %3310 = vmatpush2.msra.mxu0 0.0
    %3311 = vmatprep.subr.mxu0 0.0
    %3312 = vmatpush2.msra.mxu0 0.0
    %3313 = vmatprep.mubr.f32.mxu0 0.0
    %3314 = vmatmul.mubr.f32.gmra.mxu0 %v2853
    %v3315 = vpop.f32.mrf.mxu0
    %v3316 = vadd.f32 0.0, %v3315
    %v3317 = vpop.f32.mrf.mxu0
    %v3318 = vadd.f32 0.0, %v3317
    %3319 = vdwg.mxu0
    %v3324 = vrot.slane %v3245, 6
    %v3325 = vrot.slane %v3247, 6
    %v3326 = vrot.slane %v3316, 6
    %v3327 = vrot.slane %v3318, 6
    %v3332 = vadd.f32 %v3174, %v3324
    %v3333 = vadd.f32 %v3175, %v3325
    %v3334 = vadd.f32 %v3176, %v3326
    %v3335 = vadd.f32 %v3177, %v3327
    %v3336 = vmul.f32 %v3332, 0.5
    %v3337 = vtanh.pop %v3336
    %v3338 = vmul.f32 %v3337, 0.5
    %v3339 = vadd.f32 %v3338, 0.5
    %v3340 = vmul.f32 %v3333, 0.5
    %v3341 = vtanh.pop %v3340
    %v3342 = vmul.f32 %v3341, 0.5
    %v3343 = vadd.f32 %v3342, 0.5
    %v3344 = vtanh.pop %v3334
    %v3345 = vmul.f32 %v3335, 0.5
    %v3346 = vtanh.pop %v3345
    %v3347 = vmul.f32 %v3346, 0.5
    %v3348 = vadd.f32 %v3347, 0.5
    %v3350 = vrot.slane %v2851, 6
    %v3352 = vmul.f32 %v3343, %v3350
    %v3353 = vmul.f32 %v3339, %v3344
    %v3354 = vadd.f32 %v3352, %v3353
    %v3355 = vtanh.pop %v3354
    %v3356 = vmul.f32 %v3348, %v3355
    %v3358 = vrot.slane %v3013, 6
    %v3360 = vrot.slane %v3356, 2
    %v3361 = vrot.slane %v3358, 2
    %3364 = vmatprep.subr.mxu0 %v638
    %3365 = vmatpush1.msra.mxu0 %v637
    %3366 = vmatprep.subr.mxu0 %v634
    %3367 = vmatpush1.msra.mxu0 %v633
    %3368 = vmatprep.subr.mxu0 %v630
    %3369 = vmatpush1.msra.mxu0 %v629
    %3370 = vmatprep.subr.mxu0 %v626
    %3371 = vmatpush1.msra.mxu0 %v625
    %3372 = vmatprep.subr.mxu0 %v622
    %3373 = vmatpush1.msra.mxu0 %v621
    %3374 = vmatprep.subr.mxu0 %v618
    %3375 = vmatpush1.msra.mxu0 %v617
    %3376 = vmatprep.subr.mxu0 %v614
    %3377 = vmatpush1.msra.mxu0 %v613
    %3378 = vmatprep.subr.mxu0 %v610
    %3379 = vmatpush1.msra.mxu0 %v609
    %3380 = vmatprep.subr.mxu0 %v606
    %3381 = vmatpush1.msra.mxu0 %v605
    %3382 = vmatprep.subr.mxu0 %v602
    %3383 = vmatpush1.msra.mxu0 %v601
    %3384 = vmatprep.subr.mxu0 %v598
    %3385 = vmatpush1.msra.mxu0 %v597
    %3386 = vmatprep.subr.mxu0 %v594
    %3387 = vmatpush1.msra.mxu0 %v593
    %3388 = vmatprep.subr.mxu0 %v590
    %3389 = vmatpush1.msra.mxu0 %v589
    %3390 = vmatprep.subr.mxu0 %v586
    %3391 = vmatpush1.msra.mxu0 %v585
    %3392 = vmatprep.subr.mxu0 %v582
    %3393 = vmatpush1.msra.mxu0 %v581
    %3394 = vmatprep.subr.mxu0 %v578
    %3395 = vmatpush1.msra.mxu0 %v577
    %3396 = vmatprep.subr.mxu0 %v702
    %3397 = vmatpush2.msra.mxu0 %v701
    %3398 = vmatprep.subr.mxu0 %v698
    %3399 = vmatpush2.msra.mxu0 %v697
    %3400 = vmatprep.subr.mxu0 %v694
    %3401 = vmatpush2.msra.mxu0 %v693
    %3402 = vmatprep.subr.mxu0 %v690
    %3403 = vmatpush2.msra.mxu0 %v689
    %3404 = vmatprep.subr.mxu0 %v686
    %3405 = vmatpush2.msra.mxu0 %v685
    %3406 = vmatprep.subr.mxu0 %v682
    %3407 = vmatpush2.msra.mxu0 %v681
    %3408 = vmatprep.subr.mxu0 %v678
    %3409 = vmatpush2.msra.mxu0 %v677
    %3410 = vmatprep.subr.mxu0 %v674
    %3411 = vmatpush2.msra.mxu0 %v673
    %3412 = vmatprep.subr.mxu0 %v670
    %3413 = vmatpush2.msra.mxu0 %v669
    %3414 = vmatprep.subr.mxu0 %v666
    %3415 = vmatpush2.msra.mxu0 %v665
    %3416 = vmatprep.subr.mxu0 %v662
    %3417 = vmatpush2.msra.mxu0 %v661
    %3418 = vmatprep.subr.mxu0 %v658
    %3419 = vmatpush2.msra.mxu0 %v657
    %3420 = vmatprep.subr.mxu0 %v654
    %3421 = vmatpush2.msra.mxu0 %v653
    %3422 = vmatprep.subr.mxu0 %v650
    %3423 = vmatpush2.msra.mxu0 %v649
    %3424 = vmatprep.subr.mxu0 %v646
    %3425 = vmatpush2.msra.mxu0 %v645
    %3426 = vmatprep.subr.mxu0 %v642
    %3427 = vmatpush2.msra.mxu0 %v641
    %3428 = vmatprep.mubr.f32.mxu0 %v3361
    %3429 = vmatmul.mubr.f32.gmra.mxu0 %v3360
    %v3430 = vpop.f32.mrf.mxu0
    %v3431 = vadd.f32 %v306, %v3430
    %v3432 = vpop.f32.mrf.mxu0
    %v3433 = vadd.f32 %v310, %v3432
    %3434 = vdwg.mxu0
    %3435 = vmatprep.subr.mxu0 %v640
    %3436 = vmatpush1.msra.mxu0 %v639
    %3437 = vmatprep.subr.mxu0 %v636
    %3438 = vmatpush1.msra.mxu0 %v635
    %3439 = vmatprep.subr.mxu0 %v632
    %3440 = vmatpush1.msra.mxu0 %v631
    %3441 = vmatprep.subr.mxu0 %v628
    %3442 = vmatpush1.msra.mxu0 %v627
    %3443 = vmatprep.subr.mxu0 %v624
    %3444 = vmatpush1.msra.mxu0 %v623
    %3445 = vmatprep.subr.mxu0 %v620
    %3446 = vmatpush1.msra.mxu0 %v619
    %3447 = vmatprep.subr.mxu0 %v616
    %3448 = vmatpush1.msra.mxu0 %v615
    %3449 = vmatprep.subr.mxu0 %v612
    %3450 = vmatpush1.msra.mxu0 %v611
    %3451 = vmatprep.subr.mxu0 %v608
    %3452 = vmatpush1.msra.mxu0 %v607
    %3453 = vmatprep.subr.mxu0 %v604
    %3454 = vmatpush1.msra.mxu0 %v603
    %3455 = vmatprep.subr.mxu0 %v600
    %3456 = vmatpush1.msra.mxu0 %v599
    %3457 = vmatprep.subr.mxu0 %v596
    %3458 = vmatpush1.msra.mxu0 %v595
    %3459 = vmatprep.subr.mxu0 %v592
    %3460 = vmatpush1.msra.mxu0 %v591
    %3461 = vmatprep.subr.mxu0 %v588
    %3462 = vmatpush1.msra.mxu0 %v587
    %3463 = vmatprep.subr.mxu0 %v584
    %3464 = vmatpush1.msra.mxu0 %v583
    %3465 = vmatprep.subr.mxu0 %v580
    %3466 = vmatpush1.msra.mxu0 %v579
    %3467 = vmatprep.subr.mxu0 %v704
    %3468 = vmatpush2.msra.mxu0 %v703
    %3469 = vmatprep.subr.mxu0 %v700
    %3470 = vmatpush2.msra.mxu0 %v699
    %3471 = vmatprep.subr.mxu0 %v696
    %3472 = vmatpush2.msra.mxu0 %v695
    %3473 = vmatprep.subr.mxu0 %v692
    %3474 = vmatpush2.msra.mxu0 %v691
    %3475 = vmatprep.subr.mxu0 %v688
    %3476 = vmatpush2.msra.mxu0 %v687
    %3477 = vmatprep.subr.mxu0 %v684
    %3478 = vmatpush2.msra.mxu0 %v683
    %3479 = vmatprep.subr.mxu0 %v680
    %3480 = vmatpush2.msra.mxu0 %v679
    %3481 = vmatprep.subr.mxu0 %v676
    %3482 = vmatpush2.msra.mxu0 %v675
    %3483 = vmatprep.subr.mxu0 %v672
    %3484 = vmatpush2.msra.mxu0 %v671
    %3485 = vmatprep.subr.mxu0 %v668
    %3486 = vmatpush2.msra.mxu0 %v667
    %3487 = vmatprep.subr.mxu0 %v664
    %3488 = vmatpush2.msra.mxu0 %v663
    %3489 = vmatprep.subr.mxu0 %v660
    %3490 = vmatpush2.msra.mxu0 %v659
    %3491 = vmatprep.subr.mxu0 %v656
    %3492 = vmatpush2.msra.mxu0 %v655
    %3493 = vmatprep.subr.mxu0 %v652
    %3494 = vmatpush2.msra.mxu0 %v651
    %3495 = vmatprep.subr.mxu0 %v648
    %3496 = vmatpush2.msra.mxu0 %v647
    %3497 = vmatprep.subr.mxu0 %v644
    %3498 = vmatpush2.msra.mxu0 %v643
    %3499 = vmatprep.mubr.f32.mxu0 %v3361
    %3500 = vmatmul.mubr.f32.gmra.mxu0 %v3360
    %v3501 = vpop.f32.mrf.mxu0
    %v3502 = vadd.f32 %v314, %v3501
    %v3503 = vpop.f32.mrf.mxu0
    %v3504 = vadd.f32 %v318, %v3503
    %3505 = vdwg.mxu0
    %v3506 = vmul.f32 %v3431, 0.5
    %v3507 = vtanh.pop %v3506
    %v3508 = vmul.f32 %v3507, 0.5
    %v3509 = vadd.f32 %v3508, 0.5
    %v3510 = vmul.f32 %v3433, 0.5
    %v3511 = vtanh.pop %v3510
    %v3512 = vmul.f32 %v3511, 0.5
    %v3513 = vadd.f32 %v3512, 0.5
    %v3514 = vtanh.pop %v3502
    %v3515 = vmul.f32 %v3504, 0.5
    %v3516 = vtanh.pop %v3515
    %v3517 = vmul.f32 %v3516, 0.5
    %v3518 = vadd.f32 %v3517, 0.5
    %v3519 = vmul.f32 %v3513, %v3011
    %v3520 = vmul.f32 %v3509, %v3514
    %v3521 = vadd.f32 %v3519, %v3520
    %v3522 = vtanh.pop %v3521
    %v3523 = vmul.f32 %v3518, %v3522
    %3524 = vmatprep.subr.mxu0 %v926
    %3525 = vmatpush1.msra.mxu0 %v925
    %3526 = vmatprep.subr.mxu0 %v922
    %3527 = vmatpush1.msra.mxu0 %v921
    %3528 = vmatprep.subr.mxu0 %v918
    %3529 = vmatpush1.msra.mxu0 %v917
    %3530 = vmatprep.subr.mxu0 %v914
    %3531 = vmatpush1.msra.mxu0 %v913
    %3532 = vmatprep.subr.mxu0 %v910
    %3533 = vmatpush1.msra.mxu0 %v909
    %3534 = vmatprep.subr.mxu0 %v906
    %3535 = vmatpush1.msra.mxu0 %v905
    %3536 = vmatprep.subr.mxu0 %v902
    %3537 = vmatpush1.msra.mxu0 %v901
    %3538 = vmatprep.subr.mxu0 %v898
    %3539 = vmatpush1.msra.mxu0 %v897
    %3540 = vmatprep.subr.mxu0 %v894
    %3541 = vmatpush1.msra.mxu0 %v893
    %3542 = vmatprep.subr.mxu0 %v890
    %3543 = vmatpush1.msra.mxu0 %v889
    %3544 = vmatprep.subr.mxu0 %v886
    %3545 = vmatpush1.msra.mxu0 %v885
    %3546 = vmatprep.subr.mxu0 %v882
    %3547 = vmatpush1.msra.mxu0 %v881
    %3548 = vmatprep.subr.mxu0 %v878
    %3549 = vmatpush1.msra.mxu0 %v877
    %3550 = vmatprep.subr.mxu0 %v874
    %3551 = vmatpush1.msra.mxu0 %v873
    %3552 = vmatprep.subr.mxu0 %v870
    %3553 = vmatpush1.msra.mxu0 %v869
    %3554 = vmatprep.subr.mxu0 %v866
    %3555 = vmatpush1.msra.mxu0 %v865
    %3556 = vmatprep.subr.mxu0 %v990
    %3557 = vmatpush2.msra.mxu0 %v989
    %3558 = vmatprep.subr.mxu0 %v986
    %3559 = vmatpush2.msra.mxu0 %v985
    %3560 = vmatprep.subr.mxu0 %v982
    %3561 = vmatpush2.msra.mxu0 %v981
    %3562 = vmatprep.subr.mxu0 %v978
    %3563 = vmatpush2.msra.mxu0 %v977
    %3564 = vmatprep.subr.mxu0 %v974
    %3565 = vmatpush2.msra.mxu0 %v973
    %3566 = vmatprep.subr.mxu0 %v970
    %3567 = vmatpush2.msra.mxu0 %v969
    %3568 = vmatprep.subr.mxu0 %v966
    %3569 = vmatpush2.msra.mxu0 %v965
    %3570 = vmatprep.subr.mxu0 %v962
    %3571 = vmatpush2.msra.mxu0 %v961
    %3572 = vmatprep.subr.mxu0 %v958
    %3573 = vmatpush2.msra.mxu0 %v957
    %3574 = vmatprep.subr.mxu0 %v954
    %3575 = vmatpush2.msra.mxu0 %v953
    %3576 = vmatprep.subr.mxu0 %v950
    %3577 = vmatpush2.msra.mxu0 %v949
    %3578 = vmatprep.subr.mxu0 %v946
    %3579 = vmatpush2.msra.mxu0 %v945
    %3580 = vmatprep.subr.mxu0 %v942
    %3581 = vmatpush2.msra.mxu0 %v941
    %3582 = vmatprep.subr.mxu0 %v938
    %3583 = vmatpush2.msra.mxu0 %v937
    %3584 = vmatprep.subr.mxu0 %v934
    %3585 = vmatpush2.msra.mxu0 %v933
    %3586 = vmatprep.subr.mxu0 %v930
    %3587 = vmatpush2.msra.mxu0 %v929
    %3588 = vmatprep.mubr.f32.mxu0 %v3173
    %3589 = vmatmul.mubr.f32.gmra.mxu0 %v3523
    %v3590 = vpop.f32.mrf.mxu0
    %v3591 = vadd.f32 %v328, %v3590
    %v3592 = vpop.f32.mrf.mxu0
    %v3593 = vadd.f32 %v332, %v3592
    %3594 = vdwg.mxu0
    %3595 = vmatprep.subr.mxu0 %v928
    %3596 = vmatpush1.msra.mxu0 %v927
    %3597 = vmatprep.subr.mxu0 %v924
    %3598 = vmatpush1.msra.mxu0 %v923
    %3599 = vmatprep.subr.mxu0 %v920
    %3600 = vmatpush1.msra.mxu0 %v919
    %3601 = vmatprep.subr.mxu0 %v916
    %3602 = vmatpush1.msra.mxu0 %v915
    %3603 = vmatprep.subr.mxu0 %v912
    %3604 = vmatpush1.msra.mxu0 %v911
    %3605 = vmatprep.subr.mxu0 %v908
    %3606 = vmatpush1.msra.mxu0 %v907
    %3607 = vmatprep.subr.mxu0 %v904
    %3608 = vmatpush1.msra.mxu0 %v903
    %3609 = vmatprep.subr.mxu0 %v900
    %3610 = vmatpush1.msra.mxu0 %v899
    %3611 = vmatprep.subr.mxu0 %v896
    %3612 = vmatpush1.msra.mxu0 %v895
    %3613 = vmatprep.subr.mxu0 %v892
    %3614 = vmatpush1.msra.mxu0 %v891
    %3615 = vmatprep.subr.mxu0 %v888
    %3616 = vmatpush1.msra.mxu0 %v887
    %3617 = vmatprep.subr.mxu0 %v884
    %3618 = vmatpush1.msra.mxu0 %v883
    %3619 = vmatprep.subr.mxu0 %v880
    %3620 = vmatpush1.msra.mxu0 %v879
    %3621 = vmatprep.subr.mxu0 %v876
    %3622 = vmatpush1.msra.mxu0 %v875
    %3623 = vmatprep.subr.mxu0 %v872
    %3624 = vmatpush1.msra.mxu0 %v871
    %3625 = vmatprep.subr.mxu0 %v868
    %3626 = vmatpush1.msra.mxu0 %v867
    %3627 = vmatprep.subr.mxu0 %v992
    %3628 = vmatpush2.msra.mxu0 %v991
    %3629 = vmatprep.subr.mxu0 %v988
    %3630 = vmatpush2.msra.mxu0 %v987
    %3631 = vmatprep.subr.mxu0 %v984
    %3632 = vmatpush2.msra.mxu0 %v983
    %3633 = vmatprep.subr.mxu0 %v980
    %3634 = vmatpush2.msra.mxu0 %v979
    %3635 = vmatprep.subr.mxu0 %v976
    %3636 = vmatpush2.msra.mxu0 %v975
    %3637 = vmatprep.subr.mxu0 %v972
    %3638 = vmatpush2.msra.mxu0 %v971
    %3639 = vmatprep.subr.mxu0 %v968
    %3640 = vmatpush2.msra.mxu0 %v967
    %3641 = vmatprep.subr.mxu0 %v964
    %3642 = vmatpush2.msra.mxu0 %v963
    %3643 = vmatprep.subr.mxu0 %v960
    %3644 = vmatpush2.msra.mxu0 %v959
    %3645 = vmatprep.subr.mxu0 %v956
    %3646 = vmatpush2.msra.mxu0 %v955
    %3647 = vmatprep.subr.mxu0 %v952
    %3648 = vmatpush2.msra.mxu0 %v951
    %3649 = vmatprep.subr.mxu0 %v948
    %3650 = vmatpush2.msra.mxu0 %v947
    %3651 = vmatprep.subr.mxu0 %v944
    %3652 = vmatpush2.msra.mxu0 %v943
    %3653 = vmatprep.subr.mxu0 %v940
    %3654 = vmatpush2.msra.mxu0 %v939
    %3655 = vmatprep.subr.mxu0 %v936
    %3656 = vmatpush2.msra.mxu0 %v935
    %3657 = vmatprep.subr.mxu0 %v932
    %3658 = vmatpush2.msra.mxu0 %v931
    %3659 = vmatprep.mubr.f32.mxu0 %v3173
    %3660 = vmatmul.mubr.f32.gmra.mxu0 %v3523
    %v3661 = vpop.f32.mrf.mxu0
    %v3662 = vadd.f32 %v336, %v3661
    %v3663 = vpop.f32.mrf.mxu0
    %v3664 = vadd.f32 %v340, %v3663
    %3665 = vdwg.mxu0
    %v3666 = vmul.f32 %v3591, 0.5
    %v3667 = vtanh.pop %v3666
    %v3668 = vmul.f32 %v3667, 0.5
    %v3669 = vadd.f32 %v3668, 0.5
    %v3670 = vmul.f32 %v3593, 0.5
    %v3671 = vtanh.pop %v3670
    %v3672 = vmul.f32 %v3671, 0.5
    %v3673 = vadd.f32 %v3672, 0.5
    %v3674 = vtanh.pop %v3662
    %v3675 = vmul.f32 %v3664, 0.5
    %v3676 = vtanh.pop %v3675
    %v3677 = vmul.f32 %v3676, 0.5
    %v3678 = vadd.f32 %v3677, 0.5
    %v3679 = vmul.f32 %v3673, %v3171
    %v3680 = vmul.f32 %v3669, %v3674
    %v3681 = vadd.f32 %v3679, %v3680
    %v3682 = vtanh.pop %v3681
    %v3683 = vmul.f32 %v3678, %v3682
    %v3684 = vld [vmem:[#allocation2 + $0x20] sm:$0x30]
    %v3685 = vld [vmem:[#allocation2 + $0x28] sm:$0x30]
    %v3686 = vld [vmem:[#allocation2 + $0x30] sm:$0x30]
    %v3687 = vld [vmem:[#allocation2 + $0x38] sm:$0x30]
    %3688 = vmatprep.subr.mxu0 %v410
    %3689 = vmatpush1.msra.mxu0 %v409
    %3690 = vmatprep.subr.mxu0 %v406
    %3691 = vmatpush1.msra.mxu0 %v405
    %3692 = vmatprep.subr.mxu0 %v402
    %3693 = vmatpush1.msra.mxu0 %v401
    %3694 = vmatprep.subr.mxu0 %v398
    %3695 = vmatpush1.msra.mxu0 %v397
    %3696 = vmatprep.subr.mxu0 %v394
    %3697 = vmatpush1.msra.mxu0 %v393
    %3698 = vmatprep.subr.mxu0 %v390
    %3699 = vmatpush1.msra.mxu0 %v389
    %3700 = vmatprep.subr.mxu0 %v386
    %3701 = vmatpush1.msra.mxu0 %v385
    %3702 = vmatprep.subr.mxu0 %v382
    %3703 = vmatpush1.msra.mxu0 %v381
    %3704 = vmatprep.subr.mxu0 %v378
    %3705 = vmatpush1.msra.mxu0 %v377
    %3706 = vmatprep.subr.mxu0 %v374
    %3707 = vmatpush1.msra.mxu0 %v373
    %3708 = vmatprep.subr.mxu0 %v370
    %3709 = vmatpush1.msra.mxu0 %v369
    %3710 = vmatprep.subr.mxu0 %v366
    %3711 = vmatpush1.msra.mxu0 %v365
    %3712 = vmatprep.subr.mxu0 %v362
    %3713 = vmatpush1.msra.mxu0 %v361
    %3714 = vmatprep.subr.mxu0 %v358
    %3715 = vmatpush1.msra.mxu0 %v357
    %3716 = vmatprep.subr.mxu0 %v354
    %3717 = vmatpush1.msra.mxu0 %v353
    %3718 = vmatprep.subr.mxu0 %v350
    %3719 = vmatpush1.msra.mxu0 %v349
    %3720 = vmatprep.subr.mxu0 0.0
    %3721 = vmatpush2.msra.mxu0 0.0
    %3722 = vmatprep.subr.mxu0 0.0
    %3723 = vmatpush2.msra.mxu0 0.0
    %3724 = vmatprep.subr.mxu0 0.0
    %3725 = vmatpush2.msra.mxu0 0.0
    %3726 = vmatprep.subr.mxu0 0.0
    %3727 = vmatpush2.msra.mxu0 0.0
    %3728 = vmatprep.subr.mxu0 0.0
    %3729 = vmatpush2.msra.mxu0 0.0
    %3730 = vmatprep.subr.mxu0 0.0
    %3731 = vmatpush2.msra.mxu0 0.0
    %3732 = vmatprep.subr.mxu0 0.0
    %3733 = vmatpush2.msra.mxu0 0.0
    %3734 = vmatprep.subr.mxu0 0.0
    %3735 = vmatpush2.msra.mxu0 0.0
    %3736 = vmatprep.subr.mxu0 0.0
    %3737 = vmatpush2.msra.mxu0 0.0
    %3738 = vmatprep.subr.mxu0 0.0
    %3739 = vmatpush2.msra.mxu0 0.0
    %3740 = vmatprep.subr.mxu0 0.0
    %3741 = vmatpush2.msra.mxu0 0.0
    %3742 = vmatprep.subr.mxu0 0.0
    %3743 = vmatpush2.msra.mxu0 0.0
    %3744 = vmatprep.subr.mxu0 0.0
    %3745 = vmatpush2.msra.mxu0 0.0
    %3746 = vmatprep.subr.mxu0 0.0
    %3747 = vmatpush2.msra.mxu0 0.0
    %3748 = vmatprep.subr.mxu0 0.0
    %3749 = vmatpush2.msra.mxu0 0.0
    %3750 = vmatprep.subr.mxu0 0.0
    %3751 = vmatpush2.msra.mxu0 0.0
    %3752 = vmatprep.mubr.f32.mxu0 0.0
    %3753 = vmatmul.mubr.f32.gmra.mxu0 %v3360
    %v3754 = vpop.f32.mrf.mxu0
    %v3755 = vadd.f32 0.0, %v3754
    %v3756 = vpop.f32.mrf.mxu0
    %v3757 = vadd.f32 0.0, %v3756
    %3758 = vdwg.mxu0
    %3759 = vmatprep.subr.mxu0 %v412
    %3760 = vmatpush1.msra.mxu0 %v411
    %3761 = vmatprep.subr.mxu0 %v408
    %3762 = vmatpush1.msra.mxu0 %v407
    %3763 = vmatprep.subr.mxu0 %v404
    %3764 = vmatpush1.msra.mxu0 %v403
    %3765 = vmatprep.subr.mxu0 %v400
    %3766 = vmatpush1.msra.mxu0 %v399
    %3767 = vmatprep.subr.mxu0 %v396
    %3768 = vmatpush1.msra.mxu0 %v395
    %3769 = vmatprep.subr.mxu0 %v392
    %3770 = vmatpush1.msra.mxu0 %v391
    %3771 = vmatprep.subr.mxu0 %v388
    %3772 = vmatpush1.msra.mxu0 %v387
    %3773 = vmatprep.subr.mxu0 %v384
    %3774 = vmatpush1.msra.mxu0 %v383
    %3775 = vmatprep.subr.mxu0 %v380
    %3776 = vmatpush1.msra.mxu0 %v379
    %3777 = vmatprep.subr.mxu0 %v376
    %3778 = vmatpush1.msra.mxu0 %v375
    %3779 = vmatprep.subr.mxu0 %v372
    %3780 = vmatpush1.msra.mxu0 %v371
    %3781 = vmatprep.subr.mxu0 %v368
    %3782 = vmatpush1.msra.mxu0 %v367
    %3783 = vmatprep.subr.mxu0 %v364
    %3784 = vmatpush1.msra.mxu0 %v363
    %3785 = vmatprep.subr.mxu0 %v360
    %3786 = vmatpush1.msra.mxu0 %v359
    %3787 = vmatprep.subr.mxu0 %v356
    %3788 = vmatpush1.msra.mxu0 %v355
    %3789 = vmatprep.subr.mxu0 %v352
    %3790 = vmatpush1.msra.mxu0 %v351
    %3791 = vmatprep.subr.mxu0 0.0
    %3792 = vmatpush2.msra.mxu0 0.0
    %3793 = vmatprep.subr.mxu0 0.0
    %3794 = vmatpush2.msra.mxu0 0.0
    %3795 = vmatprep.subr.mxu0 0.0
    %3796 = vmatpush2.msra.mxu0 0.0
    %3797 = vmatprep.subr.mxu0 0.0
    %3798 = vmatpush2.msra.mxu0 0.0
    %3799 = vmatprep.subr.mxu0 0.0
    %3800 = vmatpush2.msra.mxu0 0.0
    %3801 = vmatprep.subr.mxu0 0.0
    %3802 = vmatpush2.msra.mxu0 0.0
    %3803 = vmatprep.subr.mxu0 0.0
    %3804 = vmatpush2.msra.mxu0 0.0
    %3805 = vmatprep.subr.mxu0 0.0
    %3806 = vmatpush2.msra.mxu0 0.0
    %3807 = vmatprep.subr.mxu0 0.0
    %3808 = vmatpush2.msra.mxu0 0.0
    %3809 = vmatprep.subr.mxu0 0.0
    %3810 = vmatpush2.msra.mxu0 0.0
    %3811 = vmatprep.subr.mxu0 0.0
    %3812 = vmatpush2.msra.mxu0 0.0
    %3813 = vmatprep.subr.mxu0 0.0
    %3814 = vmatpush2.msra.mxu0 0.0
    %3815 = vmatprep.subr.mxu0 0.0
    %3816 = vmatpush2.msra.mxu0 0.0
    %3817 = vmatprep.subr.mxu0 0.0
    %3818 = vmatpush2.msra.mxu0 0.0
    %3819 = vmatprep.subr.mxu0 0.0
    %3820 = vmatpush2.msra.mxu0 0.0
    %3821 = vmatprep.subr.mxu0 0.0
    %3822 = vmatpush2.msra.mxu0 0.0
    %3823 = vmatprep.mubr.f32.mxu0 0.0
    %3824 = vmatmul.mubr.f32.gmra.mxu0 %v3360
    %v3825 = vpop.f32.mrf.mxu0
    %v3826 = vadd.f32 0.0, %v3825
    %v3827 = vpop.f32.mrf.mxu0
    %v3828 = vadd.f32 0.0, %v3827
    %3829 = vdwg.mxu0
    %v3834 = vrot.slane %v3755, 4
    %v3835 = vrot.slane %v3757, 4
    %v3836 = vrot.slane %v3826, 4
    %v3837 = vrot.slane %v3828, 4
    %v3842 = vadd.f32 %v3684, %v3834
    %v3843 = vadd.f32 %v3685, %v3835
    %v3844 = vadd.f32 %v3686, %v3836
    %v3845 = vadd.f32 %v3687, %v3837
    %v3846 = vmul.f32 %v3842, 0.5
    %v3847 = vtanh.pop %v3846
    %v3848 = vmul.f32 %v3847, 0.5
    %v3849 = vadd.f32 %v3848, 0.5
    %v3850 = vmul.f32 %v3843, 0.5
    %v3851 = vtanh.pop %v3850
    %v3852 = vmul.f32 %v3851, 0.5
    %v3853 = vadd.f32 %v3852, 0.5
    %v3854 = vtanh.pop %v3844
    %v3855 = vmul.f32 %v3845, 0.5
    %v3856 = vtanh.pop %v3855
    %v3857 = vmul.f32 %v3856, 0.5
    %v3858 = vadd.f32 %v3857, 0.5
    %v3860 = vrot.slane %v3354, 6
    %v3862 = vmul.f32 %v3853, %v3860
    %v3863 = vmul.f32 %v3849, %v3854
    %v3864 = vadd.f32 %v3862, %v3863
    %v3865 = vtanh.pop %v3864
    %v3866 = vmul.f32 %v3858, %v3865
    %v3868 = vrot.slane %v3523, 4
    %v3870 = vrot.slane %v3866, 4
    %v3871 = vrot.slane %v3868, 4
    %3874 = vmatprep.subr.mxu0 %v638
    %3875 = vmatpush1.msra.mxu0 %v637
    %3876 = vmatprep.subr.mxu0 %v634
    %3877 = vmatpush1.msra.mxu0 %v633
    %3878 = vmatprep.subr.mxu0 %v630
    %3879 = vmatpush1.msra.mxu0 %v629
    %3880 = vmatprep.subr.mxu0 %v626
    %3881 = vmatpush1.msra.mxu0 %v625
    %3882 = vmatprep.subr.mxu0 %v622
    %3883 = vmatpush1.msra.mxu0 %v621
    %3884 = vmatprep.subr.mxu0 %v618
    %3885 = vmatpush1.msra.mxu0 %v617
    %3886 = vmatprep.subr.mxu0 %v614
    %3887 = vmatpush1.msra.mxu0 %v613
    %3888 = vmatprep.subr.mxu0 %v610
    %3889 = vmatpush1.msra.mxu0 %v609
    %3890 = vmatprep.subr.mxu0 %v606
    %3891 = vmatpush1.msra.mxu0 %v605
    %3892 = vmatprep.subr.mxu0 %v602
    %3893 = vmatpush1.msra.mxu0 %v601
    %3894 = vmatprep.subr.mxu0 %v598
    %3895 = vmatpush1.msra.mxu0 %v597
    %3896 = vmatprep.subr.mxu0 %v594
    %3897 = vmatpush1.msra.mxu0 %v593
    %3898 = vmatprep.subr.mxu0 %v590
    %3899 = vmatpush1.msra.mxu0 %v589
    %3900 = vmatprep.subr.mxu0 %v586
    %3901 = vmatpush1.msra.mxu0 %v585
    %3902 = vmatprep.subr.mxu0 %v582
    %3903 = vmatpush1.msra.mxu0 %v581
    %3904 = vmatprep.subr.mxu0 %v578
    %3905 = vmatpush1.msra.mxu0 %v577
    %3906 = vmatprep.subr.mxu0 %v702
    %3907 = vmatpush2.msra.mxu0 %v701
    %3908 = vmatprep.subr.mxu0 %v698
    %3909 = vmatpush2.msra.mxu0 %v697
    %3910 = vmatprep.subr.mxu0 %v694
    %3911 = vmatpush2.msra.mxu0 %v693
    %3912 = vmatprep.subr.mxu0 %v690
    %3913 = vmatpush2.msra.mxu0 %v689
    %3914 = vmatprep.subr.mxu0 %v686
    %3915 = vmatpush2.msra.mxu0 %v685
    %3916 = vmatprep.subr.mxu0 %v682
    %3917 = vmatpush2.msra.mxu0 %v681
    %3918 = vmatprep.subr.mxu0 %v678
    %3919 = vmatpush2.msra.mxu0 %v677
    %3920 = vmatprep.subr.mxu0 %v674
    %3921 = vmatpush2.msra.mxu0 %v673
    %3922 = vmatprep.subr.mxu0 %v670
    %3923 = vmatpush2.msra.mxu0 %v669
    %3924 = vmatprep.subr.mxu0 %v666
    %3925 = vmatpush2.msra.mxu0 %v665
    %3926 = vmatprep.subr.mxu0 %v662
    %3927 = vmatpush2.msra.mxu0 %v661
    %3928 = vmatprep.subr.mxu0 %v658
    %3929 = vmatpush2.msra.mxu0 %v657
    %3930 = vmatprep.subr.mxu0 %v654
    %3931 = vmatpush2.msra.mxu0 %v653
    %3932 = vmatprep.subr.mxu0 %v650
    %3933 = vmatpush2.msra.mxu0 %v649
    %3934 = vmatprep.subr.mxu0 %v646
    %3935 = vmatpush2.msra.mxu0 %v645
    %3936 = vmatprep.subr.mxu0 %v642
    %3937 = vmatpush2.msra.mxu0 %v641
    %3938 = vmatprep.mubr.f32.mxu0 %v3871
    %3939 = vmatmul.mubr.f32.gmra.mxu0 %v3870
    %v3940 = vpop.f32.mrf.mxu0
    %v3941 = vadd.f32 %v306, %v3940
    %v3942 = vpop.f32.mrf.mxu0
    %v3943 = vadd.f32 %v310, %v3942
    %3944 = vdwg.mxu0
    %3945 = vmatprep.subr.mxu0 %v640
    %3946 = vmatpush1.msra.mxu0 %v639
    %3947 = vmatprep.subr.mxu0 %v636
    %3948 = vmatpush1.msra.mxu0 %v635
    %3949 = vmatprep.subr.mxu0 %v632
    %3950 = vmatpush1.msra.mxu0 %v631
    %3951 = vmatprep.subr.mxu0 %v628
    %3952 = vmatpush1.msra.mxu0 %v627
    %3953 = vmatprep.subr.mxu0 %v624
    %3954 = vmatpush1.msra.mxu0 %v623
    %3955 = vmatprep.subr.mxu0 %v620
    %3956 = vmatpush1.msra.mxu0 %v619
    %3957 = vmatprep.subr.mxu0 %v616
    %3958 = vmatpush1.msra.mxu0 %v615
    %3959 = vmatprep.subr.mxu0 %v612
    %3960 = vmatpush1.msra.mxu0 %v611
    %3961 = vmatprep.subr.mxu0 %v608
    %3962 = vmatpush1.msra.mxu0 %v607
    %3963 = vmatprep.subr.mxu0 %v604
    %3964 = vmatpush1.msra.mxu0 %v603
    %3965 = vmatprep.subr.mxu0 %v600
    %3966 = vmatpush1.msra.mxu0 %v599
    %3967 = vmatprep.subr.mxu0 %v596
    %3968 = vmatpush1.msra.mxu0 %v595
    %3969 = vmatprep.subr.mxu0 %v592
    %3970 = vmatpush1.msra.mxu0 %v591
    %3971 = vmatprep.subr.mxu0 %v588
    %3972 = vmatpush1.msra.mxu0 %v587
    %3973 = vmatprep.subr.mxu0 %v584
    %3974 = vmatpush1.msra.mxu0 %v583
    %3975 = vmatprep.subr.mxu0 %v580
    %3976 = vmatpush1.msra.mxu0 %v579
    %3977 = vmatprep.subr.mxu0 %v704
    %3978 = vmatpush2.msra.mxu0 %v703
    %3979 = vmatprep.subr.mxu0 %v700
    %3980 = vmatpush2.msra.mxu0 %v699
    %3981 = vmatprep.subr.mxu0 %v696
    %3982 = vmatpush2.msra.mxu0 %v695
    %3983 = vmatprep.subr.mxu0 %v692
    %3984 = vmatpush2.msra.mxu0 %v691
    %3985 = vmatprep.subr.mxu0 %v688
    %3986 = vmatpush2.msra.mxu0 %v687
    %3987 = vmatprep.subr.mxu0 %v684
    %3988 = vmatpush2.msra.mxu0 %v683
    %3989 = vmatprep.subr.mxu0 %v680
    %3990 = vmatpush2.msra.mxu0 %v679
    %3991 = vmatprep.subr.mxu0 %v676
    %3992 = vmatpush2.msra.mxu0 %v675
    %3993 = vmatprep.subr.mxu0 %v672
    %3994 = vmatpush2.msra.mxu0 %v671
    %3995 = vmatprep.subr.mxu0 %v668
    %3996 = vmatpush2.msra.mxu0 %v667
    %3997 = vmatprep.subr.mxu0 %v664
    %3998 = vmatpush2.msra.mxu0 %v663
    %3999 = vmatprep.subr.mxu0 %v660
    %4000 = vmatpush2.msra.mxu0 %v659
    %4001 = vmatprep.subr.mxu0 %v656
    %4002 = vmatpush2.msra.mxu0 %v655
    %4003 = vmatprep.subr.mxu0 %v652
    %4004 = vmatpush2.msra.mxu0 %v651
    %4005 = vmatprep.subr.mxu0 %v648
    %4006 = vmatpush2.msra.mxu0 %v647
    %4007 = vmatprep.subr.mxu0 %v644
    %4008 = vmatpush2.msra.mxu0 %v643
    %4009 = vmatprep.mubr.f32.mxu0 %v3871
    %4010 = vmatmul.mubr.f32.gmra.mxu0 %v3870
    %v4011 = vpop.f32.mrf.mxu0
    %v4012 = vadd.f32 %v314, %v4011
    %v4013 = vpop.f32.mrf.mxu0
    %v4014 = vadd.f32 %v318, %v4013
    %4015 = vdwg.mxu0
    %v4016 = vmul.f32 %v3941, 0.5
    %v4017 = vtanh.pop %v4016
    %v4018 = vmul.f32 %v4017, 0.5
    %v4019 = vadd.f32 %v4018, 0.5
    %v4020 = vmul.f32 %v3943, 0.5
    %v4021 = vtanh.pop %v4020
    %v4022 = vmul.f32 %v4021, 0.5
    %v4023 = vadd.f32 %v4022, 0.5
    %v4024 = vtanh.pop %v4012
    %v4025 = vmul.f32 %v4014, 0.5
    %v4026 = vtanh.pop %v4025
    %v4027 = vmul.f32 %v4026, 0.5
    %v4028 = vadd.f32 %v4027, 0.5
    %v4029 = vmul.f32 %v4023, %v3521
    %v4030 = vmul.f32 %v4019, %v4024
    %v4031 = vadd.f32 %v4029, %v4030
    %v4032 = vtanh.pop %v4031
    %v4033 = vmul.f32 %v4028, %v4032
    %4034 = vmatprep.subr.mxu0 %v926
    %4035 = vmatpush1.msra.mxu0 %v925
    %4036 = vmatprep.subr.mxu0 %v922
    %4037 = vmatpush1.msra.mxu0 %v921
    %4038 = vmatprep.subr.mxu0 %v918
    %4039 = vmatpush1.msra.mxu0 %v917
    %4040 = vmatprep.subr.mxu0 %v914
    %4041 = vmatpush1.msra.mxu0 %v913
    %4042 = vmatprep.subr.mxu0 %v910
    %4043 = vmatpush1.msra.mxu0 %v909
    %4044 = vmatprep.subr.mxu0 %v906
    %4045 = vmatpush1.msra.mxu0 %v905
    %4046 = vmatprep.subr.mxu0 %v902
    %4047 = vmatpush1.msra.mxu0 %v901
    %4048 = vmatprep.subr.mxu0 %v898
    %4049 = vmatpush1.msra.mxu0 %v897
    %4050 = vmatprep.subr.mxu0 %v894
    %4051 = vmatpush1.msra.mxu0 %v893
    %4052 = vmatprep.subr.mxu0 %v890
    %4053 = vmatpush1.msra.mxu0 %v889
    %4054 = vmatprep.subr.mxu0 %v886
    %4055 = vmatpush1.msra.mxu0 %v885
    %4056 = vmatprep.subr.mxu0 %v882
    %4057 = vmatpush1.msra.mxu0 %v881
    %4058 = vmatprep.subr.mxu0 %v878
    %4059 = vmatpush1.msra.mxu0 %v877
    %4060 = vmatprep.subr.mxu0 %v874
    %4061 = vmatpush1.msra.mxu0 %v873
    %4062 = vmatprep.subr.mxu0 %v870
    %4063 = vmatpush1.msra.mxu0 %v869
    %4064 = vmatprep.subr.mxu0 %v866
    %4065 = vmatpush1.msra.mxu0 %v865
    %4066 = vmatprep.subr.mxu0 %v990
    %4067 = vmatpush2.msra.mxu0 %v989
    %4068 = vmatprep.subr.mxu0 %v986
    %4069 = vmatpush2.msra.mxu0 %v985
    %4070 = vmatprep.subr.mxu0 %v982
    %4071 = vmatpush2.msra.mxu0 %v981
    %4072 = vmatprep.subr.mxu0 %v978
    %4073 = vmatpush2.msra.mxu0 %v977
    %4074 = vmatprep.subr.mxu0 %v974
    %4075 = vmatpush2.msra.mxu0 %v973
    %4076 = vmatprep.subr.mxu0 %v970
    %4077 = vmatpush2.msra.mxu0 %v969
    %4078 = vmatprep.subr.mxu0 %v966
    %4079 = vmatpush2.msra.mxu0 %v965
    %4080 = vmatprep.subr.mxu0 %v962
    %4081 = vmatpush2.msra.mxu0 %v961
    %4082 = vmatprep.subr.mxu0 %v958
    %4083 = vmatpush2.msra.mxu0 %v957
    %4084 = vmatprep.subr.mxu0 %v954
    %4085 = vmatpush2.msra.mxu0 %v953
    %4086 = vmatprep.subr.mxu0 %v950
    %4087 = vmatpush2.msra.mxu0 %v949
    %4088 = vmatprep.subr.mxu0 %v946
    %4089 = vmatpush2.msra.mxu0 %v945
    %4090 = vmatprep.subr.mxu0 %v942
    %4091 = vmatpush2.msra.mxu0 %v941
    %4092 = vmatprep.subr.mxu0 %v938
    %4093 = vmatpush2.msra.mxu0 %v937
    %4094 = vmatprep.subr.mxu0 %v934
    %4095 = vmatpush2.msra.mxu0 %v933
    %4096 = vmatprep.subr.mxu0 %v930
    %4097 = vmatpush2.msra.mxu0 %v929
    %4098 = vmatprep.mubr.f32.mxu0 %v3683
    %4099 = vmatmul.mubr.f32.gmra.mxu0 %v4033
    %v4100 = vpop.f32.mrf.mxu0
    %v4101 = vadd.f32 %v328, %v4100
    %v4102 = vpop.f32.mrf.mxu0
    %v4103 = vadd.f32 %v332, %v4102
    %4104 = vdwg.mxu0
    %4105 = vmatprep.subr.mxu0 %v928
    %4106 = vmatpush1.msra.mxu0 %v927
    %4107 = vmatprep.subr.mxu0 %v924
    %4108 = vmatpush1.msra.mxu0 %v923
    %4109 = vmatprep.subr.mxu0 %v920
    %4110 = vmatpush1.msra.mxu0 %v919
    %4111 = vmatprep.subr.mxu0 %v916
    %4112 = vmatpush1.msra.mxu0 %v915
    %4113 = vmatprep.subr.mxu0 %v912
    %4114 = vmatpush1.msra.mxu0 %v911
    %4115 = vmatprep.subr.mxu0 %v908
    %4116 = vmatpush1.msra.mxu0 %v907
    %4117 = vmatprep.subr.mxu0 %v904
    %4118 = vmatpush1.msra.mxu0 %v903
    %4119 = vmatprep.subr.mxu0 %v900
    %4120 = vmatpush1.msra.mxu0 %v899
    %4121 = vmatprep.subr.mxu0 %v896
    %4122 = vmatpush1.msra.mxu0 %v895
    %4123 = vmatprep.subr.mxu0 %v892
    %4124 = vmatpush1.msra.mxu0 %v891
    %4125 = vmatprep.subr.mxu0 %v888
    %4126 = vmatpush1.msra.mxu0 %v887
    %4127 = vmatprep.subr.mxu0 %v884
    %4128 = vmatpush1.msra.mxu0 %v883
    %4129 = vmatprep.subr.mxu0 %v880
    %4130 = vmatpush1.msra.mxu0 %v879
    %4131 = vmatprep.subr.mxu0 %v876
    %4132 = vmatpush1.msra.mxu0 %v875
    %4133 = vmatprep.subr.mxu0 %v872
    %4134 = vmatpush1.msra.mxu0 %v871
    %4135 = vmatprep.subr.mxu0 %v868
    %4136 = vmatpush1.msra.mxu0 %v867
    %4137 = vmatprep.subr.mxu0 %v992
    %4138 = vmatpush2.msra.mxu0 %v991
    %4139 = vmatprep.subr.mxu0 %v988
    %4140 = vmatpush2.msra.mxu0 %v987
    %4141 = vmatprep.subr.mxu0 %v984
    %4142 = vmatpush2.msra.mxu0 %v983
    %4143 = vmatprep.subr.mxu0 %v980
    %4144 = vmatpush2.msra.mxu0 %v979
    %4145 = vmatprep.subr.mxu0 %v976
    %4146 = vmatpush2.msra.mxu0 %v975
    %4147 = vmatprep.subr.mxu0 %v972
    %4148 = vmatpush2.msra.mxu0 %v971
    %4149 = vmatprep.subr.mxu0 %v968
    %4150 = vmatpush2.msra.mxu0 %v967
    %4151 = vmatprep.subr.mxu0 %v964
    %4152 = vmatpush2.msra.mxu0 %v963
    %4153 = vmatprep.subr.mxu0 %v960
    %4154 = vmatpush2.msra.mxu0 %v959
    %4155 = vmatprep.subr.mxu0 %v956
    %4156 = vmatpush2.msra.mxu0 %v955
    %4157 = vmatprep.subr.mxu0 %v952
    %4158 = vmatpush2.msra.mxu0 %v951
    %4159 = vmatprep.subr.mxu0 %v948
    %4160 = vmatpush2.msra.mxu0 %v947
    %4161 = vmatprep.subr.mxu0 %v944
    %4162 = vmatpush2.msra.mxu0 %v943
    %4163 = vmatprep.subr.mxu0 %v940
    %4164 = vmatpush2.msra.mxu0 %v939
    %4165 = vmatprep.subr.mxu0 %v936
    %4166 = vmatpush2.msra.mxu0 %v935
    %4167 = vmatprep.subr.mxu0 %v932
    %4168 = vmatpush2.msra.mxu0 %v931
    %4169 = vmatprep.mubr.f32.mxu0 %v3683
    %4170 = vmatmul.mubr.f32.gmra.mxu0 %v4033
    %v4171 = vpop.f32.mrf.mxu0
    %v4172 = vadd.f32 %v336, %v4171
    %v4173 = vpop.f32.mrf.mxu0
    %v4174 = vadd.f32 %v340, %v4173
    %4175 = vdwg.mxu0
    %v4176 = vmul.f32 %v4101, 0.5
    %v4177 = vtanh.pop %v4176
    %v4178 = vmul.f32 %v4177, 0.5
    %v4179 = vadd.f32 %v4178, 0.5
    %v4180 = vmul.f32 %v4103, 0.5
    %v4181 = vtanh.pop %v4180
    %v4182 = vmul.f32 %v4181, 0.5
    %v4183 = vadd.f32 %v4182, 0.5
    %v4184 = vtanh.pop %v4172
    %v4185 = vmul.f32 %v4174, 0.5
    %v4186 = vtanh.pop %v4185
    %v4187 = vmul.f32 %v4186, 0.5
    %v4188 = vadd.f32 %v4187, 0.5
    %v4189 = vmul.f32 %v4183, %v3681
    %v4190 = vmul.f32 %v4179, %v4184
    %v4191 = vadd.f32 %v4189, %v4190
    %v4192 = vtanh.pop %v4191
    %v4193 = vmul.f32 %v4188, %v4192
    %v4194 = vld [vmem:[#allocation2 + $0x20] sm:$0xc0]
    %v4195 = vld [vmem:[#allocation2 + $0x28] sm:$0xc0]
    %v4196 = vld [vmem:[#allocation2 + $0x30] sm:$0xc0]
    %v4197 = vld [vmem:[#allocation2 + $0x38] sm:$0xc0]
    %4198 = vmatprep.subr.mxu0 %v410
    %4199 = vmatpush1.msra.mxu0 %v409
    %4200 = vmatprep.subr.mxu0 %v406
    %4201 = vmatpush1.msra.mxu0 %v405
    %4202 = vmatprep.subr.mxu0 %v402
    %4203 = vmatpush1.msra.mxu0 %v401
    %4204 = vmatprep.subr.mxu0 %v398
    %4205 = vmatpush1.msra.mxu0 %v397
    %4206 = vmatprep.subr.mxu0 %v394
    %4207 = vmatpush1.msra.mxu0 %v393
    %4208 = vmatprep.subr.mxu0 %v390
    %4209 = vmatpush1.msra.mxu0 %v389
    %4210 = vmatprep.subr.mxu0 %v386
    %4211 = vmatpush1.msra.mxu0 %v385
    %4212 = vmatprep.subr.mxu0 %v382
    %4213 = vmatpush1.msra.mxu0 %v381
    %4214 = vmatprep.subr.mxu0 %v378
    %4215 = vmatpush1.msra.mxu0 %v377
    %4216 = vmatprep.subr.mxu0 %v374
    %4217 = vmatpush1.msra.mxu0 %v373
    %4218 = vmatprep.subr.mxu0 %v370
    %4219 = vmatpush1.msra.mxu0 %v369
    %4220 = vmatprep.subr.mxu0 %v366
    %4221 = vmatpush1.msra.mxu0 %v365
    %4222 = vmatprep.subr.mxu0 %v362
    %4223 = vmatpush1.msra.mxu0 %v361
    %4224 = vmatprep.subr.mxu0 %v358
    %4225 = vmatpush1.msra.mxu0 %v357
    %4226 = vmatprep.subr.mxu0 %v354
    %4227 = vmatpush1.msra.mxu0 %v353
    %4228 = vmatprep.subr.mxu0 %v350
    %4229 = vmatpush1.msra.mxu0 %v349
    %4230 = vmatprep.subr.mxu0 0.0
    %4231 = vmatpush2.msra.mxu0 0.0
    %4232 = vmatprep.subr.mxu0 0.0
    %4233 = vmatpush2.msra.mxu0 0.0
    %4234 = vmatprep.subr.mxu0 0.0
    %4235 = vmatpush2.msra.mxu0 0.0
    %4236 = vmatprep.subr.mxu0 0.0
    %4237 = vmatpush2.msra.mxu0 0.0
    %4238 = vmatprep.subr.mxu0 0.0
    %4239 = vmatpush2.msra.mxu0 0.0
    %4240 = vmatprep.subr.mxu0 0.0
    %4241 = vmatpush2.msra.mxu0 0.0
    %4242 = vmatprep.subr.mxu0 0.0
    %4243 = vmatpush2.msra.mxu0 0.0
    %4244 = vmatprep.subr.mxu0 0.0
    %4245 = vmatpush2.msra.mxu0 0.0
    %4246 = vmatprep.subr.mxu0 0.0
    %4247 = vmatpush2.msra.mxu0 0.0
    %4248 = vmatprep.subr.mxu0 0.0
    %4249 = vmatpush2.msra.mxu0 0.0
    %4250 = vmatprep.subr.mxu0 0.0
    %4251 = vmatpush2.msra.mxu0 0.0
    %4252 = vmatprep.subr.mxu0 0.0
    %4253 = vmatpush2.msra.mxu0 0.0
    %4254 = vmatprep.subr.mxu0 0.0
    %4255 = vmatpush2.msra.mxu0 0.0
    %4256 = vmatprep.subr.mxu0 0.0
    %4257 = vmatpush2.msra.mxu0 0.0
    %4258 = vmatprep.subr.mxu0 0.0
    %4259 = vmatpush2.msra.mxu0 0.0
    %4260 = vmatprep.subr.mxu0 0.0
    %4261 = vmatpush2.msra.mxu0 0.0
    %4262 = vmatprep.mubr.f32.mxu0 0.0
    %4263 = vmatmul.mubr.f32.gmra.mxu0 %v3870
    %v4264 = vpop.f32.mrf.mxu0
    %v4265 = vadd.f32 0.0, %v4264
    %v4266 = vpop.f32.mrf.mxu0
    %v4267 = vadd.f32 0.0, %v4266
    %4268 = vdwg.mxu0
    %4269 = vmatprep.subr.mxu0 %v412
    %4270 = vmatpush1.msra.mxu0 %v411
    %4271 = vmatprep.subr.mxu0 %v408
    %4272 = vmatpush1.msra.mxu0 %v407
    %4273 = vmatprep.subr.mxu0 %v404
    %4274 = vmatpush1.msra.mxu0 %v403
    %4275 = vmatprep.subr.mxu0 %v400
    %4276 = vmatpush1.msra.mxu0 %v399
    %4277 = vmatprep.subr.mxu0 %v396
    %4278 = vmatpush1.msra.mxu0 %v395
    %4279 = vmatprep.subr.mxu0 %v392
    %4280 = vmatpush1.msra.mxu0 %v391
    %4281 = vmatprep.subr.mxu0 %v388
    %4282 = vmatpush1.msra.mxu0 %v387
    %4283 = vmatprep.subr.mxu0 %v384
    %4284 = vmatpush1.msra.mxu0 %v383
    %4285 = vmatprep.subr.mxu0 %v380
    %4286 = vmatpush1.msra.mxu0 %v379
    %4287 = vmatprep.subr.mxu0 %v376
    %4288 = vmatpush1.msra.mxu0 %v375
    %4289 = vmatprep.subr.mxu0 %v372
    %4290 = vmatpush1.msra.mxu0 %v371
    %4291 = vmatprep.subr.mxu0 %v368
    %4292 = vmatpush1.msra.mxu0 %v367
    %4293 = vmatprep.subr.mxu0 %v364
    %4294 = vmatpush1.msra.mxu0 %v363
    %4295 = vmatprep.subr.mxu0 %v360
    %4296 = vmatpush1.msra.mxu0 %v359
    %4297 = vmatprep.subr.mxu0 %v356
    %4298 = vmatpush1.msra.mxu0 %v355
    %4299 = vmatprep.subr.mxu0 %v352
    %4300 = vmatpush1.msra.mxu0 %v351
    %4301 = vmatprep.subr.mxu0 0.0
    %4302 = vmatpush2.msra.mxu0 0.0
    %4303 = vmatprep.subr.mxu0 0.0
    %4304 = vmatpush2.msra.mxu0 0.0
    %4305 = vmatprep.subr.mxu0 0.0
    %4306 = vmatpush2.msra.mxu0 0.0
    %4307 = vmatprep.subr.mxu0 0.0
    %4308 = vmatpush2.msra.mxu0 0.0
    %4309 = vmatprep.subr.mxu0 0.0
    %4310 = vmatpush2.msra.mxu0 0.0
    %4311 = vmatprep.subr.mxu0 0.0
    %4312 = vmatpush2.msra.mxu0 0.0
    %4313 = vmatprep.subr.mxu0 0.0
    %4314 = vmatpush2.msra.mxu0 0.0
    %4315 = vmatprep.subr.mxu0 0.0
    %4316 = vmatpush2.msra.mxu0 0.0
    %4317 = vmatprep.subr.mxu0 0.0
    %4318 = vmatpush2.msra.mxu0 0.0
    %4319 = vmatprep.subr.mxu0 0.0
    %4320 = vmatpush2.msra.mxu0 0.0
    %4321 = vmatprep.subr.mxu0 0.0
    %4322 = vmatpush2.msra.mxu0 0.0
    %4323 = vmatprep.subr.mxu0 0.0
    %4324 = vmatpush2.msra.mxu0 0.0
    %4325 = vmatprep.subr.mxu0 0.0
    %4326 = vmatpush2.msra.mxu0 0.0
    %4327 = vmatprep.subr.mxu0 0.0
    %4328 = vmatpush2.msra.mxu0 0.0
    %4329 = vmatprep.subr.mxu0 0.0
    %4330 = vmatpush2.msra.mxu0 0.0
    %4331 = vmatprep.subr.mxu0 0.0
    %4332 = vmatpush2.msra.mxu0 0.0
    %4333 = vmatprep.mubr.f32.mxu0 0.0
    %4334 = vmatmul.mubr.f32.gmra.mxu0 %v3870
    %v4335 = vpop.f32.mrf.mxu0
    %v4336 = vadd.f32 0.0, %v4335
    %v4337 = vpop.f32.mrf.mxu0
    %v4338 = vadd.f32 0.0, %v4337
    %4339 = vdwg.mxu0
    %v4344 = vrot.slane %v4265, 2
    %v4345 = vrot.slane %v4267, 2
    %v4346 = vrot.slane %v4336, 2
    %v4347 = vrot.slane %v4338, 2
    %v4352 = vadd.f32 %v4194, %v4344
    %v4353 = vadd.f32 %v4195, %v4345
    %v4354 = vadd.f32 %v4196, %v4346
    %v4355 = vadd.f32 %v4197, %v4347
    %v4356 = vmul.f32 %v4352, 0.5
    %v4357 = vtanh.pop %v4356
    %v4358 = vmul.f32 %v4357, 0.5
    %v4359 = vadd.f32 %v4358, 0.5
    %v4360 = vmul.f32 %v4353, 0.5
    %v4361 = vtanh.pop %v4360
    %v4362 = vmul.f32 %v4361, 0.5
    %v4363 = vadd.f32 %v4362, 0.5
    %v4364 = vtanh.pop %v4354
    %v4365 = vmul.f32 %v4355, 0.5
    %v4366 = vtanh.pop %v4365
    %v4367 = vmul.f32 %v4366, 0.5
    %v4368 = vadd.f32 %v4367, 0.5
    %v4370 = vrot.slane %v3864, 6
    %v4372 = vmul.f32 %v4363, %v4370
    %v4373 = vmul.f32 %v4359, %v4364
    %v4374 = vadd.f32 %v4372, %v4373
    %v4375 = vtanh.pop %v4374
    %v4376 = vmul.f32 %v4368, %v4375
    %v4378 = vrot.slane %v4033, 2
    %v4380 = vrot.slane %v4376, 6
    %v4381 = vrot.slane %v4378, 6
    %4384 = vmatprep.subr.mxu0 %v638
    %4385 = vmatpush1.msra.mxu0 %v637
    %4386 = vmatprep.subr.mxu0 %v634
    %4387 = vmatpush1.msra.mxu0 %v633
    %4388 = vmatprep.subr.mxu0 %v630
    %4389 = vmatpush1.msra.mxu0 %v629
    %4390 = vmatprep.subr.mxu0 %v626
    %4391 = vmatpush1.msra.mxu0 %v625
    %4392 = vmatprep.subr.mxu0 %v622
    %4393 = vmatpush1.msra.mxu0 %v621
    %4394 = vmatprep.subr.mxu0 %v618
    %4395 = vmatpush1.msra.mxu0 %v617
    %4396 = vmatprep.subr.mxu0 %v614
    %4397 = vmatpush1.msra.mxu0 %v613
    %4398 = vmatprep.subr.mxu0 %v610
    %4399 = vmatpush1.msra.mxu0 %v609
    %4400 = vmatprep.subr.mxu0 %v606
    %4401 = vmatpush1.msra.mxu0 %v605
    %4402 = vmatprep.subr.mxu0 %v602
    %4403 = vmatpush1.msra.mxu0 %v601
    %4404 = vmatprep.subr.mxu0 %v598
    %4405 = vmatpush1.msra.mxu0 %v597
    %4406 = vmatprep.subr.mxu0 %v594
    %4407 = vmatpush1.msra.mxu0 %v593
    %4408 = vmatprep.subr.mxu0 %v590
    %4409 = vmatpush1.msra.mxu0 %v589
    %4410 = vmatprep.subr.mxu0 %v586
    %4411 = vmatpush1.msra.mxu0 %v585
    %4412 = vmatprep.subr.mxu0 %v582
    %4413 = vmatpush1.msra.mxu0 %v581
    %4414 = vmatprep.subr.mxu0 %v578
    %4415 = vmatpush1.msra.mxu0 %v577
    %4416 = vmatprep.subr.mxu0 %v702
    %4417 = vmatpush2.msra.mxu0 %v701
    %4418 = vmatprep.subr.mxu0 %v698
    %4419 = vmatpush2.msra.mxu0 %v697
    %4420 = vmatprep.subr.mxu0 %v694
    %4421 = vmatpush2.msra.mxu0 %v693
    %4422 = vmatprep.subr.mxu0 %v690
    %4423 = vmatpush2.msra.mxu0 %v689
    %4424 = vmatprep.subr.mxu0 %v686
    %4425 = vmatpush2.msra.mxu0 %v685
    %4426 = vmatprep.subr.mxu0 %v682
    %4427 = vmatpush2.msra.mxu0 %v681
    %4428 = vmatprep.subr.mxu0 %v678
    %4429 = vmatpush2.msra.mxu0 %v677
    %4430 = vmatprep.subr.mxu0 %v674
    %4431 = vmatpush2.msra.mxu0 %v673
    %4432 = vmatprep.subr.mxu0 %v670
    %4433 = vmatpush2.msra.mxu0 %v669
    %4434 = vmatprep.subr.mxu0 %v666
    %4435 = vmatpush2.msra.mxu0 %v665
    %4436 = vmatprep.subr.mxu0 %v662
    %4437 = vmatpush2.msra.mxu0 %v661
    %4438 = vmatprep.subr.mxu0 %v658
    %4439 = vmatpush2.msra.mxu0 %v657
    %4440 = vmatprep.subr.mxu0 %v654
    %4441 = vmatpush2.msra.mxu0 %v653
    %4442 = vmatprep.subr.mxu0 %v650
    %4443 = vmatpush2.msra.mxu0 %v649
    %4444 = vmatprep.subr.mxu0 %v646
    %4445 = vmatpush2.msra.mxu0 %v645
    %4446 = vmatprep.subr.mxu0 %v642
    %4447 = vmatpush2.msra.mxu0 %v641
    %4448 = vmatprep.mubr.f32.mxu0 %v4381
    %4449 = vmatmul.mubr.f32.gmra.mxu0 %v4380
    %v4450 = vpop.f32.mrf.mxu0
    %v4451 = vadd.f32 %v306, %v4450
    %v4452 = vpop.f32.mrf.mxu0
    %v4453 = vadd.f32 %v310, %v4452
    %4454 = vdwg.mxu0
    %4455 = vmatprep.subr.mxu0 %v640
    %4456 = vmatpush1.msra.mxu0 %v639
    %4457 = vmatprep.subr.mxu0 %v636
    %4458 = vmatpush1.msra.mxu0 %v635
    %4459 = vmatprep.subr.mxu0 %v632
    %4460 = vmatpush1.msra.mxu0 %v631
    %4461 = vmatprep.subr.mxu0 %v628
    %4462 = vmatpush1.msra.mxu0 %v627
    %4463 = vmatprep.subr.mxu0 %v624
    %4464 = vmatpush1.msra.mxu0 %v623
    %4465 = vmatprep.subr.mxu0 %v620
    %4466 = vmatpush1.msra.mxu0 %v619
    %4467 = vmatprep.subr.mxu0 %v616
    %4468 = vmatpush1.msra.mxu0 %v615
    %4469 = vmatprep.subr.mxu0 %v612
    %4470 = vmatpush1.msra.mxu0 %v611
    %4471 = vmatprep.subr.mxu0 %v608
    %4472 = vmatpush1.msra.mxu0 %v607
    %4473 = vmatprep.subr.mxu0 %v604
    %4474 = vmatpush1.msra.mxu0 %v603
    %4475 = vmatprep.subr.mxu0 %v600
    %4476 = vmatpush1.msra.mxu0 %v599
    %4477 = vmatprep.subr.mxu0 %v596
    %4478 = vmatpush1.msra.mxu0 %v595
    %4479 = vmatprep.subr.mxu0 %v592
    %4480 = vmatpush1.msra.mxu0 %v591
    %4481 = vmatprep.subr.mxu0 %v588
    %4482 = vmatpush1.msra.mxu0 %v587
    %4483 = vmatprep.subr.mxu0 %v584
    %4484 = vmatpush1.msra.mxu0 %v583
    %4485 = vmatprep.subr.mxu0 %v580
    %4486 = vmatpush1.msra.mxu0 %v579
    %4487 = vmatprep.subr.mxu0 %v704
    %4488 = vmatpush2.msra.mxu0 %v703
    %4489 = vmatprep.subr.mxu0 %v700
    %4490 = vmatpush2.msra.mxu0 %v699
    %4491 = vmatprep.subr.mxu0 %v696
    %4492 = vmatpush2.msra.mxu0 %v695
    %4493 = vmatprep.subr.mxu0 %v692
    %4494 = vmatpush2.msra.mxu0 %v691
    %4495 = vmatprep.subr.mxu0 %v688
    %4496 = vmatpush2.msra.mxu0 %v687
    %4497 = vmatprep.subr.mxu0 %v684
    %4498 = vmatpush2.msra.mxu0 %v683
    %4499 = vmatprep.subr.mxu0 %v680
    %4500 = vmatpush2.msra.mxu0 %v679
    %4501 = vmatprep.subr.mxu0 %v676
    %4502 = vmatpush2.msra.mxu0 %v675
    %4503 = vmatprep.subr.mxu0 %v672
    %4504 = vmatpush2.msra.mxu0 %v671
    %4505 = vmatprep.subr.mxu0 %v668
    %4506 = vmatpush2.msra.mxu0 %v667
    %4507 = vmatprep.subr.mxu0 %v664
    %4508 = vmatpush2.msra.mxu0 %v663
    %4509 = vmatprep.subr.mxu0 %v660
    %4510 = vmatpush2.msra.mxu0 %v659
    %4511 = vmatprep.subr.mxu0 %v656
    %4512 = vmatpush2.msra.mxu0 %v655
    %4513 = vmatprep.subr.mxu0 %v652
    %4514 = vmatpush2.msra.mxu0 %v651
    %4515 = vmatprep.subr.mxu0 %v648
    %4516 = vmatpush2.msra.mxu0 %v647
    %4517 = vmatprep.subr.mxu0 %v644
    %4518 = vmatpush2.msra.mxu0 %v643
    %4519 = vmatprep.mubr.f32.mxu0 %v4381
    %4520 = vmatmul.mubr.f32.gmra.mxu0 %v4380
    %v4521 = vpop.f32.mrf.mxu0
    %v4522 = vadd.f32 %v314, %v4521
    %v4523 = vpop.f32.mrf.mxu0
    %v4524 = vadd.f32 %v318, %v4523
    %4525 = vdwg.mxu0
    %v4526 = vmul.f32 %v4451, 0.5
    %v4527 = vtanh.pop %v4526
    %v4528 = vmul.f32 %v4527, 0.5
    %v4529 = vadd.f32 %v4528, 0.5
    %v4530 = vmul.f32 %v4453, 0.5
    %v4531 = vtanh.pop %v4530
    %v4532 = vmul.f32 %v4531, 0.5
    %v4533 = vadd.f32 %v4532, 0.5
    %v4534 = vtanh.pop %v4522
    %v4535 = vmul.f32 %v4524, 0.5
    %v4536 = vtanh.pop %v4535
    %v4537 = vmul.f32 %v4536, 0.5
    %v4538 = vadd.f32 %v4537, 0.5
    %v4539 = vmul.f32 %v4533, %v4031
    %v4540 = vmul.f32 %v4529, %v4534
    %v4541 = vadd.f32 %v4539, %v4540
    %v4542 = vtanh.pop %v4541
    %v4543 = vmul.f32 %v4538, %v4542
    %4544 = vmatprep.subr.mxu0 %v926
    %4545 = vmatpush1.msra.mxu0 %v925
    %4546 = vmatprep.subr.mxu0 %v922
    %4547 = vmatpush1.msra.mxu0 %v921
    %4548 = vmatprep.subr.mxu0 %v918
    %4549 = vmatpush1.msra.mxu0 %v917
    %4550 = vmatprep.subr.mxu0 %v914
    %4551 = vmatpush1.msra.mxu0 %v913
    %4552 = vmatprep.subr.mxu0 %v910
    %4553 = vmatpush1.msra.mxu0 %v909
    %4554 = vmatprep.subr.mxu0 %v906
    %4555 = vmatpush1.msra.mxu0 %v905
    %4556 = vmatprep.subr.mxu0 %v902
    %4557 = vmatpush1.msra.mxu0 %v901
    %4558 = vmatprep.subr.mxu0 %v898
    %4559 = vmatpush1.msra.mxu0 %v897
    %4560 = vmatprep.subr.mxu0 %v894
    %4561 = vmatpush1.msra.mxu0 %v893
    %4562 = vmatprep.subr.mxu0 %v890
    %4563 = vmatpush1.msra.mxu0 %v889
    %4564 = vmatprep.subr.mxu0 %v886
    %4565 = vmatpush1.msra.mxu0 %v885
    %4566 = vmatprep.subr.mxu0 %v882
    %4567 = vmatpush1.msra.mxu0 %v881
    %4568 = vmatprep.subr.mxu0 %v878
    %4569 = vmatpush1.msra.mxu0 %v877
    %4570 = vmatprep.subr.mxu0 %v874
    %4571 = vmatpush1.msra.mxu0 %v873
    %4572 = vmatprep.subr.mxu0 %v870
    %4573 = vmatpush1.msra.mxu0 %v869
    %4574 = vmatprep.subr.mxu0 %v866
    %4575 = vmatpush1.msra.mxu0 %v865
    %4576 = vmatprep.subr.mxu0 %v990
    %4577 = vmatpush2.msra.mxu0 %v989
    %4578 = vmatprep.subr.mxu0 %v986
    %4579 = vmatpush2.msra.mxu0 %v985
    %4580 = vmatprep.subr.mxu0 %v982
    %4581 = vmatpush2.msra.mxu0 %v981
    %4582 = vmatprep.subr.mxu0 %v978
    %4583 = vmatpush2.msra.mxu0 %v977
    %4584 = vmatprep.subr.mxu0 %v974
    %4585 = vmatpush2.msra.mxu0 %v973
    %4586 = vmatprep.subr.mxu0 %v970
    %4587 = vmatpush2.msra.mxu0 %v969
    %4588 = vmatprep.subr.mxu0 %v966
    %4589 = vmatpush2.msra.mxu0 %v965
    %4590 = vmatprep.subr.mxu0 %v962
    %4591 = vmatpush2.msra.mxu0 %v961
    %4592 = vmatprep.subr.mxu0 %v958
    %4593 = vmatpush2.msra.mxu0 %v957
    %4594 = vmatprep.subr.mxu0 %v954
    %4595 = vmatpush2.msra.mxu0 %v953
    %4596 = vmatprep.subr.mxu0 %v950
    %4597 = vmatpush2.msra.mxu0 %v949
    %4598 = vmatprep.subr.mxu0 %v946
    %4599 = vmatpush2.msra.mxu0 %v945
    %4600 = vmatprep.subr.mxu0 %v942
    %4601 = vmatpush2.msra.mxu0 %v941
    %4602 = vmatprep.subr.mxu0 %v938
    %4603 = vmatpush2.msra.mxu0 %v937
    %4604 = vmatprep.subr.mxu0 %v934
    %4605 = vmatpush2.msra.mxu0 %v933
    %4606 = vmatprep.subr.mxu0 %v930
    %4607 = vmatpush2.msra.mxu0 %v929
    %4608 = vmatprep.mubr.f32.mxu0 %v4193
    %4609 = vmatmul.mubr.f32.gmra.mxu0 %v4543
    %v4610 = vpop.f32.mrf.mxu0
    %v4611 = vadd.f32 %v328, %v4610
    %v4612 = vpop.f32.mrf.mxu0
    %v4613 = vadd.f32 %v332, %v4612
    %4614 = vdwg.mxu0
    %4615 = vmatprep.subr.mxu0 %v928
    %4616 = vmatpush1.msra.mxu0 %v927
    %4617 = vmatprep.subr.mxu0 %v924
    %4618 = vmatpush1.msra.mxu0 %v923
    %4619 = vmatprep.subr.mxu0 %v920
    %4620 = vmatpush1.msra.mxu0 %v919
    %4621 = vmatprep.subr.mxu0 %v916
    %4622 = vmatpush1.msra.mxu0 %v915
    %4623 = vmatprep.subr.mxu0 %v912
    %4624 = vmatpush1.msra.mxu0 %v911
    %4625 = vmatprep.subr.mxu0 %v908
    %4626 = vmatpush1.msra.mxu0 %v907
    %4627 = vmatprep.subr.mxu0 %v904
    %4628 = vmatpush1.msra.mxu0 %v903
    %4629 = vmatprep.subr.mxu0 %v900
    %4630 = vmatpush1.msra.mxu0 %v899
    %4631 = vmatprep.subr.mxu0 %v896
    %4632 = vmatpush1.msra.mxu0 %v895
    %4633 = vmatprep.subr.mxu0 %v892
    %4634 = vmatpush1.msra.mxu0 %v891
    %4635 = vmatprep.subr.mxu0 %v888
    %4636 = vmatpush1.msra.mxu0 %v887
    %4637 = vmatprep.subr.mxu0 %v884
    %4638 = vmatpush1.msra.mxu0 %v883
    %4639 = vmatprep.subr.mxu0 %v880
    %4640 = vmatpush1.msra.mxu0 %v879
    %4641 = vmatprep.subr.mxu0 %v876
    %4642 = vmatpush1.msra.mxu0 %v875
    %4643 = vmatprep.subr.mxu0 %v872
    %4644 = vmatpush1.msra.mxu0 %v871
    %4645 = vmatprep.subr.mxu0 %v868
    %4646 = vmatpush1.msra.mxu0 %v867
    %4647 = vmatprep.subr.mxu0 %v992
    %4648 = vmatpush2.msra.mxu0 %v991
    %4649 = vmatprep.subr.mxu0 %v988
    %4650 = vmatpush2.msra.mxu0 %v987
    %4651 = vmatprep.subr.mxu0 %v984
    %4652 = vmatpush2.msra.mxu0 %v983
    %4653 = vmatprep.subr.mxu0 %v980
    %4654 = vmatpush2.msra.mxu0 %v979
    %4655 = vmatprep.subr.mxu0 %v976
    %4656 = vmatpush2.msra.mxu0 %v975
    %4657 = vmatprep.subr.mxu0 %v972
    %4658 = vmatpush2.msra.mxu0 %v971
    %4659 = vmatprep.subr.mxu0 %v968
    %4660 = vmatpush2.msra.mxu0 %v967
    %4661 = vmatprep.subr.mxu0 %v964
    %4662 = vmatpush2.msra.mxu0 %v963
    %4663 = vmatprep.subr.mxu0 %v960
    %4664 = vmatpush2.msra.mxu0 %v959
    %4665 = vmatprep.subr.mxu0 %v956
    %4666 = vmatpush2.msra.mxu0 %v955
    %4667 = vmatprep.subr.mxu0 %v952
    %4668 = vmatpush2.msra.mxu0 %v951
    %4669 = vmatprep.subr.mxu0 %v948
    %4670 = vmatpush2.msra.mxu0 %v947
    %4671 = vmatprep.subr.mxu0 %v944
    %4672 = vmatpush2.msra.mxu0 %v943
    %4673 = vmatprep.subr.mxu0 %v940
    %4674 = vmatpush2.msra.mxu0 %v939
    %4675 = vmatprep.subr.mxu0 %v936
    %4676 = vmatpush2.msra.mxu0 %v935
    %4677 = vmatprep.subr.mxu0 %v932
    %4678 = vmatpush2.msra.mxu0 %v931
    %4679 = vmatprep.mubr.f32.mxu0 %v4193
    %4680 = vmatmul.mubr.f32.gmra.mxu0 %v4543
    %v4681 = vpop.f32.mrf.mxu0
    %v4682 = vadd.f32 %v336, %v4681
    %v4683 = vpop.f32.mrf.mxu0
    %v4684 = vadd.f32 %v340, %v4683
    %4685 = vdwg.mxu0
    %v4686 = vmul.f32 %v4611, 0.5
    %v4687 = vtanh.pop %v4686
    %v4688 = vmul.f32 %v4687, 0.5
    %v4689 = vadd.f32 %v4688, 0.5
    %v4690 = vmul.f32 %v4613, 0.5
    %v4691 = vtanh.pop %v4690
    %v4692 = vmul.f32 %v4691, 0.5
    %v4693 = vadd.f32 %v4692, 0.5
    %v4694 = vtanh.pop %v4682
    %v4695 = vmul.f32 %v4684, 0.5
    %v4696 = vtanh.pop %v4695
    %v4697 = vmul.f32 %v4696, 0.5
    %v4698 = vadd.f32 %v4697, 0.5
    %v4699 = vmul.f32 %v4693, %v4191
    %v4700 = vmul.f32 %v4689, %v4694
    %v4701 = vadd.f32 %v4699, %v4700
    %v4702 = vtanh.pop %v4701
    %v4703 = vmul.f32 %v4698, %v4702
    %v4704 = vld [vmem:[%s8] sm:$0xff]
    %v4705 = vld [vmem:[%s8 + $0x8] sm:$0xff]
    %v4706 = vld [vmem:[%s8 + $0x10] sm:$0xff]
    %v4707 = vld [vmem:[%s8 + $0x18] sm:$0xff]
    %v4708 = vld [vmem:[%s8 + $0x20] sm:$0xff]
    %v4709 = vld [vmem:[%s8 + $0x28] sm:$0xff]
    %v4710 = vld [vmem:[%s8 + $0x30] sm:$0xff]
    %v4711 = vld [vmem:[%s8 + $0x38] sm:$0xff]
    %v4712 = vld [vmem:[%s8 + $0x40] sm:$0xff]
    %v4713 = vld [vmem:[%s8 + $0x48] sm:$0xff]
    %v4714 = vld [vmem:[%s8 + $0x50] sm:$0xff]
    %v4715 = vld [vmem:[%s8 + $0x58] sm:$0xff]
    %v4716 = vld [vmem:[%s8 + $0x60] sm:$0xff]
    %v4717 = vld [vmem:[%s8 + $0x68] sm:$0xff]
    %v4718 = vld [vmem:[%s8 + $0x70] sm:$0xff]
    %v4719 = vld [vmem:[%s8 + $0x78] sm:$0xff]
    %v4720 = vld [vmem:[#allocation3] sm:$0x1]
    %v4722 = vlaneseq
    %v4723 = vshrl.u32 %v4722, 7
    %v4724 = vsub.s32 0, %v4723
    %v4725 = vrot.slane %v4720, %v4724
    %4727 = vmatprep.subr.mxu0 0.0
    %4728 = vmatpush1.msra.mxu0 %v4719
    %4729 = vmatprep.subr.mxu0 0.0
    %4730 = vmatpush1.msra.mxu0 %v4718
    %4731 = vmatprep.subr.mxu0 0.0
    %4732 = vmatpush1.msra.mxu0 %v4717
    %4733 = vmatprep.subr.mxu0 0.0
    %4734 = vmatpush1.msra.mxu0 %v4716
    %4735 = vmatprep.subr.mxu0 0.0
    %4736 = vmatpush1.msra.mxu0 %v4715
    %4737 = vmatprep.subr.mxu0 0.0
    %4738 = vmatpush1.msra.mxu0 %v4714
    %4739 = vmatprep.subr.mxu0 0.0
    %4740 = vmatpush1.msra.mxu0 %v4713
    %4741 = vmatprep.subr.mxu0 0.0
    %4742 = vmatpush1.msra.mxu0 %v4712
    %4743 = vmatprep.subr.mxu0 0.0
    %4744 = vmatpush1.msra.mxu0 %v4711
    %4745 = vmatprep.subr.mxu0 0.0
    %4746 = vmatpush1.msra.mxu0 %v4710
    %4747 = vmatprep.subr.mxu0 0.0
    %4748 = vmatpush1.msra.mxu0 %v4709
    %4749 = vmatprep.subr.mxu0 0.0
    %4750 = vmatpush1.msra.mxu0 %v4708
    %4751 = vmatprep.subr.mxu0 0.0
    %4752 = vmatpush1.msra.mxu0 %v4707
    %4753 = vmatprep.subr.mxu0 0.0
    %4754 = vmatpush1.msra.mxu0 %v4706
    %4755 = vmatprep.subr.mxu0 0.0
    %4756 = vmatpush1.msra.mxu0 %v4705
    %4757 = vmatprep.subr.mxu0 0.0
    %4758 = vmatpush1.msra.mxu0 %v4704
    %4759 = vmatprep.subr.mxu0 0.0
    %4760 = vmatpush2.msra.mxu0 0.0
    %4761 = vmatprep.subr.mxu0 0.0
    %4762 = vmatpush2.msra.mxu0 0.0
    %4763 = vmatprep.subr.mxu0 0.0
    %4764 = vmatpush2.msra.mxu0 0.0
    %4765 = vmatprep.subr.mxu0 0.0
    %4766 = vmatpush2.msra.mxu0 0.0
    %4767 = vmatprep.subr.mxu0 0.0
    %4768 = vmatpush2.msra.mxu0 0.0
    %4769 = vmatprep.subr.mxu0 0.0
    %4770 = vmatpush2.msra.mxu0 0.0
    %4771 = vmatprep.subr.mxu0 0.0
    %4772 = vmatpush2.msra.mxu0 0.0
    %4773 = vmatprep.subr.mxu0 0.0
    %4774 = vmatpush2.msra.mxu0 0.0
    %4775 = vmatprep.subr.mxu0 0.0
    %4776 = vmatpush2.msra.mxu0 0.0
    %4777 = vmatprep.subr.mxu0 0.0
    %4778 = vmatpush2.msra.mxu0 0.0
    %4779 = vmatprep.subr.mxu0 0.0
    %4780 = vmatpush2.msra.mxu0 0.0
    %4781 = vmatprep.subr.mxu0 0.0
    %4782 = vmatpush2.msra.mxu0 0.0
    %4783 = vmatprep.subr.mxu0 0.0
    %4784 = vmatpush2.msra.mxu0 0.0
    %4785 = vmatprep.subr.mxu0 0.0
    %4786 = vmatpush2.msra.mxu0 0.0
    %4787 = vmatprep.subr.mxu0 0.0
    %4788 = vmatpush2.msra.mxu0 0.0
    %4789 = vmatprep.subr.mxu0 0.0
    %4790 = vmatpush2.msra.mxu0 0.0
    %4791 = vmatprep.mubr.f32.mxu0 0.0
    %4792 = vmatmul.mubr.f32.gmra.mxu0 %v4703
    %v4793 = vpop.f32.mrf.mxu0
    %v4794 = vadd.f32 %v4725, %v4793
    %v4795 = vpop.f32.mrf.mxu0
    %4796 = vdwg.mxu0
    %vm4797 = vcmask 1024
    %4798 = vst.msk [vmem:[%s10] sm:$0x3] %vm4797, %v4794
    // Predicated region
    $region58: #{tpu_custom_call.1} parent=1 // pred_check
      _
    $region59: #{tpu_custom_call.1} parent=1 // pred_check_branch
      %4800 = sbr.rel (0) target = $region61
    $region60: #{tpu_custom_call.1} parent=1 // pred_region
      _
    $region61: #{tpu_custom_call.1} parent=1 // pred_fallthru
      _
    // Predicated region
    $region62: #{tpu_custom_call.1} parent=1 // pred_check
      _
    $region63: #{tpu_custom_call.1} parent=1 // pred_check_branch
      %4802 = sbr.rel (0) target = $region65
    $region64: #{tpu_custom_call.1} parent=1 // pred_region
      _
    $region65: #{tpu_custom_call.1} parent=1 // pred_fallthru
      _
    %4803 = vsyncpa [#allocation5], 1
    %4804 = vsyncpa [#allocation7], 1
    %4805 = vsyncpa [#allocation10], 1

</llo_original>
